<compile_context>
chip_gen: v5e
topology: v5e:2x2
jax: 0.10.0
libtpu: 0.0.40
codegen_flags: <defaults>
</compile_context>

<pallas_src>
import functools

import jax
import jax.numpy as jnp
from jax import lax
from jax.experimental import pallas as pl
from jax.experimental.pallas import tpu as pltpu

# ----------------------------- configuration ---------------------------------
BS = 2            # batch size (tables)
NUM_ROWS = 8      # rows per table (sequence axis for 'col' attention) — power of 2
NUM_COLS = 4      # columns per table
SEQ_LEN = 6       # tokens per cell
DIM = 32          # sentence-transformer hidden dim (self.dim)
HEADS = 2
DIM_HEAD = 16
DEPTH = 2
CONT_DIM = 256    # self.cont_dim
VOCAB = 97
FF_MULT = 4
HID = FF_MULT * DIM
INNER = HEADS * DIM_HEAD
NEG_INF = -1e9
MXU_DTYPE = jnp.bfloat16   # bf16 MXU operands (native on v6e/v7x, valid on v5e's MXU)

GRT = NUM_COLS * NUM_ROWS      # cells per table (rows of the per-table activation)
TOKS = GRT * SEQ_LEN           # token slots per table


# ------------------------------ in-kernel helpers ------------------------------
def _l2_normalize(v, eps=1e-12):
    # F.normalize(p=2): x / max(||x||, eps) == x * rsqrt(max(||x||^2, eps^2))
    return v * lax.rsqrt(jnp.maximum(jnp.sum(v * v, axis=-1, keepdims=True), eps * eps))


def _layer_norm(v, g, b, eps=1e-5):
    mu = jnp.mean(v, axis=-1, keepdims=True)
    var = jnp.mean((v - mu) ** 2, axis=-1, keepdims=True)
    return (v - mu) * lax.rsqrt(var + eps) * g + b


def _mm(a, w):
    # MXU matmul: bf16 operands, f32 accumulation.
    return jnp.dot(a.astype(MXU_DTYPE), w.astype(MXU_DTYPE),
                   preferred_element_type=jnp.float32)


# --------------------- fused TableEncoder forward kernel -----------------------
def fused_table_encoder_kernel(ids_ref, msk_ref, keym_ref, emb_tbl_ref, cls_ref,
                               ln1g_ref, ln1b_ref, wqkv_ref, wo_ref, bo_ref,
                               ln2g_ref, ln2b_ref, w1_ref, b1_ref, w2_ref, b2_ref,
                               pw1_ref, pb1_ref, pw2_ref, pb2_ref,
                               out_ref, *, depth, heads, dim_head, rows, seq_len):
    T = ids_ref.shape[0]          # token slots for this table
    GR = T // seq_len             # cells per table (= cols * rows)
    G = GR // rows                # columns
    D = cls_ref.shape[-1]
    vocab = emb_tbl_ref.shape[0]

    # ---- sentence-transformer stand-in: embedding gather as a one-hot MXU matmul ----
    # TODO(synk): the frozen pretrained AutoModel cannot be reproduced in-script;
    # a deterministic token-embedding table stands in for its last_hidden_state.
    vloc = lax.broadcasted_iota(jnp.int32, (T, vocab), 1)
    oneh = (vloc == ids_ref[...]).astype(jnp.float32)
    tok = jnp.dot(oneh, emb_tbl_ref[...], preferred_element_type=jnp.float32)   # (T, D) exact

    # ---- masked mean pooling per cell as one MXU contraction + L2 normalize ----
    tid = lax.broadcasted_iota(jnp.int32, (GR, T), 1)
    rid = lax.broadcasted_iota(jnp.int32, (GR, T), 0)
    in_cell = (tid >= rid * seq_len) & (tid < rid * seq_len + seq_len)
    msk = jnp.broadcast_to(msk_ref[...], (GR, T))                   # (1, T) -> (GR, T)
    sel = jnp.where(in_cell, msk, 0.0)                              # (GR, T)
    summed = jnp.dot(sel, tok, preferred_element_type=jnp.float32)  # (GR, D)
    denom = jnp.maximum(jnp.sum(sel, axis=-1, keepdims=True), 1e-9)  # clamp(min=1e-9)
    emb = _l2_normalize(summed / denom)

    # ---- 'cls' pooling: row 0 of every column becomes the learned cls token ----
    ridD = lax.broadcasted_iota(jnp.int32, (GR, D), 0)
    row_in_group = jnp.bitwise_and(ridD, rows - 1)                  # rows is a power of 2
    x = jnp.where(row_in_group == 0, jnp.broadcast_to(cls_ref[...], (GR, D)), emb)

    # ---- block-diagonal + key-padding additive bias, built in-kernel ----
    gi = lax.broadcasted_iota(jnp.int32, (GR, GR), 0)
    gj = lax.broadcasted_iota(jnp.int32, (GR, GR), 1)
    same_col = jnp.bitwise_and(gi, -rows) == jnp.bitwise_and(gj, -rows)
    bias = jnp.where(same_col, 0.0, NEG_INF) + (1.0 - keym_ref[...]) * NEG_INF   # (GR, GR)

    # ---- 'col'-attention transformer: depth pre-norm layers ----
    scale = dim_head ** -0.5
    for d in range(depth):
        # PreNorm -> multi-head attention (fused QKV, fused Wo) -> residual
        h = _layer_norm(x, ln1g_ref[d], ln1b_ref[d])
        qkv = _mm(h, wqkv_ref[d])                                   # (GR, 3*H*dh), one matmul
        heads_out = []
        for hh in range(heads):                                     # static lane-offset slices
            q = qkv[:, hh * dim_head:(hh + 1) * dim_head]
            k = qkv[:, (heads + hh) * dim_head:(heads + hh + 1) * dim_head]
            v = qkv[:, (2 * heads + hh) * dim_head:(2 * heads + hh + 1) * dim_head]
            s = lax.dot_general(q.astype(MXU_DTYPE), k.astype(MXU_DTYPE),
                                (((1,), (1,)), ((), ())),
                                preferred_element_type=jnp.float32) * scale + bias
            s = s - jnp.max(s, axis=-1, keepdims=True)
            p = jnp.exp(s)
            p = p * pl.reciprocal(jnp.sum(p, axis=-1, keepdims=True), approx=True)
            heads_out.append(_mm(p, v))                             # (GR, dh)
        o_cat = jnp.concatenate(heads_out, axis=-1)                 # (GR, H*dh) lane concat
        x = x + _mm(o_cat, wo_ref[d]) + bo_ref[d]

        # PreNorm -> FeedForward (Linear / GELU / Linear) -> residual
        h2 = _layer_norm(x, ln2g_ref[d], ln2b_ref[d])
        ff = _mm(h2, w1_ref[d]) + b1_ref[d]
        ff = jax.nn.gelu(ff)   # TODO(synk): tanh-approx GELU; PyTorch default is exact erf GELU
        x = x + _mm(ff, w2_ref[d]) + b2_ref[d]

    # ---- pick the cls row of every column (one-hot selector matmul), projection head ----
    si = lax.broadcasted_iota(jnp.int32, (G, GR), 0)
    sj = lax.broadcasted_iota(jnp.int32, (G, GR), 1)
    sel2 = (sj == si * rows).astype(jnp.float32)                    # (G, GR)
    col = jnp.dot(sel2, x, preferred_element_type=jnp.float32)      # (G, D)

    hp = jnp.maximum(_mm(col, pw1_ref[...]) + pb1_ref[...], 0.0)
    y = _mm(hp, pw2_ref[...]) + pb2_ref[...]
    out_ref[...] = _l2_normalize(y)                                 # (G, CONT_DIM) lane-dense


# ------------------------------- pallas_call wrapper ----------------------------
def table_encoder_pallas(ids, msk, keym, tok_emb, cls, layers, proj):
    bs = ids.shape[0]
    assert NUM_ROWS & (NUM_ROWS - 1) == 0, "bitwise group math assumes power-of-2 rows"

    def full(a):           # grid-invariant (weights): constant block index -> DMA'd once
        nd = a.ndim
        return pl.BlockSpec(a.shape, lambda b: (0,) * nd)

    def per_table(a):      # per-grid-step block over the leading (batch) axis, squeezed
        nd = a.ndim
        return pl.BlockSpec((None,) + a.shape[1:], lambda b: (b,) + (0,) * (nd - 1))

    weights = [tok_emb, cls,
               layers["ln1_g"], layers["ln1_b"], layers["wqkv"], layers["wo"], layers["bo"],
               layers["ln2_g"], layers["ln2_b"],
               layers["w1"], layers["b1"], layers["w2"], layers["b2"],
               proj["w1"], proj["b1"], proj["w2"], proj["b2"]]

    kern = functools.partial(fused_table_encoder_kernel, depth=DEPTH, heads=HEADS,
                             dim_head=DIM_HEAD, rows=NUM_ROWS, seq_len=SEQ_LEN)
    return pl.pallas_call(
        kern,
        out_shape=jax.ShapeDtypeStruct((bs, NUM_COLS, CONT_DIM), jnp.float32),
        grid=(bs,),                                              # one table per step
        in_specs=[per_table(ids), per_table(msk), per_table(keym)]
                 + [full(w) for w in weights],
        out_specs=pl.BlockSpec((None, NUM_COLS, CONT_DIM), lambda b: (b, 0, 0)),
        compiler_params=pltpu.CompilerParams(dimension_semantics=("parallel",)),
    )(ids, msk, keym, *weights)


# ------------------------------- parameters -----------------------------------
def init_table_encoder_params(key):
    keys = jax.random.split(key, 8)
    std = 0.02
    p = {
        # Stand-in for the frozen pretrained sentence transformer.
        "tok_emb": jax.random.normal(keys[0], (VOCAB, DIM), jnp.float32) * std,
        "cls": jax.random.normal(keys[1], (1, DIM), jnp.float32),
    }
    p["layers"] = dict(
        ln1_g=jnp.ones((DEPTH, 1, DIM), jnp.float32),
        ln1_b=jnp.zeros((DEPTH, 1, DIM), jnp.float32),
        # fused QKV weight; columns laid out as [q_h0..q_hH | k_h0..k_hH | v_h0..v_hH]
        wqkv=jax.random.normal(keys[2], (DEPTH, DIM, 3 * INNER), jnp.float32) * std,
        wo=jax.random.normal(keys[3], (DEPTH, INNER, DIM), jnp.float32) * std,
        bo=jnp.zeros((DEPTH, 1, DIM), jnp.float32),
        ln2_g=jnp.ones((DEPTH, 1, DIM), jnp.float32),
        ln2_b=jnp.zeros((DEPTH, 1, DIM), jnp.float32),
        w1=jax.random.normal(keys[4], (DEPTH, DIM, HID), jnp.float32) * std,
        b1=jnp.zeros((DEPTH, 1, HID), jnp.float32),
        w2=jax.random.normal(keys[5], (DEPTH, HID, DIM), jnp.float32) * std,
        b2=jnp.zeros((DEPTH, 1, DIM), jnp.float32),
    )
    # col_specific_projection_head = simple_MLP([dim, dim, cont_dim])
    p["proj"] = dict(
        w1=jax.random.normal(keys[6], (DIM, DIM), jnp.float32) * std,
        b1=jnp.zeros((1, DIM), jnp.float32),
        w2=jax.random.normal(keys[7], (DIM, CONT_DIM), jnp.float32) * std,
        b2=jnp.zeros((1, CONT_DIM), jnp.float32),
    )
    return p


# --------------------------------- forward ------------------------------------
def table_encoder_forward(params, input_ids, attention_mask, token_type_ids, table_mask):
    bs, n_rows, n_cols, seq_len = input_ids.shape
    del token_type_ids  # consumed only by the (non-reproducible) sentence transformer

    # Group cells by (batch, column) and pre-roll rows by 1 so group-row r holds original
    # row r-1's tokens (group-row 0 is overwritten in-kernel by the learned cls).
    ids_g = jnp.roll(jnp.transpose(input_ids, (0, 2, 1, 3)), 1, axis=2)
    msk_g = jnp.roll(jnp.transpose(attention_mask, (0, 2, 1, 3)), 1, axis=2)
    ids_flat = ids_g.reshape(bs, n_cols * n_rows * seq_len, 1).astype(jnp.int32)
    msk_flat = msk_g.reshape(bs, 1, n_cols * n_rows * seq_len).astype(jnp.float32)

    # Per-cell key-padding mask from table_mask (NOT rolled: cls key inherits row 0's mask).
    # TODO(synk): verify against the reference Transformer's mask handling.
    keym = jnp.transpose(table_mask, (0, 2, 1)).reshape(
        bs, 1, n_cols * n_rows).astype(jnp.float32)

    # bf16 weight masters for MXU matmuls; LN / bias params and tok_emb stay f32.
    L = params["layers"]
    layers = dict(L, wqkv=L["wqkv"].astype(MXU_DTYPE), wo=L["wo"].astype(MXU_DTYPE),
                  w1=L["w1"].astype(MXU_DTYPE), w2=L["w2"].astype(MXU_DTYPE))
    P = params["proj"]
    proj = dict(P, w1=P["w1"].astype(MXU_DTYPE), w2=P["w2"].astype(MXU_DTYPE))

    return table_encoder_pallas(ids_flat, msk_flat, keym, params["tok_emb"],
                                params["cls"], layers, proj)        # (bs, n_cols, 256)


# ---------------------------------- main ---------------------------------------
if __name__ == "__main__":
    key = jax.random.PRNGKey(0)
    k_param, k_ids, k_len = jax.random.split(key, 3)

    params = init_table_encoder_params(k_param)

    input_ids = jax.random.randint(k_ids, (BS, NUM_ROWS, NUM_COLS, SEQ_LEN), 0, VOCAB,
                                   dtype=jnp.int32)
    lengths = jax.random.randint(k_len, (BS, NUM_ROWS, NUM_COLS), 1, SEQ_LEN + 1,
                                 dtype=jnp.int32)
    attention_mask = (jnp.arange(SEQ_LEN)[None, None, None, :] < lengths[..., None]
                      ).astype(jnp.int32)
    token_type_ids = jnp.zeros_like(input_ids)
    table_mask = jnp.ones((BS, NUM_ROWS, NUM_COLS), jnp.int32)

    fwd = jax.jit(table_encoder_forward)
    out = fwd(params, input_ids, attention_mask, token_type_ids, table_mask)
    jax.block_until_ready(out)

    assert out.shape == (BS, NUM_COLS, CONT_DIM)
    assert bool(jnp.all(jnp.isfinite(out)))
    print("KERNEL_OK")
</pallas_src>

<mosaic_0001>
module attributes {stable_mosaic.version = 11 : i64} {
  func.func @fused_table_encoder_kernel(%arg0: i32, %arg1: memref<1x192x1xi32, #tpu.memory_space<vmem>>, %arg2: memref<1x1x192xf32, #tpu.memory_space<vmem>>, %arg3: memref<1x1x32xf32, #tpu.memory_space<vmem>>, %arg4: memref<97x32xf32, #tpu.memory_space<vmem>>, %arg5: memref<1x32xf32, #tpu.memory_space<vmem>>, %arg6: memref<2x1x32xf32, #tpu.memory_space<vmem>>, %arg7: memref<2x1x32xf32, #tpu.memory_space<vmem>>, %arg8: memref<2x32x96xbf16, #tpu.memory_space<vmem>>, %arg9: memref<2x32x32xbf16, #tpu.memory_space<vmem>>, %arg10: memref<2x1x32xf32, #tpu.memory_space<vmem>>, %arg11: memref<2x1x32xf32, #tpu.memory_space<vmem>>, %arg12: memref<2x1x32xf32, #tpu.memory_space<vmem>>, %arg13: memref<2x32x128xbf16, #tpu.memory_space<vmem>>, %arg14: memref<2x1x128xf32, #tpu.memory_space<vmem>>, %arg15: memref<2x128x32xbf16, #tpu.memory_space<vmem>>, %arg16: memref<2x1x32xf32, #tpu.memory_space<vmem>>, %arg17: memref<32x32xbf16, #tpu.memory_space<vmem>>, %arg18: memref<1x32xf32, #tpu.memory_space<vmem>>, %arg19: memref<32x256xbf16, #tpu.memory_space<vmem>>, %arg20: memref<1x256xf32, #tpu.memory_space<vmem>>, %arg21: memref<1x4x256xf32, #tpu.memory_space<vmem>>) attributes {dimension_semantics = [#tpu.dimension_semantics<parallel>], iteration_bounds = array<i64: 2>, scalar_prefetch = 0 : i64, scratch_operands = 0 : i64, tpu.core_type = #tpu.core_type<tc>, window_params = [{transform_indices = @transform_0, window_bounds = array<i64: 1, 192, 1>}, {transform_indices = @transform_1, window_bounds = array<i64: 1, 1, 192>}, {transform_indices = @transform_2, window_bounds = array<i64: 1, 1, 32>}, {pipeline_mode = #tpu.pipeline_mode<synchronous>, transform_indices = @transform_3, window_bounds = array<i64: 97, 32>}, {pipeline_mode = #tpu.pipeline_mode<synchronous>, transform_indices = @transform_4, window_bounds = array<i64: 1, 32>}, {pipeline_mode = #tpu.pipeline_mode<synchronous>, transform_indices = @transform_5, window_bounds = array<i64: 2, 1, 32>}, {pipeline_mode = #tpu.pipeline_mode<synchronous>, transform_indices = @transform_6, window_bounds = array<i64: 2, 1, 32>}, {pipeline_mode = #tpu.pipeline_mode<synchronous>, transform_indices = @transform_7, window_bounds = array<i64: 2, 32, 96>}, {pipeline_mode = #tpu.pipeline_mode<synchronous>, transform_indices = @transform_8, window_bounds = array<i64: 2, 32, 32>}, {pipeline_mode = #tpu.pipeline_mode<synchronous>, transform_indices = @transform_9, window_bounds = array<i64: 2, 1, 32>}, {pipeline_mode = #tpu.pipeline_mode<synchronous>, transform_indices = @transform_10, window_bounds = array<i64: 2, 1, 32>}, {pipeline_mode = #tpu.pipeline_mode<synchronous>, transform_indices = @transform_11, window_bounds = array<i64: 2, 1, 32>}, {pipeline_mode = #tpu.pipeline_mode<synchronous>, transform_indices = @transform_12, window_bounds = array<i64: 2, 32, 128>}, {pipeline_mode = #tpu.pipeline_mode<synchronous>, transform_indices = @transform_13, window_bounds = array<i64: 2, 1, 128>}, {pipeline_mode = #tpu.pipeline_mode<synchronous>, transform_indices = @transform_14, window_bounds = array<i64: 2, 128, 32>}, {pipeline_mode = #tpu.pipeline_mode<synchronous>, transform_indices = @transform_15, window_bounds = array<i64: 2, 1, 32>}, {pipeline_mode = #tpu.pipeline_mode<synchronous>, transform_indices = @transform_16, window_bounds = array<i64: 32, 32>}, {pipeline_mode = #tpu.pipeline_mode<synchronous>, transform_indices = @transform_17, window_bounds = array<i64: 1, 32>}, {pipeline_mode = #tpu.pipeline_mode<synchronous>, transform_indices = @transform_18, window_bounds = array<i64: 32, 256>}, {pipeline_mode = #tpu.pipeline_mode<synchronous>, transform_indices = @transform_19, window_bounds = array<i64: 1, 256>}, {transform_indices = @transform_20, window_bounds = array<i64: 1, 4, 256>}]} {
    %0 = tpu.iota {dimensions = array<i32: 1>} : vector<192x97xi32>
    %c0 = arith.constant 0 : index
    %c0_0 = arith.constant 0 : index
    %c0_1 = arith.constant 0 : index
    %1 = vector.load %arg1[%c0, %c0_0, %c0_1] : memref<1x192x1xi32, #tpu.memory_space<vmem>>, vector<1x192x1xi32>
    %2 = vector.shape_cast %1 : vector<1x192x1xi32> to vector<192x1xi32>
    %3 = vector.broadcast %2 : vector<192x1xi32> to vector<192x97xi32>
    %4 = arith.cmpi eq, %0, %3 : vector<192x97xi32>
    %5 = arith.extui %4 : vector<192x97xi1> to vector<192x97xi32>
    %6 = arith.sitofp %5 : vector<192x97xi32> to vector<192x97xf32>
    %c0_2 = arith.constant 0 : index
    %c0_3 = arith.constant 0 : index
    %7 = vector.load %arg4[%c0_2, %c0_3] : memref<97x32xf32, #tpu.memory_space<vmem>>, vector<97x32xf32>
    %cst = arith.constant dense<0.000000e+00> : vector<192x32xf32>
    %8 = tpu.matmul %6, %7, %cst {dimension_numbers = #tpu.dot_dimension_numbers<[1], [0], [0], [1], [0, 0, 1, 1], [], []>} : vector<192x97xf32>, vector<97x32xf32>, vector<192x32xf32> -> vector<192x32xf32>
    %9 = tpu.iota {dimensions = array<i32: 1>} : vector<32x192xi32>
    %10 = tpu.iota {dimensions = array<i32: 0>} : vector<32x192xi32>
    %c6_i32 = arith.constant 6 : i32
    %11 = vector.broadcast %c6_i32 : i32 to vector<32x192xi32>
    %12 = arith.muli %10, %11 : vector<32x192xi32>
    %13 = arith.cmpi sge, %9, %12 : vector<32x192xi32>
    %c6_i32_4 = arith.constant 6 : i32
    %14 = vector.broadcast %c6_i32_4 : i32 to vector<32x192xi32>
    %15 = arith.muli %10, %14 : vector<32x192xi32>
    %c6_i32_5 = arith.constant 6 : i32
    %16 = vector.broadcast %c6_i32_5 : i32 to vector<32x192xi32>
    %17 = arith.addi %15, %16 : vector<32x192xi32>
    %18 = arith.cmpi slt, %9, %17 : vector<32x192xi32>
    %19 = arith.andi %13, %18 : vector<32x192xi1>
    %c0_6 = arith.constant 0 : index
    %c0_7 = arith.constant 0 : index
    %c0_8 = arith.constant 0 : index
    %20 = vector.load %arg2[%c0_6, %c0_7, %c0_8] : memref<1x1x192xf32, #tpu.memory_space<vmem>>, vector<1x1x192xf32>
    %21 = vector.shape_cast %20 : vector<1x1x192xf32> to vector<1x192xf32>
    %22 = vector.shape_cast %21 : vector<1x192xf32> to vector<1x192xf32>
    %23 = vector.broadcast %22 : vector<1x192xf32> to vector<32x192xf32>
    %cst_9 = arith.constant 0.000000e+00 : f32
    %24 = vector.broadcast %cst_9 : f32 to vector<32x192xf32>
    %25 = arith.select %19, %23, %24 : vector<32x192xi1>, vector<32x192xf32>
    %cst_10 = arith.constant dense<0.000000e+00> : vector<32x32xf32>
    %26 = tpu.matmul %25, %8, %cst_10 {dimension_numbers = #tpu.dot_dimension_numbers<[1], [0], [0], [1], [0, 0, 1, 1], [], []>} : vector<32x192xf32>, vector<192x32xf32>, vector<32x32xf32> -> vector<32x32xf32>
    %cst_11 = arith.constant dense<0.000000e+00> : vector<32xf32>
    %27 = vector.multi_reduction <add>, %25, %cst_11 [1] : vector<32x192xf32> to vector<32xf32>
    %28 = vector.shape_cast %27 : vector<32xf32> to vector<32x1xf32>
    %cst_12 = arith.constant 9.99999971E-10 : f32
    %29 = vector.broadcast %cst_12 : f32 to vector<32x1xf32>
    %30 = arith.maximumf %28, %29 : vector<32x1xf32>
    %31 = vector.broadcast %30 : vector<32x1xf32> to vector<32x32xf32>
    %32 = arith.divf %26, %31 : vector<32x32xf32>
    %33 = arith.mulf %32, %32 : vector<32x32xf32>
    %cst_13 = arith.constant dense<0.000000e+00> : vector<32xf32>
    %34 = vector.multi_reduction <add>, %33, %cst_13 [1] : vector<32x32xf32> to vector<32xf32>
    %35 = vector.shape_cast %34 : vector<32xf32> to vector<32x1xf32>
    %cst_14 = arith.constant 1.000000e-24 : f32
    %36 = vector.broadcast %cst_14 : f32 to vector<32x1xf32>
    %37 = arith.maximumf %35, %36 : vector<32x1xf32>
    %38 = math.rsqrt %37 : vector<32x1xf32>
    %39 = vector.broadcast %38 : vector<32x1xf32> to vector<32x32xf32>
    %40 = arith.mulf %32, %39 : vector<32x32xf32>
    %41 = tpu.iota {dimensions = array<i32: 0>} : vector<32x32xi32>
    %c7_i32 = arith.constant 7 : i32
    %42 = vector.broadcast %c7_i32 : i32 to vector<32x32xi32>
    %43 = arith.andi %41, %42 : vector<32x32xi32>
    %c0_i32 = arith.constant 0 : i32
    %44 = vector.broadcast %c0_i32 : i32 to vector<32x32xi32>
    %45 = arith.cmpi eq, %43, %44 : vector<32x32xi32>
    %c0_15 = arith.constant 0 : index
    %c0_16 = arith.constant 0 : index
    %46 = vector.load %arg5[%c0_15, %c0_16] : memref<1x32xf32, #tpu.memory_space<vmem>>, vector<1x32xf32>
    %47 = vector.shape_cast %46 : vector<1x32xf32> to vector<1x32xf32>
    %48 = vector.broadcast %47 : vector<1x32xf32> to vector<32x32xf32>
    %49 = arith.select %45, %48, %40 : vector<32x32xi1>, vector<32x32xf32>
    %50 = tpu.iota {dimensions = array<i32: 0>} : vector<32x32xi32>
    %51 = tpu.iota {dimensions = array<i32: 1>} : vector<32x32xi32>
    %c-8_i32 = arith.constant -8 : i32
    %52 = vector.broadcast %c-8_i32 : i32 to vector<32x32xi32>
    %53 = arith.andi %50, %52 : vector<32x32xi32>
    %c-8_i32_17 = arith.constant -8 : i32
    %54 = vector.broadcast %c-8_i32_17 : i32 to vector<32x32xi32>
    %55 = arith.andi %51, %54 : vector<32x32xi32>
    %56 = arith.cmpi eq, %53, %55 : vector<32x32xi32>
    %cst_18 = arith.constant 0.000000e+00 : f32
    %cst_19 = arith.constant -1.000000e+09 : f32
    %57 = vector.broadcast %cst_18 : f32 to vector<32x32xf32>
    %58 = vector.broadcast %cst_19 : f32 to vector<32x32xf32>
    %59 = arith.select %56, %57, %58 : vector<32x32xi1>, vector<32x32xf32>
    %c0_20 = arith.constant 0 : index
    %c0_21 = arith.constant 0 : index
    %c0_22 = arith.constant 0 : index
    %60 = vector.load %arg3[%c0_20, %c0_21, %c0_22] : memref<1x1x32xf32, #tpu.memory_space<vmem>>, vector<1x1x32xf32>
    %61 = vector.shape_cast %60 : vector<1x1x32xf32> to vector<1x32xf32>
    %cst_23 = arith.constant 1.000000e+00 : f32
    %62 = vector.broadcast %cst_23 : f32 to vector<1x32xf32>
    %63 = arith.subf %62, %61 : vector<1x32xf32>
    %cst_24 = arith.constant -1.000000e+09 : f32
    %64 = vector.broadcast %cst_24 : f32 to vector<1x32xf32>
    %65 = arith.mulf %63, %64 : vector<1x32xf32>
    %66 = vector.broadcast %65 : vector<1x32xf32> to vector<32x32xf32>
    %67 = arith.addf %59, %66 : vector<32x32xf32>
    %c0_25 = arith.constant 0 : index
    %c0_26 = arith.constant 0 : index
    %c0_27 = arith.constant 0 : index
    %68 = vector.load %arg6[%c0_25, %c0_26, %c0_27] : memref<2x1x32xf32, #tpu.memory_space<vmem>>, vector<1x1x32xf32>
    %69 = vector.shape_cast %68 : vector<1x1x32xf32> to vector<1x32xf32>
    %c0_28 = arith.constant 0 : index
    %c0_29 = arith.constant 0 : index
    %c0_30 = arith.constant 0 : index
    %70 = vector.load %arg7[%c0_28, %c0_29, %c0_30] : memref<2x1x32xf32, #tpu.memory_space<vmem>>, vector<1x1x32xf32>
    %71 = vector.shape_cast %70 : vector<1x1x32xf32> to vector<1x32xf32>
    %cst_31 = arith.constant dense<0.000000e+00> : vector<32xf32>
    %72 = vector.multi_reduction <add>, %49, %cst_31 [1] : vector<32x32xf32> to vector<32xf32>
    %73 = vector.shape_cast %72 : vector<32xf32> to vector<32x1xf32>
    %cst_32 = arith.constant 3.200000e+01 : f32
    %74 = vector.broadcast %cst_32 : f32 to vector<32x1xf32>
    %75 = arith.divf %73, %74 : vector<32x1xf32>
    %76 = vector.broadcast %75 : vector<32x1xf32> to vector<32x32xf32>
    %77 = arith.subf %49, %76 : vector<32x32xf32>
    %78 = arith.mulf %77, %77 : vector<32x32xf32>
    %cst_33 = arith.constant dense<0.000000e+00> : vector<32xf32>
    %79 = vector.multi_reduction <add>, %78, %cst_33 [1] : vector<32x32xf32> to vector<32xf32>
    %80 = vector.shape_cast %79 : vector<32xf32> to vector<32x1xf32>
    %cst_34 = arith.constant 3.200000e+01 : f32
    %81 = vector.broadcast %cst_34 : f32 to vector<32x1xf32>
    %82 = arith.divf %80, %81 : vector<32x1xf32>
    %83 = vector.broadcast %75 : vector<32x1xf32> to vector<32x32xf32>
    %84 = arith.subf %49, %83 : vector<32x32xf32>
    %cst_35 = arith.constant 9.99999974E-6 : f32
    %85 = vector.broadcast %cst_35 : f32 to vector<32x1xf32>
    %86 = arith.addf %82, %85 : vector<32x1xf32>
    %87 = math.rsqrt %86 : vector<32x1xf32>
    %88 = vector.broadcast %87 : vector<32x1xf32> to vector<32x32xf32>
    %89 = arith.mulf %84, %88 : vector<32x32xf32>
    %90 = vector.broadcast %69 : vector<1x32xf32> to vector<32x32xf32>
    %91 = arith.mulf %89, %90 : vector<32x32xf32>
    %92 = vector.broadcast %71 : vector<1x32xf32> to vector<32x32xf32>
    %93 = arith.addf %91, %92 : vector<32x32xf32>
    %c0_36 = arith.constant 0 : index
    %c0_37 = arith.constant 0 : index
    %c0_38 = arith.constant 0 : index
    %94 = vector.load %arg8[%c0_36, %c0_37, %c0_38] : memref<2x32x96xbf16, #tpu.memory_space<vmem>>, vector<1x32x96xbf16>
    %95 = vector.shape_cast %94 : vector<1x32x96xbf16> to vector<32x96xbf16>
    %96 = arith.truncf %93 : vector<32x32xf32> to vector<32x32xbf16>
    %cst_39 = arith.constant dense<0.000000e+00> : vector<32x96xf32>
    %97 = tpu.matmul %96, %95, %cst_39 {dimension_numbers = #tpu.dot_dimension_numbers<[1], [0], [0], [1], [0, 0, 1, 1], [], []>} : vector<32x32xbf16>, vector<32x96xbf16>, vector<32x96xf32> -> vector<32x96xf32>
    %98 = vector.extract_strided_slice %97 {offsets = [0, 0], sizes = [32, 16], strides = [1, 1]} : vector<32x96xf32> to vector<32x16xf32>
    %99 = vector.extract_strided_slice %97 {offsets = [0, 32], sizes = [32, 16], strides = [1, 1]} : vector<32x96xf32> to vector<32x16xf32>
    %100 = vector.extract_strided_slice %97 {offsets = [0, 64], sizes = [32, 16], strides = [1, 1]} : vector<32x96xf32> to vector<32x16xf32>
    %101 = arith.truncf %98 : vector<32x16xf32> to vector<32x16xbf16>
    %102 = arith.truncf %99 : vector<32x16xf32> to vector<32x16xbf16>
    %cst_40 = arith.constant dense<0.000000e+00> : vector<32x32xf32>
    %103 = tpu.matmul %101, %102, %cst_40 {dimension_numbers = #tpu.dot_dimension_numbers<[1], [1], [0], [0], [0, 0, 1, 0], [], []>} : vector<32x16xbf16>, vector<32x16xbf16>, vector<32x32xf32> -> vector<32x32xf32>
    %cst_41 = arith.constant 2.500000e-01 : f32
    %104 = vector.broadcast %cst_41 : f32 to vector<32x32xf32>
    %105 = arith.mulf %103, %104 : vector<32x32xf32>
    %106 = arith.addf %105, %67 : vector<32x32xf32>
    %cst_42 = arith.constant dense<0xFF800000> : vector<32xf32>
    %107 = vector.multi_reduction <maximumf>, %106, %cst_42 [1] : vector<32x32xf32> to vector<32xf32>
    %108 = vector.shape_cast %107 : vector<32xf32> to vector<32x1xf32>
    %109 = vector.broadcast %108 : vector<32x1xf32> to vector<32x32xf32>
    %110 = arith.subf %106, %109 : vector<32x32xf32>
    %111 = math.exp %110 : vector<32x32xf32>
    %cst_43 = arith.constant dense<0.000000e+00> : vector<32xf32>
    %112 = vector.multi_reduction <add>, %111, %cst_43 [1] : vector<32x32xf32> to vector<32xf32>
    %113 = vector.shape_cast %112 : vector<32xf32> to vector<32x1xf32>
    %114 = tpu.reciprocal %113 {approx = true} : vector<32x1xf32> -> vector<32x1xf32>
    %115 = vector.broadcast %114 : vector<32x1xf32> to vector<32x32xf32>
    %116 = arith.mulf %111, %115 : vector<32x32xf32>
    %117 = arith.truncf %116 : vector<32x32xf32> to vector<32x32xbf16>
    %118 = arith.truncf %100 : vector<32x16xf32> to vector<32x16xbf16>
    %cst_44 = arith.constant dense<0.000000e+00> : vector<32x16xf32>
    %119 = tpu.matmul %117, %118, %cst_44 {dimension_numbers = #tpu.dot_dimension_numbers<[1], [0], [0], [1], [0, 0, 1, 1], [], []>} : vector<32x32xbf16>, vector<32x16xbf16>, vector<32x16xf32> -> vector<32x16xf32>
    %120 = vector.extract_strided_slice %97 {offsets = [0, 16], sizes = [32, 16], strides = [1, 1]} : vector<32x96xf32> to vector<32x16xf32>
    %121 = vector.extract_strided_slice %97 {offsets = [0, 48], sizes = [32, 16], strides = [1, 1]} : vector<32x96xf32> to vector<32x16xf32>
    %122 = vector.extract_strided_slice %97 {offsets = [0, 80], sizes = [32, 16], strides = [1, 1]} : vector<32x96xf32> to vector<32x16xf32>
    %123 = arith.truncf %120 : vector<32x16xf32> to vector<32x16xbf16>
    %124 = arith.truncf %121 : vector<32x16xf32> to vector<32x16xbf16>
    %cst_45 = arith.constant dense<0.000000e+00> : vector<32x32xf32>
    %125 = tpu.matmul %123, %124, %cst_45 {dimension_numbers = #tpu.dot_dimension_numbers<[1], [1], [0], [0], [0, 0, 1, 0], [], []>} : vector<32x16xbf16>, vector<32x16xbf16>, vector<32x32xf32> -> vector<32x32xf32>
    %cst_46 = arith.constant 2.500000e-01 : f32
    %126 = vector.broadcast %cst_46 : f32 to vector<32x32xf32>
    %127 = arith.mulf %125, %126 : vector<32x32xf32>
    %128 = arith.addf %127, %67 : vector<32x32xf32>
    %cst_47 = arith.constant dense<0xFF800000> : vector<32xf32>
    %129 = vector.multi_reduction <maximumf>, %128, %cst_47 [1] : vector<32x32xf32> to vector<32xf32>
    %130 = vector.shape_cast %129 : vector<32xf32> to vector<32x1xf32>
    %131 = vector.broadcast %130 : vector<32x1xf32> to vector<32x32xf32>
    %132 = arith.subf %128, %131 : vector<32x32xf32>
    %133 = math.exp %132 : vector<32x32xf32>
    %cst_48 = arith.constant dense<0.000000e+00> : vector<32xf32>
    %134 = vector.multi_reduction <add>, %133, %cst_48 [1] : vector<32x32xf32> to vector<32xf32>
    %135 = vector.shape_cast %134 : vector<32xf32> to vector<32x1xf32>
    %136 = tpu.reciprocal %135 {approx = true} : vector<32x1xf32> -> vector<32x1xf32>
    %137 = vector.broadcast %136 : vector<32x1xf32> to vector<32x32xf32>
    %138 = arith.mulf %133, %137 : vector<32x32xf32>
    %139 = arith.truncf %138 : vector<32x32xf32> to vector<32x32xbf16>
    %140 = arith.truncf %122 : vector<32x16xf32> to vector<32x16xbf16>
    %cst_49 = arith.constant dense<0.000000e+00> : vector<32x16xf32>
    %141 = tpu.matmul %139, %140, %cst_49 {dimension_numbers = #tpu.dot_dimension_numbers<[1], [0], [0], [1], [0, 0, 1, 1], [], []>} : vector<32x32xbf16>, vector<32x16xbf16>, vector<32x16xf32> -> vector<32x16xf32>
    %142 = tpu.concatenate %119, %141 in 1 : vector<32x16xf32>, vector<32x16xf32> -> vector<32x32xf32>
    %c0_50 = arith.constant 0 : index
    %c0_51 = arith.constant 0 : index
    %c0_52 = arith.constant 0 : index
    %143 = vector.load %arg9[%c0_50, %c0_51, %c0_52] : memref<2x32x32xbf16, #tpu.memory_space<vmem>>, vector<1x32x32xbf16>
    %144 = vector.shape_cast %143 : vector<1x32x32xbf16> to vector<32x32xbf16>
    %145 = arith.truncf %142 : vector<32x32xf32> to vector<32x32xbf16>
    %cst_53 = arith.constant dense<0.000000e+00> : vector<32x32xf32>
    %146 = tpu.matmul %145, %144, %cst_53 {dimension_numbers = #tpu.dot_dimension_numbers<[1], [0], [0], [1], [0, 0, 1, 1], [], []>} : vector<32x32xbf16>, vector<32x32xbf16>, vector<32x32xf32> -> vector<32x32xf32>
    %147 = arith.addf %49, %146 : vector<32x32xf32>
    %c0_54 = arith.constant 0 : index
    %c0_55 = arith.constant 0 : index
    %c0_56 = arith.constant 0 : index
    %148 = vector.load %arg10[%c0_54, %c0_55, %c0_56] : memref<2x1x32xf32, #tpu.memory_space<vmem>>, vector<1x1x32xf32>
    %149 = vector.shape_cast %148 : vector<1x1x32xf32> to vector<1x32xf32>
    %150 = vector.broadcast %149 : vector<1x32xf32> to vector<32x32xf32>
    %151 = arith.addf %147, %150 : vector<32x32xf32>
    %c0_57 = arith.constant 0 : index
    %c0_58 = arith.constant 0 : index
    %c0_59 = arith.constant 0 : index
    %152 = vector.load %arg11[%c0_57, %c0_58, %c0_59] : memref<2x1x32xf32, #tpu.memory_space<vmem>>, vector<1x1x32xf32>
    %153 = vector.shape_cast %152 : vector<1x1x32xf32> to vector<1x32xf32>
    %c0_60 = arith.constant 0 : index
    %c0_61 = arith.constant 0 : index
    %c0_62 = arith.constant 0 : index
    %154 = vector.load %arg12[%c0_60, %c0_61, %c0_62] : memref<2x1x32xf32, #tpu.memory_space<vmem>>, vector<1x1x32xf32>
    %155 = vector.shape_cast %154 : vector<1x1x32xf32> to vector<1x32xf32>
    %cst_63 = arith.constant dense<0.000000e+00> : vector<32xf32>
    %156 = vector.multi_reduction <add>, %151, %cst_63 [1] : vector<32x32xf32> to vector<32xf32>
    %157 = vector.shape_cast %156 : vector<32xf32> to vector<32x1xf32>
    %cst_64 = arith.constant 3.200000e+01 : f32
    %158 = vector.broadcast %cst_64 : f32 to vector<32x1xf32>
    %159 = arith.divf %157, %158 : vector<32x1xf32>
    %160 = vector.broadcast %159 : vector<32x1xf32> to vector<32x32xf32>
    %161 = arith.subf %151, %160 : vector<32x32xf32>
    %162 = arith.mulf %161, %161 : vector<32x32xf32>
    %cst_65 = arith.constant dense<0.000000e+00> : vector<32xf32>
    %163 = vector.multi_reduction <add>, %162, %cst_65 [1] : vector<32x32xf32> to vector<32xf32>
    %164 = vector.shape_cast %163 : vector<32xf32> to vector<32x1xf32>
    %cst_66 = arith.constant 3.200000e+01 : f32
    %165 = vector.broadcast %cst_66 : f32 to vector<32x1xf32>
    %166 = arith.divf %164, %165 : vector<32x1xf32>
    %167 = vector.broadcast %159 : vector<32x1xf32> to vector<32x32xf32>
    %168 = arith.subf %151, %167 : vector<32x32xf32>
    %cst_67 = arith.constant 9.99999974E-6 : f32
    %169 = vector.broadcast %cst_67 : f32 to vector<32x1xf32>
    %170 = arith.addf %166, %169 : vector<32x1xf32>
    %171 = math.rsqrt %170 : vector<32x1xf32>
    %172 = vector.broadcast %171 : vector<32x1xf32> to vector<32x32xf32>
    %173 = arith.mulf %168, %172 : vector<32x32xf32>
    %174 = vector.broadcast %153 : vector<1x32xf32> to vector<32x32xf32>
    %175 = arith.mulf %173, %174 : vector<32x32xf32>
    %176 = vector.broadcast %155 : vector<1x32xf32> to vector<32x32xf32>
    %177 = arith.addf %175, %176 : vector<32x32xf32>
    %c0_68 = arith.constant 0 : index
    %c0_69 = arith.constant 0 : index
    %c0_70 = arith.constant 0 : index
    %178 = vector.load %arg13[%c0_68, %c0_69, %c0_70] : memref<2x32x128xbf16, #tpu.memory_space<vmem>>, vector<1x32x128xbf16>
    %179 = vector.shape_cast %178 : vector<1x32x128xbf16> to vector<32x128xbf16>
    %180 = arith.truncf %177 : vector<32x32xf32> to vector<32x32xbf16>
    %cst_71 = arith.constant dense<0.000000e+00> : vector<32x128xf32>
    %181 = tpu.matmul %180, %179, %cst_71 {dimension_numbers = #tpu.dot_dimension_numbers<[1], [0], [0], [1], [0, 0, 1, 1], [], []>} : vector<32x32xbf16>, vector<32x128xbf16>, vector<32x128xf32> -> vector<32x128xf32>
    %c0_72 = arith.constant 0 : index
    %c0_73 = arith.constant 0 : index
    %c0_74 = arith.constant 0 : index
    %182 = vector.load %arg14[%c0_72, %c0_73, %c0_74] : memref<2x1x128xf32, #tpu.memory_space<vmem>>, vector<1x1x128xf32>
    %183 = vector.shape_cast %182 : vector<1x1x128xf32> to vector<1x128xf32>
    %184 = vector.broadcast %183 : vector<1x128xf32> to vector<32x128xf32>
    %185 = arith.addf %181, %184 : vector<32x128xf32>
    %186 = arith.mulf %185, %185 : vector<32x128xf32>
    %187 = arith.mulf %185, %186 : vector<32x128xf32>
    %cst_75 = arith.constant 4.471500e-02 : f32
    %188 = vector.broadcast %cst_75 : f32 to vector<32x128xf32>
    %189 = arith.mulf %188, %187 : vector<32x128xf32>
    %190 = arith.addf %185, %189 : vector<32x128xf32>
    %cst_76 = arith.constant 0.797884583 : f32
    %191 = vector.broadcast %cst_76 : f32 to vector<32x128xf32>
    %192 = arith.mulf %191, %190 : vector<32x128xf32>
    %193 = math.tanh %192 : vector<32x128xf32>
    %cst_77 = arith.constant 1.000000e+00 : f32
    %194 = vector.broadcast %cst_77 : f32 to vector<32x128xf32>
    %195 = arith.addf %194, %193 : vector<32x128xf32>
    %cst_78 = arith.constant 5.000000e-01 : f32
    %196 = vector.broadcast %cst_78 : f32 to vector<32x128xf32>
    %197 = arith.mulf %196, %195 : vector<32x128xf32>
    %198 = arith.mulf %185, %197 : vector<32x128xf32>
    %c0_79 = arith.constant 0 : index
    %c0_80 = arith.constant 0 : index
    %c0_81 = arith.constant 0 : index
    %199 = vector.load %arg15[%c0_79, %c0_80, %c0_81] : memref<2x128x32xbf16, #tpu.memory_space<vmem>>, vector<1x128x32xbf16>
    %200 = vector.shape_cast %199 : vector<1x128x32xbf16> to vector<128x32xbf16>
    %201 = arith.truncf %198 : vector<32x128xf32> to vector<32x128xbf16>
    %cst_82 = arith.constant dense<0.000000e+00> : vector<32x32xf32>
    %202 = tpu.matmul %201, %200, %cst_82 {dimension_numbers = #tpu.dot_dimension_numbers<[1], [0], [0], [1], [0, 0, 1, 1], [], []>} : vector<32x128xbf16>, vector<128x32xbf16>, vector<32x32xf32> -> vector<32x32xf32>
    %203 = arith.addf %151, %202 : vector<32x32xf32>
    %c0_83 = arith.constant 0 : index
    %c0_84 = arith.constant 0 : index
    %c0_85 = arith.constant 0 : index
    %204 = vector.load %arg16[%c0_83, %c0_84, %c0_85] : memref<2x1x32xf32, #tpu.memory_space<vmem>>, vector<1x1x32xf32>
    %205 = vector.shape_cast %204 : vector<1x1x32xf32> to vector<1x32xf32>
    %206 = vector.broadcast %205 : vector<1x32xf32> to vector<32x32xf32>
    %207 = arith.addf %203, %206 : vector<32x32xf32>
    %c1 = arith.constant 1 : index
    %c0_86 = arith.constant 0 : index
    %c0_87 = arith.constant 0 : index
    %208 = vector.load %arg6[%c1, %c0_86, %c0_87] : memref<2x1x32xf32, #tpu.memory_space<vmem>>, vector<1x1x32xf32>
    %209 = vector.shape_cast %208 : vector<1x1x32xf32> to vector<1x32xf32>
    %c1_88 = arith.constant 1 : index
    %c0_89 = arith.constant 0 : index
    %c0_90 = arith.constant 0 : index
    %210 = vector.load %arg7[%c1_88, %c0_89, %c0_90] : memref<2x1x32xf32, #tpu.memory_space<vmem>>, vector<1x1x32xf32>
    %211 = vector.shape_cast %210 : vector<1x1x32xf32> to vector<1x32xf32>
    %cst_91 = arith.constant dense<0.000000e+00> : vector<32xf32>
    %212 = vector.multi_reduction <add>, %207, %cst_91 [1] : vector<32x32xf32> to vector<32xf32>
    %213 = vector.shape_cast %212 : vector<32xf32> to vector<32x1xf32>
    %cst_92 = arith.constant 3.200000e+01 : f32
    %214 = vector.broadcast %cst_92 : f32 to vector<32x1xf32>
    %215 = arith.divf %213, %214 : vector<32x1xf32>
    %216 = vector.broadcast %215 : vector<32x1xf32> to vector<32x32xf32>
    %217 = arith.subf %207, %216 : vector<32x32xf32>
    %218 = arith.mulf %217, %217 : vector<32x32xf32>
    %cst_93 = arith.constant dense<0.000000e+00> : vector<32xf32>
    %219 = vector.multi_reduction <add>, %218, %cst_93 [1] : vector<32x32xf32> to vector<32xf32>
    %220 = vector.shape_cast %219 : vector<32xf32> to vector<32x1xf32>
    %cst_94 = arith.constant 3.200000e+01 : f32
    %221 = vector.broadcast %cst_94 : f32 to vector<32x1xf32>
    %222 = arith.divf %220, %221 : vector<32x1xf32>
    %223 = vector.broadcast %215 : vector<32x1xf32> to vector<32x32xf32>
    %224 = arith.subf %207, %223 : vector<32x32xf32>
    %cst_95 = arith.constant 9.99999974E-6 : f32
    %225 = vector.broadcast %cst_95 : f32 to vector<32x1xf32>
    %226 = arith.addf %222, %225 : vector<32x1xf32>
    %227 = math.rsqrt %226 : vector<32x1xf32>
    %228 = vector.broadcast %227 : vector<32x1xf32> to vector<32x32xf32>
    %229 = arith.mulf %224, %228 : vector<32x32xf32>
    %230 = vector.broadcast %209 : vector<1x32xf32> to vector<32x32xf32>
    %231 = arith.mulf %229, %230 : vector<32x32xf32>
    %232 = vector.broadcast %211 : vector<1x32xf32> to vector<32x32xf32>
    %233 = arith.addf %231, %232 : vector<32x32xf32>
    %c1_96 = arith.constant 1 : index
    %c0_97 = arith.constant 0 : index
    %c0_98 = arith.constant 0 : index
    %234 = vector.load %arg8[%c1_96, %c0_97, %c0_98] : memref<2x32x96xbf16, #tpu.memory_space<vmem>>, vector<1x32x96xbf16>
    %235 = vector.shape_cast %234 : vector<1x32x96xbf16> to vector<32x96xbf16>
    %236 = arith.truncf %233 : vector<32x32xf32> to vector<32x32xbf16>
    %cst_99 = arith.constant dense<0.000000e+00> : vector<32x96xf32>
    %237 = tpu.matmul %236, %235, %cst_99 {dimension_numbers = #tpu.dot_dimension_numbers<[1], [0], [0], [1], [0, 0, 1, 1], [], []>} : vector<32x32xbf16>, vector<32x96xbf16>, vector<32x96xf32> -> vector<32x96xf32>
    %238 = vector.extract_strided_slice %237 {offsets = [0, 0], sizes = [32, 16], strides = [1, 1]} : vector<32x96xf32> to vector<32x16xf32>
    %239 = vector.extract_strided_slice %237 {offsets = [0, 32], sizes = [32, 16], strides = [1, 1]} : vector<32x96xf32> to vector<32x16xf32>
    %240 = vector.extract_strided_slice %237 {offsets = [0, 64], sizes = [32, 16], strides = [1, 1]} : vector<32x96xf32> to vector<32x16xf32>
    %241 = arith.truncf %238 : vector<32x16xf32> to vector<32x16xbf16>
    %242 = arith.truncf %239 : vector<32x16xf32> to vector<32x16xbf16>
    %cst_100 = arith.constant dense<0.000000e+00> : vector<32x32xf32>
    %243 = tpu.matmul %241, %242, %cst_100 {dimension_numbers = #tpu.dot_dimension_numbers<[1], [1], [0], [0], [0, 0, 1, 0], [], []>} : vector<32x16xbf16>, vector<32x16xbf16>, vector<32x32xf32> -> vector<32x32xf32>
    %cst_101 = arith.constant 2.500000e-01 : f32
    %244 = vector.broadcast %cst_101 : f32 to vector<32x32xf32>
    %245 = arith.mulf %243, %244 : vector<32x32xf32>
    %246 = arith.addf %245, %67 : vector<32x32xf32>
    %cst_102 = arith.constant dense<0xFF800000> : vector<32xf32>
    %247 = vector.multi_reduction <maximumf>, %246, %cst_102 [1] : vector<32x32xf32> to vector<32xf32>
    %248 = vector.shape_cast %247 : vector<32xf32> to vector<32x1xf32>
    %249 = vector.broadcast %248 : vector<32x1xf32> to vector<32x32xf32>
    %250 = arith.subf %246, %249 : vector<32x32xf32>
    %251 = math.exp %250 : vector<32x32xf32>
    %cst_103 = arith.constant dense<0.000000e+00> : vector<32xf32>
    %252 = vector.multi_reduction <add>, %251, %cst_103 [1] : vector<32x32xf32> to vector<32xf32>
    %253 = vector.shape_cast %252 : vector<32xf32> to vector<32x1xf32>
    %254 = tpu.reciprocal %253 {approx = true} : vector<32x1xf32> -> vector<32x1xf32>
    %255 = vector.broadcast %254 : vector<32x1xf32> to vector<32x32xf32>
    %256 = arith.mulf %251, %255 : vector<32x32xf32>
    %257 = arith.truncf %256 : vector<32x32xf32> to vector<32x32xbf16>
    %258 = arith.truncf %240 : vector<32x16xf32> to vector<32x16xbf16>
    %cst_104 = arith.constant dense<0.000000e+00> : vector<32x16xf32>
    %259 = tpu.matmul %257, %258, %cst_104 {dimension_numbers = #tpu.dot_dimension_numbers<[1], [0], [0], [1], [0, 0, 1, 1], [], []>} : vector<32x32xbf16>, vector<32x16xbf16>, vector<32x16xf32> -> vector<32x16xf32>
    %260 = vector.extract_strided_slice %237 {offsets = [0, 16], sizes = [32, 16], strides = [1, 1]} : vector<32x96xf32> to vector<32x16xf32>
    %261 = vector.extract_strided_slice %237 {offsets = [0, 48], sizes = [32, 16], strides = [1, 1]} : vector<32x96xf32> to vector<32x16xf32>
    %262 = vector.extract_strided_slice %237 {offsets = [0, 80], sizes = [32, 16], strides = [1, 1]} : vector<32x96xf32> to vector<32x16xf32>
    %263 = arith.truncf %260 : vector<32x16xf32> to vector<32x16xbf16>
    %264 = arith.truncf %261 : vector<32x16xf32> to vector<32x16xbf16>
    %cst_105 = arith.constant dense<0.000000e+00> : vector<32x32xf32>
    %265 = tpu.matmul %263, %264, %cst_105 {dimension_numbers = #tpu.dot_dimension_numbers<[1], [1], [0], [0], [0, 0, 1, 0], [], []>} : vector<32x16xbf16>, vector<32x16xbf16>, vector<32x32xf32> -> vector<32x32xf32>
    %cst_106 = arith.constant 2.500000e-01 : f32
    %266 = vector.broadcast %cst_106 : f32 to vector<32x32xf32>
    %267 = arith.mulf %265, %266 : vector<32x32xf32>
    %268 = arith.addf %267, %67 : vector<32x32xf32>
    %cst_107 = arith.constant dense<0xFF800000> : vector<32xf32>
    %269 = vector.multi_reduction <maximumf>, %268, %cst_107 [1] : vector<32x32xf32> to vector<32xf32>
    %270 = vector.shape_cast %269 : vector<32xf32> to vector<32x1xf32>
    %271 = vector.broadcast %270 : vector<32x1xf32> to vector<32x32xf32>
    %272 = arith.subf %268, %271 : vector<32x32xf32>
    %273 = math.exp %272 : vector<32x32xf32>
    %cst_108 = arith.constant dense<0.000000e+00> : vector<32xf32>
    %274 = vector.multi_reduction <add>, %273, %cst_108 [1] : vector<32x32xf32> to vector<32xf32>
    %275 = vector.shape_cast %274 : vector<32xf32> to vector<32x1xf32>
    %276 = tpu.reciprocal %275 {approx = true} : vector<32x1xf32> -> vector<32x1xf32>
    %277 = vector.broadcast %276 : vector<32x1xf32> to vector<32x32xf32>
    %278 = arith.mulf %273, %277 : vector<32x32xf32>
    %279 = arith.truncf %278 : vector<32x32xf32> to vector<32x32xbf16>
    %280 = arith.truncf %262 : vector<32x16xf32> to vector<32x16xbf16>
    %cst_109 = arith.constant dense<0.000000e+00> : vector<32x16xf32>
    %281 = tpu.matmul %279, %280, %cst_109 {dimension_numbers = #tpu.dot_dimension_numbers<[1], [0], [0], [1], [0, 0, 1, 1], [], []>} : vector<32x32xbf16>, vector<32x16xbf16>, vector<32x16xf32> -> vector<32x16xf32>
    %282 = tpu.concatenate %259, %281 in 1 : vector<32x16xf32>, vector<32x16xf32> -> vector<32x32xf32>
    %c1_110 = arith.constant 1 : index
    %c0_111 = arith.constant 0 : index
    %c0_112 = arith.constant 0 : index
    %283 = vector.load %arg9[%c1_110, %c0_111, %c0_112] : memref<2x32x32xbf16, #tpu.memory_space<vmem>>, vector<1x32x32xbf16>
    %284 = vector.shape_cast %283 : vector<1x32x32xbf16> to vector<32x32xbf16>
    %285 = arith.truncf %282 : vector<32x32xf32> to vector<32x32xbf16>
    %cst_113 = arith.constant dense<0.000000e+00> : vector<32x32xf32>
    %286 = tpu.matmul %285, %284, %cst_113 {dimension_numbers = #tpu.dot_dimension_numbers<[1], [0], [0], [1], [0, 0, 1, 1], [], []>} : vector<32x32xbf16>, vector<32x32xbf16>, vector<32x32xf32> -> vector<32x32xf32>
    %287 = arith.addf %207, %286 : vector<32x32xf32>
    %c1_114 = arith.constant 1 : index
    %c0_115 = arith.constant 0 : index
    %c0_116 = arith.constant 0 : index
    %288 = vector.load %arg10[%c1_114, %c0_115, %c0_116] : memref<2x1x32xf32, #tpu.memory_space<vmem>>, vector<1x1x32xf32>
    %289 = vector.shape_cast %288 : vector<1x1x32xf32> to vector<1x32xf32>
    %290 = vector.broadcast %289 : vector<1x32xf32> to vector<32x32xf32>
    %291 = arith.addf %287, %290 : vector<32x32xf32>
    %c1_117 = arith.constant 1 : index
    %c0_118 = arith.constant 0 : index
    %c0_119 = arith.constant 0 : index
    %292 = vector.load %arg11[%c1_117, %c0_118, %c0_119] : memref<2x1x32xf32, #tpu.memory_space<vmem>>, vector<1x1x32xf32>
    %293 = vector.shape_cast %292 : vector<1x1x32xf32> to vector<1x32xf32>
    %c1_120 = arith.constant 1 : index
    %c0_121 = arith.constant 0 : index
    %c0_122 = arith.constant 0 : index
    %294 = vector.load %arg12[%c1_120, %c0_121, %c0_122] : memref<2x1x32xf32, #tpu.memory_space<vmem>>, vector<1x1x32xf32>
    %295 = vector.shape_cast %294 : vector<1x1x32xf32> to vector<1x32xf32>
    %cst_123 = arith.constant dense<0.000000e+00> : vector<32xf32>
    %296 = vector.multi_reduction <add>, %291, %cst_123 [1] : vector<32x32xf32> to vector<32xf32>
    %297 = vector.shape_cast %296 : vector<32xf32> to vector<32x1xf32>
    %cst_124 = arith.constant 3.200000e+01 : f32
    %298 = vector.broadcast %cst_124 : f32 to vector<32x1xf32>
    %299 = arith.divf %297, %298 : vector<32x1xf32>
    %300 = vector.broadcast %299 : vector<32x1xf32> to vector<32x32xf32>
    %301 = arith.subf %291, %300 : vector<32x32xf32>
    %302 = arith.mulf %301, %301 : vector<32x32xf32>
    %cst_125 = arith.constant dense<0.000000e+00> : vector<32xf32>
    %303 = vector.multi_reduction <add>, %302, %cst_125 [1] : vector<32x32xf32> to vector<32xf32>
    %304 = vector.shape_cast %303 : vector<32xf32> to vector<32x1xf32>
    %cst_126 = arith.constant 3.200000e+01 : f32
    %305 = vector.broadcast %cst_126 : f32 to vector<32x1xf32>
    %306 = arith.divf %304, %305 : vector<32x1xf32>
    %307 = vector.broadcast %299 : vector<32x1xf32> to vector<32x32xf32>
    %308 = arith.subf %291, %307 : vector<32x32xf32>
    %cst_127 = arith.constant 9.99999974E-6 : f32
    %309 = vector.broadcast %cst_127 : f32 to vector<32x1xf32>
    %310 = arith.addf %306, %309 : vector<32x1xf32>
    %311 = math.rsqrt %310 : vector<32x1xf32>
    %312 = vector.broadcast %311 : vector<32x1xf32> to vector<32x32xf32>
    %313 = arith.mulf %308, %312 : vector<32x32xf32>
    %314 = vector.broadcast %293 : vector<1x32xf32> to vector<32x32xf32>
    %315 = arith.mulf %313, %314 : vector<32x32xf32>
    %316 = vector.broadcast %295 : vector<1x32xf32> to vector<32x32xf32>
    %317 = arith.addf %315, %316 : vector<32x32xf32>
    %c1_128 = arith.constant 1 : index
    %c0_129 = arith.constant 0 : index
    %c0_130 = arith.constant 0 : index
    %318 = vector.load %arg13[%c1_128, %c0_129, %c0_130] : memref<2x32x128xbf16, #tpu.memory_space<vmem>>, vector<1x32x128xbf16>
    %319 = vector.shape_cast %318 : vector<1x32x128xbf16> to vector<32x128xbf16>
    %320 = arith.truncf %317 : vector<32x32xf32> to vector<32x32xbf16>
    %cst_131 = arith.constant dense<0.000000e+00> : vector<32x128xf32>
    %321 = tpu.matmul %320, %319, %cst_131 {dimension_numbers = #tpu.dot_dimension_numbers<[1], [0], [0], [1], [0, 0, 1, 1], [], []>} : vector<32x32xbf16>, vector<32x128xbf16>, vector<32x128xf32> -> vector<32x128xf32>
    %c1_132 = arith.constant 1 : index
    %c0_133 = arith.constant 0 : index
    %c0_134 = arith.constant 0 : index
    %322 = vector.load %arg14[%c1_132, %c0_133, %c0_134] : memref<2x1x128xf32, #tpu.memory_space<vmem>>, vector<1x1x128xf32>
    %323 = vector.shape_cast %322 : vector<1x1x128xf32> to vector<1x128xf32>
    %324 = vector.broadcast %323 : vector<1x128xf32> to vector<32x128xf32>
    %325 = arith.addf %321, %324 : vector<32x128xf32>
    %326 = arith.mulf %325, %325 : vector<32x128xf32>
    %327 = arith.mulf %325, %326 : vector<32x128xf32>
    %cst_135 = arith.constant 4.471500e-02 : f32
    %328 = vector.broadcast %cst_135 : f32 to vector<32x128xf32>
    %329 = arith.mulf %328, %327 : vector<32x128xf32>
    %330 = arith.addf %325, %329 : vector<32x128xf32>
    %cst_136 = arith.constant 0.797884583 : f32
    %331 = vector.broadcast %cst_136 : f32 to vector<32x128xf32>
    %332 = arith.mulf %331, %330 : vector<32x128xf32>
    %333 = math.tanh %332 : vector<32x128xf32>
    %cst_137 = arith.constant 1.000000e+00 : f32
    %334 = vector.broadcast %cst_137 : f32 to vector<32x128xf32>
    %335 = arith.addf %334, %333 : vector<32x128xf32>
    %cst_138 = arith.constant 5.000000e-01 : f32
    %336 = vector.broadcast %cst_138 : f32 to vector<32x128xf32>
    %337 = arith.mulf %336, %335 : vector<32x128xf32>
    %338 = arith.mulf %325, %337 : vector<32x128xf32>
    %c1_139 = arith.constant 1 : index
    %c0_140 = arith.constant 0 : index
    %c0_141 = arith.constant 0 : index
    %339 = vector.load %arg15[%c1_139, %c0_140, %c0_141] : memref<2x128x32xbf16, #tpu.memory_space<vmem>>, vector<1x128x32xbf16>
    %340 = vector.shape_cast %339 : vector<1x128x32xbf16> to vector<128x32xbf16>
    %341 = arith.truncf %338 : vector<32x128xf32> to vector<32x128xbf16>
    %cst_142 = arith.constant dense<0.000000e+00> : vector<32x32xf32>
    %342 = tpu.matmul %341, %340, %cst_142 {dimension_numbers = #tpu.dot_dimension_numbers<[1], [0], [0], [1], [0, 0, 1, 1], [], []>} : vector<32x128xbf16>, vector<128x32xbf16>, vector<32x32xf32> -> vector<32x32xf32>
    %343 = arith.addf %291, %342 : vector<32x32xf32>
    %c1_143 = arith.constant 1 : index
    %c0_144 = arith.constant 0 : index
    %c0_145 = arith.constant 0 : index
    %344 = vector.load %arg16[%c1_143, %c0_144, %c0_145] : memref<2x1x32xf32, #tpu.memory_space<vmem>>, vector<1x1x32xf32>
    %345 = vector.shape_cast %344 : vector<1x1x32xf32> to vector<1x32xf32>
    %346 = vector.broadcast %345 : vector<1x32xf32> to vector<32x32xf32>
    %347 = arith.addf %343, %346 : vector<32x32xf32>
    %348 = tpu.iota {dimensions = array<i32: 0>} : vector<4x32xi32>
    %349 = tpu.iota {dimensions = array<i32: 1>} : vector<4x32xi32>
    %c8_i32 = arith.constant 8 : i32
    %350 = vector.broadcast %c8_i32 : i32 to vector<4x32xi32>
    %351 = arith.muli %348, %350 : vector<4x32xi32>
    %352 = arith.cmpi eq, %349, %351 : vector<4x32xi32>
    %353 = arith.extui %352 : vector<4x32xi1> to vector<4x32xi32>
    %354 = arith.sitofp %353 : vector<4x32xi32> to vector<4x32xf32>
    %cst_146 = arith.constant dense<0.000000e+00> : vector<4x32xf32>
    %355 = tpu.matmul %354, %347, %cst_146 {dimension_numbers = #tpu.dot_dimension_numbers<[1], [0], [0], [1], [0, 0, 1, 1], [], []>} : vector<4x32xf32>, vector<32x32xf32>, vector<4x32xf32> -> vector<4x32xf32>
    %c0_147 = arith.constant 0 : index
    %c0_148 = arith.constant 0 : index
    %356 = vector.load %arg17[%c0_147, %c0_148] : memref<32x32xbf16, #tpu.memory_space<vmem>>, vector<32x32xbf16>
    %357 = arith.truncf %355 : vector<4x32xf32> to vector<4x32xbf16>
    %cst_149 = arith.constant dense<0.000000e+00> : vector<4x32xf32>
    %358 = tpu.matmul %357, %356, %cst_149 {dimension_numbers = #tpu.dot_dimension_numbers<[1], [0], [0], [1], [0, 0, 1, 1], [], []>} : vector<4x32xbf16>, vector<32x32xbf16>, vector<4x32xf32> -> vector<4x32xf32>
    %c0_150 = arith.constant 0 : index
    %c0_151 = arith.constant 0 : index
    %359 = vector.load %arg18[%c0_150, %c0_151] : memref<1x32xf32, #tpu.memory_space<vmem>>, vector<1x32xf32>
    %360 = vector.broadcast %359 : vector<1x32xf32> to vector<4x32xf32>
    %361 = arith.addf %358, %360 : vector<4x32xf32>
    %cst_152 = arith.constant 0.000000e+00 : f32
    %362 = vector.broadcast %cst_152 : f32 to vector<4x32xf32>
    %363 = arith.maximumf %361, %362 : vector<4x32xf32>
    %c0_153 = arith.constant 0 : index
    %c0_154 = arith.constant 0 : index
    %364 = vector.load %arg19[%c0_153, %c0_154] : memref<32x256xbf16, #tpu.memory_space<vmem>>, vector<32x256xbf16>
    %365 = arith.truncf %363 : vector<4x32xf32> to vector<4x32xbf16>
    %cst_155 = arith.constant dense<0.000000e+00> : vector<4x256xf32>
    %366 = tpu.matmul %365, %364, %cst_155 {dimension_numbers = #tpu.dot_dimension_numbers<[1], [0], [0], [1], [0, 0, 1, 1], [], []>} : vector<4x32xbf16>, vector<32x256xbf16>, vector<4x256xf32> -> vector<4x256xf32>
    %c0_156 = arith.constant 0 : index
    %c0_157 = arith.constant 0 : index
    %367 = vector.load %arg20[%c0_156, %c0_157] : memref<1x256xf32, #tpu.memory_space<vmem>>, vector<1x256xf32>
    %368 = vector.broadcast %367 : vector<1x256xf32> to vector<4x256xf32>
    %369 = arith.addf %366, %368 : vector<4x256xf32>
    %370 = arith.mulf %369, %369 : vector<4x256xf32>
    %cst_158 = arith.constant dense<0.000000e+00> : vector<4xf32>
    %371 = vector.multi_reduction <add>, %370, %cst_158 [1] : vector<4x256xf32> to vector<4xf32>
    %372 = vector.shape_cast %371 : vector<4xf32> to vector<4x1xf32>
    %cst_159 = arith.constant 1.000000e-24 : f32
    %373 = vector.broadcast %cst_159 : f32 to vector<4x1xf32>
    %374 = arith.maximumf %372, %373 : vector<4x1xf32>
    %375 = math.rsqrt %374 : vector<4x1xf32>
    %376 = vector.broadcast %375 : vector<4x1xf32> to vector<4x256xf32>
    %377 = arith.mulf %369, %376 : vector<4x256xf32>
    %c0_160 = arith.constant 0 : index
    %c0_161 = arith.constant 0 : index
    %c0_162 = arith.constant 0 : index
    %378 = vector.load %arg21[%c0_160, %c0_161, %c0_162] : memref<1x4x256xf32, #tpu.memory_space<vmem>>, vector<1x4x256xf32>
    %379 = vector.shape_cast %378 : vector<1x4x256xf32> to vector<4x256xf32>
    %380 = vector.shape_cast %377 : vector<4x256xf32> to vector<1x4x256xf32>
    tpu.vector_store %arg21[%c0_160, %c0_161, %c0_162], %380 {strides = array<i32>} : memref<1x4x256xf32, #tpu.memory_space<vmem>>, vector<1x4x256xf32>,
    return
  }
  func.func @transform_0(%arg0: i32) -> (i32, i32, i32) {
    %c0_i32 = arith.constant 0 : i32
    %c0_i32_0 = arith.constant 0 : i32
    %c0_i32_1 = arith.constant 0 : i32
    return %arg0, %c0_i32, %c0_i32_0 : i32, i32, i32
  }
  func.func @transform_1(%arg0: i32) -> (i32, i32, i32) {
    %c0_i32 = arith.constant 0 : i32
    %c0_i32_0 = arith.constant 0 : i32
    %c0_i32_1 = arith.constant 0 : i32
    return %arg0, %c0_i32, %c0_i32_0 : i32, i32, i32
  }
  func.func @transform_2(%arg0: i32) -> (i32, i32, i32) {
    %c0_i32 = arith.constant 0 : i32
    %c0_i32_0 = arith.constant 0 : i32
    %c0_i32_1 = arith.constant 0 : i32
    return %arg0, %c0_i32, %c0_i32_0 : i32, i32, i32
  }
  func.func @transform_3(%arg0: i32) -> (i32, i32) {
    %c0_i32 = arith.constant 0 : i32
    %c0_i32_0 = arith.constant 0 : i32
    %c0_i32_1 = arith.constant 0 : i32
    return %c0_i32, %c0_i32_0 : i32, i32
  }
  func.func @transform_4(%arg0: i32) -> (i32, i32) {
    %c0_i32 = arith.constant 0 : i32
    %c0_i32_0 = arith.constant 0 : i32
    %c0_i32_1 = arith.constant 0 : i32
    return %c0_i32, %c0_i32_0 : i32, i32
  }
  func.func @transform_5(%arg0: i32) -> (i32, i32, i32) {
    %c0_i32 = arith.constant 0 : i32
    %c0_i32_0 = arith.constant 0 : i32
    %c0_i32_1 = arith.constant 0 : i32
    %c0_i32_2 = arith.constant 0 : i32
    return %c0_i32, %c0_i32_0, %c0_i32_1 : i32, i32, i32
  }
  func.func @transform_6(%arg0: i32) -> (i32, i32, i32) {
    %c0_i32 = arith.constant 0 : i32
    %c0_i32_0 = arith.constant 0 : i32
    %c0_i32_1 = arith.constant 0 : i32
    %c0_i32_2 = arith.constant 0 : i32
    return %c0_i32, %c0_i32_0, %c0_i32_1 : i32, i32, i32
  }
  func.func @transform_7(%arg0: i32) -> (i32, i32, i32) {
    %c0_i32 = arith.constant 0 : i32
    %c0_i32_0 = arith.constant 0 : i32
    %c0_i32_1 = arith.constant 0 : i32
    %c0_i32_2 = arith.constant 0 : i32
    return %c0_i32, %c0_i32_0, %c0_i32_1 : i32, i32, i32
  }
  func.func @transform_8(%arg0: i32) -> (i32, i32, i32) {
    %c0_i32 = arith.constant 0 : i32
    %c0_i32_0 = arith.constant 0 : i32
    %c0_i32_1 = arith.constant 0 : i32
    %c0_i32_2 = arith.constant 0 : i32
    return %c0_i32, %c0_i32_0, %c0_i32_1 : i32, i32, i32
  }
  func.func @transform_9(%arg0: i32) -> (i32, i32, i32) {
    %c0_i32 = arith.constant 0 : i32
    %c0_i32_0 = arith.constant 0 : i32
    %c0_i32_1 = arith.constant 0 : i32
    %c0_i32_2 = arith.constant 0 : i32
    return %c0_i32, %c0_i32_0, %c0_i32_1 : i32, i32, i32
  }
  func.func @transform_10(%arg0: i32) -> (i32, i32, i32) {
    %c0_i32 = arith.constant 0 : i32
    %c0_i32_0 = arith.constant 0 : i32
    %c0_i32_1 = arith.constant 0 : i32
    %c0_i32_2 = arith.constant 0 : i32
    return %c0_i32, %c0_i32_0, %c0_i32_1 : i32, i32, i32
  }
  func.func @transform_11(%arg0: i32) -> (i32, i32, i32) {
    %c0_i32 = arith.constant 0 : i32
    %c0_i32_0 = arith.constant 0 : i32
    %c0_i32_1 = arith.constant 0 : i32
    %c0_i32_2 = arith.constant 0 : i32
    return %c0_i32, %c0_i32_0, %c0_i32_1 : i32, i32, i32
  }
  func.func @transform_12(%arg0: i32) -> (i32, i32, i32) {
    %c0_i32 = arith.constant 0 : i32
    %c0_i32_0 = arith.constant 0 : i32
    %c0_i32_1 = arith.constant 0 : i32
    %c0_i32_2 = arith.constant 0 : i32
    return %c0_i32, %c0_i32_0, %c0_i32_1 : i32, i32, i32
  }
  func.func @transform_13(%arg0: i32) -> (i32, i32, i32) {
    %c0_i32 = arith.constant 0 : i32
    %c0_i32_0 = arith.constant 0 : i32
    %c0_i32_1 = arith.constant 0 : i32
    %c0_i32_2 = arith.constant 0 : i32
    return %c0_i32, %c0_i32_0, %c0_i32_1 : i32, i32, i32
  }
  func.func @transform_14(%arg0: i32) -> (i32, i32, i32) {
    %c0_i32 = arith.constant 0 : i32
    %c0_i32_0 = arith.constant 0 : i32
    %c0_i32_1 = arith.constant 0 : i32
    %c0_i32_2 = arith.constant 0 : i32
    return %c0_i32, %c0_i32_0, %c0_i32_1 : i32, i32, i32
  }
  func.func @transform_15(%arg0: i32) -> (i32, i32, i32) {
    %c0_i32 = arith.constant 0 : i32
    %c0_i32_0 = arith.constant 0 : i32
    %c0_i32_1 = arith.constant 0 : i32
    %c0_i32_2 = arith.constant 0 : i32
    return %c0_i32, %c0_i32_0, %c0_i32_1 : i32, i32, i32
  }
  func.func @transform_16(%arg0: i32) -> (i32, i32) {
    %c0_i32 = arith.constant 0 : i32
    %c0_i32_0 = arith.constant 0 : i32
    %c0_i32_1 = arith.constant 0 : i32
    return %c0_i32, %c0_i32_0 : i32, i32
  }
  func.func @transform_17(%arg0: i32) -> (i32, i32) {
    %c0_i32 = arith.constant 0 : i32
    %c0_i32_0 = arith.constant 0 : i32
    %c0_i32_1 = arith.constant 0 : i32
    return %c0_i32, %c0_i32_0 : i32, i32
  }
  func.func @transform_18(%arg0: i32) -> (i32, i32) {
    %c0_i32 = arith.constant 0 : i32
    %c0_i32_0 = arith.constant 0 : i32
    %c0_i32_1 = arith.constant 0 : i32
    return %c0_i32, %c0_i32_0 : i32, i32
  }
  func.func @transform_19(%arg0: i32) -> (i32, i32) {
    %c0_i32 = arith.constant 0 : i32
    %c0_i32_0 = arith.constant 0 : i32
    %c0_i32_1 = arith.constant 0 : i32
    return %c0_i32, %c0_i32_0 : i32, i32
  }
  func.func @transform_20(%arg0: i32) -> (i32, i32, i32) {
    %c0_i32 = arith.constant 0 : i32
    %c0_i32_0 = arith.constant 0 : i32
    %c0_i32_1 = arith.constant 0 : i32
    return %arg0, %c0_i32, %c0_i32_0 : i32, i32, i32
  }
}

</mosaic_0001>

<llo_original>
// kernel: table_encoder_forward.1
$region0: #{table_encoder_forward.1}
  #allocation0 [shape = 'u32[]', space=smem, size = 0x4, offset = 0x4, fixed_abs, tag = 'smem constant byte address 0x4 - core index']
  #allocation1 [shape = 'u32[72,128]{1,0:T(1,128)}', space=vmem, size = 0x9000, scoped, tag = 'internal scratch']
  %s0 = inlined_call_operand.vmem [shape: s32[2,192,1], index: 0, kind: input, shape index: {}]
  %s1 = inlined_call_operand.vmem [shape: f32[2,1,192], index: 1, kind: input, shape index: {}]
  %s2 = inlined_call_operand.vmem [shape: f32[2,1,32], index: 2, kind: input, shape index: {}]
  %s3 = inlined_call_operand.vmem [shape: f32[97,32], index: 3, kind: input, shape index: {}]
  %s4 = inlined_call_operand.vmem [shape: f32[1,32], index: 4, kind: input, shape index: {}]
  %s5 = inlined_call_operand.vmem [shape: f32[2,1,32], index: 5, kind: input, shape index: {}]
  %s6 = inlined_call_operand.vmem [shape: f32[2,1,32], index: 6, kind: input, shape index: {}]
  %s7 = inlined_call_operand.vmem [shape: bf16[2,32,96], index: 7, kind: input, shape index: {}]
  %s8 = inlined_call_operand.vmem [shape: bf16[2,32,32], index: 8, kind: input, shape index: {}]
  %s9 = inlined_call_operand.vmem [shape: f32[2,1,32], index: 9, kind: input, shape index: {}]
  %s10 = inlined_call_operand.vmem [shape: f32[2,1,32], index: 10, kind: input, shape index: {}]
  %s11 = inlined_call_operand.vmem [shape: f32[2,1,32], index: 11, kind: input, shape index: {}]
  %s12 = inlined_call_operand.vmem [shape: bf16[2,32,128], index: 12, kind: input, shape index: {}]
  %s13 = inlined_call_operand.vmem [shape: f32[2,1,128], index: 13, kind: input, shape index: {}]
  %s14 = inlined_call_operand.vmem [shape: bf16[2,128,32], index: 14, kind: input, shape index: {}]
  %s15 = inlined_call_operand.vmem [shape: f32[2,1,32], index: 15, kind: input, shape index: {}]
  %s16 = inlined_call_operand.vmem [shape: bf16[32,32], index: 16, kind: input, shape index: {}]
  %s17 = inlined_call_operand.vmem [shape: f32[1,32], index: 17, kind: input, shape index: {}]
  %s18 = inlined_call_operand.vmem [shape: bf16[32,256], index: 18, kind: input, shape index: {}]
  %s19 = inlined_call_operand.vmem [shape: f32[1,256], index: 19, kind: input, shape index: {}]
  %s20 = inlined_call_operand.hbm [shape: f32[2,4,256], index: 20, kind: output, shape index: {}]
  %s21 = sld [smem:[#allocation0]]
  $region113: #{table_encoder_forward.1} parent=0
    _
  %s23 = ssub.s32 1, %s21
  %s24 = scalar_select 0, %s23, %s21
  $region1: #{table_encoder_forward.1} parent=0
    #allocation2 [shape = 'u8[8192]{0}', space=vmem, size = 0x2000, scoped, tag = 'output window, operand 0']
    #allocation3 [shape = 's32[2]{0}', space=sflag, size = 0x8, scoped, tag = 'scoped memory for table_encoder_forward.1']
    %25 = vsyncpa [#allocation3], 0
    %s26 = scalar_lea.sflag [#allocation3], 1
    %27 = vsyncpa %s26, 0
    loop: start=0, step=1, limit=4
    $region2: #{table_encoder_forward.1} parent=1 // loop_pre_header
      _
    $region3: #{table_encoder_forward.1} parent=1 // loop_header
      %s29 = sphi 0, %s33
      %p30 = scmp.ge.s32.totalorder %s29, 4
      %s39 = sphi 0, %s41
      %s42 = sphi 0, %s39
      %s43 = sphi 0, %s42
      %s59 = sphi 0, %s43
      %s65 = sphi 0, %s67
      %s68 = sphi 0, %s65
      %s69 = sphi 0, %s68
      %s85 = sphi 0, %s69
      %s91 = sphi 0, %s93
      %s94 = sphi 0, %s91
      %s95 = sphi 0, %s94
      %s111 = sphi 0, %s95
      %s115 = sphi 0, %s115
      %s117 = sphi 0, %s115
      %s118 = sphi 0, %s117
      %s132 = sphi 0, %s118
      %s136 = sphi 0, %s136
      %s138 = sphi 0, %s136
      %s139 = sphi 0, %s138
      %s153 = sphi 0, %s139
      %s157 = sphi 0, %s157
      %s159 = sphi 0, %s157
      %s160 = sphi 0, %s159
      %s174 = sphi 0, %s160
      %s178 = sphi 0, %s178
      %s180 = sphi 0, %s178
      %s181 = sphi 0, %s180
      %s195 = sphi 0, %s181
      %s199 = sphi 0, %s199
      %s201 = sphi 0, %s199
      %s202 = sphi 0, %s201
      %s216 = sphi 0, %s202
      %s220 = sphi 0, %s220
      %s222 = sphi 0, %s220
      %s223 = sphi 0, %s222
      %s237 = sphi 0, %s223
      %s241 = sphi 0, %s241
      %s243 = sphi 0, %s241
      %s244 = sphi 0, %s243
      %s258 = sphi 0, %s244
      %s262 = sphi 0, %s262
      %s264 = sphi 0, %s262
      %s265 = sphi 0, %s264
      %s279 = sphi 0, %s265
      %s283 = sphi 0, %s283
      %s285 = sphi 0, %s283
      %s286 = sphi 0, %s285
      %s300 = sphi 0, %s286
      %s304 = sphi 0, %s304
      %s306 = sphi 0, %s304
      %s307 = sphi 0, %s306
      %s321 = sphi 0, %s307
      %s325 = sphi 0, %s325
      %s327 = sphi 0, %s325
      %s328 = sphi 0, %s327
      %s342 = sphi 0, %s328
      %s346 = sphi 0, %s346
      %s348 = sphi 0, %s346
      %s349 = sphi 0, %s348
      %s363 = sphi 0, %s349
      %s367 = sphi 0, %s367
      %s369 = sphi 0, %s367
      %s370 = sphi 0, %s369
      %s384 = sphi 0, %s370
      %s388 = sphi 0, %s388
      %s390 = sphi 0, %s388
      %s391 = sphi 0, %s390
      %s405 = sphi 0, %s391
      %s409 = sphi 0, %s409
      %s411 = sphi 0, %s409
      %s412 = sphi 0, %s411
      %s426 = sphi 0, %s412
      %s430 = sphi 0, %s430
      %s432 = sphi 0, %s430
      %s433 = sphi 0, %s432
      %s447 = sphi 0, %s433
      %s451 = sphi 0, %s451
      %s453 = sphi 0, %s451
      %s454 = sphi 0, %s453
      %s468 = sphi 0, %s454
      %s474 = sphi 0, %s476
      %s477 = sphi 0, %s474
      %s478 = sphi 0, %s477
      %s494 = sphi 0, %s478
    $region4: #{table_encoder_forward.1} parent=1 // loop_header_branch
      %32 = sbr.rel (%p30) target = $region8
    $region5: #{table_encoder_forward.1} parent=1 // loop_body
      %s34 = ssub.s32 %s29, 1
      %s35 = ssub.s32 %s29, 2
      %s36 = sadd.s32 %s29, 1
      %s37 = ssub.s32 %s29, %s36
      %p38 = scmp.eq.s32.totalorder %s37, 0
      %s40 = sadd.s32 %s39, 1
      %s41 = scalar_select %p38, %s39, %s40
      %p44 = pneg %p38
      %p45 = scmp.eq.s32.totalorder %s29, 1
      %p46 = por %p44, %p45
      %p47 = scmp.ne.s32.totalorder %s39, %s42
      %p48 = scmp.eq.s32.totalorder %s29, 0
      %p49 = por %p47, %p48
      %p50 = scmp.ne.s32.totalorder %s39, %s42
      %p51 = scmp.eq.s32.totalorder %s34, 1
      %p52 = por %p50, %p51
      %p53 = scmp.ne.s32.totalorder %s42, %s43
      %p54 = scmp.eq.s32.totalorder %s34, 0
      %p55 = por %p53, %p54
      %p56 = scmp.ne.s32.totalorder %s42, %s43
      %p57 = scmp.eq.s32.totalorder %s35, 1
      %p58 = por %p56, %p57
      %p60 = scmp.ne.s32.totalorder %s43, %s59
      %p61 = scmp.eq.s32.totalorder %s35, 0
      %p62 = por %p60, %p61
      %s63 = ssub.s32 %s29, %s36
      %p64 = scmp.eq.s32.totalorder %s63, 0
      %s66 = sadd.s32 %s65, 1
      %s67 = scalar_select %p64, %s65, %s66
      %p70 = pneg %p64
      %p71 = scmp.eq.s32.totalorder %s29, 1
      %p72 = por %p70, %p71
      %p73 = scmp.ne.s32.totalorder %s65, %s68
      %p74 = scmp.eq.s32.totalorder %s29, 0
      %p75 = por %p73, %p74
      %p76 = scmp.ne.s32.totalorder %s65, %s68
      %p77 = scmp.eq.s32.totalorder %s34, 1
      %p78 = por %p76, %p77
      %p79 = scmp.ne.s32.totalorder %s68, %s69
      %p80 = scmp.eq.s32.totalorder %s34, 0
      %p81 = por %p79, %p80
      %p82 = scmp.ne.s32.totalorder %s68, %s69
      %p83 = scmp.eq.s32.totalorder %s35, 1
      %p84 = por %p82, %p83
      %p86 = scmp.ne.s32.totalorder %s69, %s85
      %p87 = scmp.eq.s32.totalorder %s35, 0
      %p88 = por %p86, %p87
      %s89 = ssub.s32 %s29, %s36
      %p90 = scmp.eq.s32.totalorder %s89, 0
      %s92 = sadd.s32 %s91, 1
      %s93 = scalar_select %p90, %s91, %s92
      %p96 = pneg %p90
      %p97 = scmp.eq.s32.totalorder %s29, 1
      %p98 = por %p96, %p97
      %p99 = scmp.ne.s32.totalorder %s91, %s94
      %p100 = scmp.eq.s32.totalorder %s29, 0
      %p101 = por %p99, %p100
      %p102 = scmp.ne.s32.totalorder %s91, %s94
      %p103 = scmp.eq.s32.totalorder %s34, 1
      %p104 = por %p102, %p103
      %p105 = scmp.ne.s32.totalorder %s94, %s95
      %p106 = scmp.eq.s32.totalorder %s34, 0
      %p107 = por %p105, %p106
      %p108 = scmp.ne.s32.totalorder %s94, %s95
      %p109 = scmp.eq.s32.totalorder %s35, 1
      %p110 = por %p108, %p109
      %p112 = scmp.ne.s32.totalorder %s95, %s111
      %p113 = scmp.eq.s32.totalorder %s35, 0
      %p114 = por %p112, %p113
      %s116 = sadd.s32 %s115, 1
      %p119 = scmp.eq.s32.totalorder %s29, 1
      %p120 = scmp.ne.s32.totalorder %s115, %s117
      %p121 = scmp.eq.s32.totalorder %s29, 0
      %p122 = por %p120, %p121
      %p123 = scmp.ne.s32.totalorder %s115, %s117
      %p124 = scmp.eq.s32.totalorder %s34, 1
      %p125 = por %p123, %p124
      %p126 = scmp.ne.s32.totalorder %s117, %s118
      %p127 = scmp.eq.s32.totalorder %s34, 0
      %p128 = por %p126, %p127
      %p129 = scmp.ne.s32.totalorder %s117, %s118
      %p130 = scmp.eq.s32.totalorder %s35, 1
      %p131 = por %p129, %p130
      %p133 = scmp.ne.s32.totalorder %s118, %s132
      %p134 = scmp.eq.s32.totalorder %s35, 0
      %p135 = por %p133, %p134
      %s137 = sadd.s32 %s136, 1
      %p140 = scmp.eq.s32.totalorder %s29, 1
      %p141 = scmp.ne.s32.totalorder %s136, %s138
      %p142 = scmp.eq.s32.totalorder %s29, 0
      %p143 = por %p141, %p142
      %p144 = scmp.ne.s32.totalorder %s136, %s138
      %p145 = scmp.eq.s32.totalorder %s34, 1
      %p146 = por %p144, %p145
      %p147 = scmp.ne.s32.totalorder %s138, %s139
      %p148 = scmp.eq.s32.totalorder %s34, 0
      %p149 = por %p147, %p148
      %p150 = scmp.ne.s32.totalorder %s138, %s139
      %p151 = scmp.eq.s32.totalorder %s35, 1
      %p152 = por %p150, %p151
      %p154 = scmp.ne.s32.totalorder %s139, %s153
      %p155 = scmp.eq.s32.totalorder %s35, 0
      %p156 = por %p154, %p155
      %s158 = sadd.s32 %s157, 1
      %p161 = scmp.eq.s32.totalorder %s29, 1
      %p162 = scmp.ne.s32.totalorder %s157, %s159
      %p163 = scmp.eq.s32.totalorder %s29, 0
      %p164 = por %p162, %p163
      %p165 = scmp.ne.s32.totalorder %s157, %s159
      %p166 = scmp.eq.s32.totalorder %s34, 1
      %p167 = por %p165, %p166
      %p168 = scmp.ne.s32.totalorder %s159, %s160
      %p169 = scmp.eq.s32.totalorder %s34, 0
      %p170 = por %p168, %p169
      %p171 = scmp.ne.s32.totalorder %s159, %s160
      %p172 = scmp.eq.s32.totalorder %s35, 1
      %p173 = por %p171, %p172
      %p175 = scmp.ne.s32.totalorder %s160, %s174
      %p176 = scmp.eq.s32.totalorder %s35, 0
      %p177 = por %p175, %p176
      %s179 = sadd.s32 %s178, 1
      %p182 = scmp.eq.s32.totalorder %s29, 1
      %p183 = scmp.ne.s32.totalorder %s178, %s180
      %p184 = scmp.eq.s32.totalorder %s29, 0
      %p185 = por %p183, %p184
      %p186 = scmp.ne.s32.totalorder %s178, %s180
      %p187 = scmp.eq.s32.totalorder %s34, 1
      %p188 = por %p186, %p187
      %p189 = scmp.ne.s32.totalorder %s180, %s181
      %p190 = scmp.eq.s32.totalorder %s34, 0
      %p191 = por %p189, %p190
      %p192 = scmp.ne.s32.totalorder %s180, %s181
      %p193 = scmp.eq.s32.totalorder %s35, 1
      %p194 = por %p192, %p193
      %p196 = scmp.ne.s32.totalorder %s181, %s195
      %p197 = scmp.eq.s32.totalorder %s35, 0
      %p198 = por %p196, %p197
      %s200 = sadd.s32 %s199, 1
      %p203 = scmp.eq.s32.totalorder %s29, 1
      %p204 = scmp.ne.s32.totalorder %s199, %s201
      %p205 = scmp.eq.s32.totalorder %s29, 0
      %p206 = por %p204, %p205
      %p207 = scmp.ne.s32.totalorder %s199, %s201
      %p208 = scmp.eq.s32.totalorder %s34, 1
      %p209 = por %p207, %p208
      %p210 = scmp.ne.s32.totalorder %s201, %s202
      %p211 = scmp.eq.s32.totalorder %s34, 0
      %p212 = por %p210, %p211
      %p213 = scmp.ne.s32.totalorder %s201, %s202
      %p214 = scmp.eq.s32.totalorder %s35, 1
      %p215 = por %p213, %p214
      %p217 = scmp.ne.s32.totalorder %s202, %s216
      %p218 = scmp.eq.s32.totalorder %s35, 0
      %p219 = por %p217, %p218
      %s221 = sadd.s32 %s220, 1
      %p224 = scmp.eq.s32.totalorder %s29, 1
      %p225 = scmp.ne.s32.totalorder %s220, %s222
      %p226 = scmp.eq.s32.totalorder %s29, 0
      %p227 = por %p225, %p226
      %p228 = scmp.ne.s32.totalorder %s220, %s222
      %p229 = scmp.eq.s32.totalorder %s34, 1
      %p230 = por %p228, %p229
      %p231 = scmp.ne.s32.totalorder %s222, %s223
      %p232 = scmp.eq.s32.totalorder %s34, 0
      %p233 = por %p231, %p232
      %p234 = scmp.ne.s32.totalorder %s222, %s223
      %p235 = scmp.eq.s32.totalorder %s35, 1
      %p236 = por %p234, %p235
      %p238 = scmp.ne.s32.totalorder %s223, %s237
      %p239 = scmp.eq.s32.totalorder %s35, 0
      %p240 = por %p238, %p239
      %s242 = sadd.s32 %s241, 1
      %p245 = scmp.eq.s32.totalorder %s29, 1
      %p246 = scmp.ne.s32.totalorder %s241, %s243
      %p247 = scmp.eq.s32.totalorder %s29, 0
      %p248 = por %p246, %p247
      %p249 = scmp.ne.s32.totalorder %s241, %s243
      %p250 = scmp.eq.s32.totalorder %s34, 1
      %p251 = por %p249, %p250
      %p252 = scmp.ne.s32.totalorder %s243, %s244
      %p253 = scmp.eq.s32.totalorder %s34, 0
      %p254 = por %p252, %p253
      %p255 = scmp.ne.s32.totalorder %s243, %s244
      %p256 = scmp.eq.s32.totalorder %s35, 1
      %p257 = por %p255, %p256
      %p259 = scmp.ne.s32.totalorder %s244, %s258
      %p260 = scmp.eq.s32.totalorder %s35, 0
      %p261 = por %p259, %p260
      %s263 = sadd.s32 %s262, 1
      %p266 = scmp.eq.s32.totalorder %s29, 1
      %p267 = scmp.ne.s32.totalorder %s262, %s264
      %p268 = scmp.eq.s32.totalorder %s29, 0
      %p269 = por %p267, %p268
      %p270 = scmp.ne.s32.totalorder %s262, %s264
      %p271 = scmp.eq.s32.totalorder %s34, 1
      %p272 = por %p270, %p271
      %p273 = scmp.ne.s32.totalorder %s264, %s265
      %p274 = scmp.eq.s32.totalorder %s34, 0
      %p275 = por %p273, %p274
      %p276 = scmp.ne.s32.totalorder %s264, %s265
      %p277 = scmp.eq.s32.totalorder %s35, 1
      %p278 = por %p276, %p277
      %p280 = scmp.ne.s32.totalorder %s265, %s279
      %p281 = scmp.eq.s32.totalorder %s35, 0
      %p282 = por %p280, %p281
      %s284 = sadd.s32 %s283, 1
      %p287 = scmp.eq.s32.totalorder %s29, 1
      %p288 = scmp.ne.s32.totalorder %s283, %s285
      %p289 = scmp.eq.s32.totalorder %s29, 0
      %p290 = por %p288, %p289
      %p291 = scmp.ne.s32.totalorder %s283, %s285
      %p292 = scmp.eq.s32.totalorder %s34, 1
      %p293 = por %p291, %p292
      %p294 = scmp.ne.s32.totalorder %s285, %s286
      %p295 = scmp.eq.s32.totalorder %s34, 0
      %p296 = por %p294, %p295
      %p297 = scmp.ne.s32.totalorder %s285, %s286
      %p298 = scmp.eq.s32.totalorder %s35, 1
      %p299 = por %p297, %p298
      %p301 = scmp.ne.s32.totalorder %s286, %s300
      %p302 = scmp.eq.s32.totalorder %s35, 0
      %p303 = por %p301, %p302
      %s305 = sadd.s32 %s304, 1
      %p308 = scmp.eq.s32.totalorder %s29, 1
      %p309 = scmp.ne.s32.totalorder %s304, %s306
      %p310 = scmp.eq.s32.totalorder %s29, 0
      %p311 = por %p309, %p310
      %p312 = scmp.ne.s32.totalorder %s304, %s306
      %p313 = scmp.eq.s32.totalorder %s34, 1
      %p314 = por %p312, %p313
      %p315 = scmp.ne.s32.totalorder %s306, %s307
      %p316 = scmp.eq.s32.totalorder %s34, 0
      %p317 = por %p315, %p316
      %p318 = scmp.ne.s32.totalorder %s306, %s307
      %p319 = scmp.eq.s32.totalorder %s35, 1
      %p320 = por %p318, %p319
      %p322 = scmp.ne.s32.totalorder %s307, %s321
      %p323 = scmp.eq.s32.totalorder %s35, 0
      %p324 = por %p322, %p323
      %s326 = sadd.s32 %s325, 1
      %p329 = scmp.eq.s32.totalorder %s29, 1
      %p330 = scmp.ne.s32.totalorder %s325, %s327
      %p331 = scmp.eq.s32.totalorder %s29, 0
      %p332 = por %p330, %p331
      %p333 = scmp.ne.s32.totalorder %s325, %s327
      %p334 = scmp.eq.s32.totalorder %s34, 1
      %p335 = por %p333, %p334
      %p336 = scmp.ne.s32.totalorder %s327, %s328
      %p337 = scmp.eq.s32.totalorder %s34, 0
      %p338 = por %p336, %p337
      %p339 = scmp.ne.s32.totalorder %s327, %s328
      %p340 = scmp.eq.s32.totalorder %s35, 1
      %p341 = por %p339, %p340
      %p343 = scmp.ne.s32.totalorder %s328, %s342
      %p344 = scmp.eq.s32.totalorder %s35, 0
      %p345 = por %p343, %p344
      %s347 = sadd.s32 %s346, 1
      %p350 = scmp.eq.s32.totalorder %s29, 1
      %p351 = scmp.ne.s32.totalorder %s346, %s348
      %p352 = scmp.eq.s32.totalorder %s29, 0
      %p353 = por %p351, %p352
      %p354 = scmp.ne.s32.totalorder %s346, %s348
      %p355 = scmp.eq.s32.totalorder %s34, 1
      %p356 = por %p354, %p355
      %p357 = scmp.ne.s32.totalorder %s348, %s349
      %p358 = scmp.eq.s32.totalorder %s34, 0
      %p359 = por %p357, %p358
      %p360 = scmp.ne.s32.totalorder %s348, %s349
      %p361 = scmp.eq.s32.totalorder %s35, 1
      %p362 = por %p360, %p361
      %p364 = scmp.ne.s32.totalorder %s349, %s363
      %p365 = scmp.eq.s32.totalorder %s35, 0
      %p366 = por %p364, %p365
      %s368 = sadd.s32 %s367, 1
      %p371 = scmp.eq.s32.totalorder %s29, 1
      %p372 = scmp.ne.s32.totalorder %s367, %s369
      %p373 = scmp.eq.s32.totalorder %s29, 0
      %p374 = por %p372, %p373
      %p375 = scmp.ne.s32.totalorder %s367, %s369
      %p376 = scmp.eq.s32.totalorder %s34, 1
      %p377 = por %p375, %p376
      %p378 = scmp.ne.s32.totalorder %s369, %s370
      %p379 = scmp.eq.s32.totalorder %s34, 0
      %p380 = por %p378, %p379
      %p381 = scmp.ne.s32.totalorder %s369, %s370
      %p382 = scmp.eq.s32.totalorder %s35, 1
      %p383 = por %p381, %p382
      %p385 = scmp.ne.s32.totalorder %s370, %s384
      %p386 = scmp.eq.s32.totalorder %s35, 0
      %p387 = por %p385, %p386
      %s389 = sadd.s32 %s388, 1
      %p392 = scmp.eq.s32.totalorder %s29, 1
      %p393 = scmp.ne.s32.totalorder %s388, %s390
      %p394 = scmp.eq.s32.totalorder %s29, 0
      %p395 = por %p393, %p394
      %p396 = scmp.ne.s32.totalorder %s388, %s390
      %p397 = scmp.eq.s32.totalorder %s34, 1
      %p398 = por %p396, %p397
      %p399 = scmp.ne.s32.totalorder %s390, %s391
      %p400 = scmp.eq.s32.totalorder %s34, 0
      %p401 = por %p399, %p400
      %p402 = scmp.ne.s32.totalorder %s390, %s391
      %p403 = scmp.eq.s32.totalorder %s35, 1
      %p404 = por %p402, %p403
      %p406 = scmp.ne.s32.totalorder %s391, %s405
      %p407 = scmp.eq.s32.totalorder %s35, 0
      %p408 = por %p406, %p407
      %s410 = sadd.s32 %s409, 1
      %p413 = scmp.eq.s32.totalorder %s29, 1
      %p414 = scmp.ne.s32.totalorder %s409, %s411
      %p415 = scmp.eq.s32.totalorder %s29, 0
      %p416 = por %p414, %p415
      %p417 = scmp.ne.s32.totalorder %s409, %s411
      %p418 = scmp.eq.s32.totalorder %s34, 1
      %p419 = por %p417, %p418
      %p420 = scmp.ne.s32.totalorder %s411, %s412
      %p421 = scmp.eq.s32.totalorder %s34, 0
      %p422 = por %p420, %p421
      %p423 = scmp.ne.s32.totalorder %s411, %s412
      %p424 = scmp.eq.s32.totalorder %s35, 1
      %p425 = por %p423, %p424
      %p427 = scmp.ne.s32.totalorder %s412, %s426
      %p428 = scmp.eq.s32.totalorder %s35, 0
      %p429 = por %p427, %p428
      %s431 = sadd.s32 %s430, 1
      %p434 = scmp.eq.s32.totalorder %s29, 1
      %p435 = scmp.ne.s32.totalorder %s430, %s432
      %p436 = scmp.eq.s32.totalorder %s29, 0
      %p437 = por %p435, %p436
      %p438 = scmp.ne.s32.totalorder %s430, %s432
      %p439 = scmp.eq.s32.totalorder %s34, 1
      %p440 = por %p438, %p439
      %p441 = scmp.ne.s32.totalorder %s432, %s433
      %p442 = scmp.eq.s32.totalorder %s34, 0
      %p443 = por %p441, %p442
      %p444 = scmp.ne.s32.totalorder %s432, %s433
      %p445 = scmp.eq.s32.totalorder %s35, 1
      %p446 = por %p444, %p445
      %p448 = scmp.ne.s32.totalorder %s433, %s447
      %p449 = scmp.eq.s32.totalorder %s35, 0
      %p450 = por %p448, %p449
      %s452 = sadd.s32 %s451, 1
      %p455 = scmp.eq.s32.totalorder %s29, 1
      %p456 = scmp.ne.s32.totalorder %s451, %s453
      %p457 = scmp.eq.s32.totalorder %s29, 0
      %p458 = por %p456, %p457
      %p459 = scmp.ne.s32.totalorder %s451, %s453
      %p460 = scmp.eq.s32.totalorder %s34, 1
      %p461 = por %p459, %p460
      %p462 = scmp.ne.s32.totalorder %s453, %s454
      %p463 = scmp.eq.s32.totalorder %s34, 0
      %p464 = por %p462, %p463
      %p465 = scmp.ne.s32.totalorder %s453, %s454
      %p466 = scmp.eq.s32.totalorder %s35, 1
      %p467 = por %p465, %p466
      %p469 = scmp.ne.s32.totalorder %s454, %s468
      %p470 = scmp.eq.s32.totalorder %s35, 0
      %p471 = por %p469, %p470
      %s472 = ssub.s32 %s29, %s36
      %p473 = scmp.eq.s32.totalorder %s472, 0
      %s475 = sadd.s32 %s474, 1
      %s476 = scalar_select %p473, %s474, %s475
      %p479 = pneg %p473
      %p480 = scmp.eq.s32.totalorder %s29, 1
      %p481 = por %p479, %p480
      %p482 = scmp.ne.s32.totalorder %s474, %s477
      %p483 = scmp.eq.s32.totalorder %s29, 0
      %p484 = por %p482, %p483
      %p485 = scmp.ne.s32.totalorder %s474, %s477
      %p486 = scmp.eq.s32.totalorder %s34, 1
      %p487 = por %p485, %p486
      %p488 = scmp.ne.s32.totalorder %s477, %s478
      %p489 = scmp.eq.s32.totalorder %s34, 0
      %p490 = por %p488, %p489
      %p491 = scmp.ne.s32.totalorder %s477, %s478
      %p492 = scmp.eq.s32.totalorder %s35, 1
      %p493 = por %p491, %p492
      %p495 = scmp.ne.s32.totalorder %s478, %s494
      %p496 = scmp.eq.s32.totalorder %s35, 0
      %p497 = por %p495, %p496
      %p498 = scmp.le.s32.totalorder 1, %s29
      %p499 = scmp.lt.s32.totalorder %s29, 3
      %p500 = pnand %p498, %p499
      %p501 = pneg %p500
      // Predicated region
      $region9: #{table_encoder_forward.1} parent=5 // pred_check
        _
      $region10: #{table_encoder_forward.1} parent=5 // pred_check_branch
        %503 = sbr.rel (%p500) target = $region12
      $region11: #{table_encoder_forward.1} parent=5 // pred_region
        %s504 = ssub.s32 %s29, 1
        // Predicated region
        $region13: #{table_encoder_forward.1} parent=11 // pred_check
          %p505 = pneg %p128
        $region14: #{table_encoder_forward.1} parent=11 // pred_check_branch
          %507 = sbr.rel (%p505) target = $region16
        $region15: #{table_encoder_forward.1} parent=11 // pred_region
          _
        $region16: #{table_encoder_forward.1} parent=11 // pred_fallthru
          _
        // Predicated region
        $region17: #{table_encoder_forward.1} parent=11 // pred_check
          %p508 = pneg %p149
        $region18: #{table_encoder_forward.1} parent=11 // pred_check_branch
          %510 = sbr.rel (%p508) target = $region20
        $region19: #{table_encoder_forward.1} parent=11 // pred_region
          _
        $region20: #{table_encoder_forward.1} parent=11 // pred_fallthru
          _
        // Predicated region
        $region21: #{table_encoder_forward.1} parent=11 // pred_check
          %p511 = pneg %p170
        $region22: #{table_encoder_forward.1} parent=11 // pred_check_branch
          %513 = sbr.rel (%p511) target = $region24
        $region23: #{table_encoder_forward.1} parent=11 // pred_region
          _
        $region24: #{table_encoder_forward.1} parent=11 // pred_fallthru
          _
        // Predicated region
        $region25: #{table_encoder_forward.1} parent=11 // pred_check
          %p514 = pneg %p191
        $region26: #{table_encoder_forward.1} parent=11 // pred_check_branch
          %516 = sbr.rel (%p514) target = $region28
        $region27: #{table_encoder_forward.1} parent=11 // pred_region
          _
        $region28: #{table_encoder_forward.1} parent=11 // pred_fallthru
          _
        // Predicated region
        $region29: #{table_encoder_forward.1} parent=11 // pred_check
          %p517 = pneg %p212
        $region30: #{table_encoder_forward.1} parent=11 // pred_check_branch
          %519 = sbr.rel (%p517) target = $region32
        $region31: #{table_encoder_forward.1} parent=11 // pred_region
          _
        $region32: #{table_encoder_forward.1} parent=11 // pred_fallthru
          _
        // Predicated region
        $region33: #{table_encoder_forward.1} parent=11 // pred_check
          %p520 = pneg %p233
        $region34: #{table_encoder_forward.1} parent=11 // pred_check_branch
          %522 = sbr.rel (%p520) target = $region36
        $region35: #{table_encoder_forward.1} parent=11 // pred_region
          _
        $region36: #{table_encoder_forward.1} parent=11 // pred_fallthru
          _
        // Predicated region
        $region37: #{table_encoder_forward.1} parent=11 // pred_check
          %p523 = pneg %p254
        $region38: #{table_encoder_forward.1} parent=11 // pred_check_branch
          %525 = sbr.rel (%p523) target = $region40
        $region39: #{table_encoder_forward.1} parent=11 // pred_region
          _
        $region40: #{table_encoder_forward.1} parent=11 // pred_fallthru
          _
        // Predicated region
        $region41: #{table_encoder_forward.1} parent=11 // pred_check
          %p526 = pneg %p275
        $region42: #{table_encoder_forward.1} parent=11 // pred_check_branch
          %528 = sbr.rel (%p526) target = $region44
        $region43: #{table_encoder_forward.1} parent=11 // pred_region
          _
        $region44: #{table_encoder_forward.1} parent=11 // pred_fallthru
          _
        // Predicated region
        $region45: #{table_encoder_forward.1} parent=11 // pred_check
          %p529 = pneg %p296
        $region46: #{table_encoder_forward.1} parent=11 // pred_check_branch
          %531 = sbr.rel (%p529) target = $region48
        $region47: #{table_encoder_forward.1} parent=11 // pred_region
          _
        $region48: #{table_encoder_forward.1} parent=11 // pred_fallthru
          _
        // Predicated region
        $region49: #{table_encoder_forward.1} parent=11 // pred_check
          %p532 = pneg %p317
        $region50: #{table_encoder_forward.1} parent=11 // pred_check_branch
          %534 = sbr.rel (%p532) target = $region52
        $region51: #{table_encoder_forward.1} parent=11 // pred_region
          _
        $region52: #{table_encoder_forward.1} parent=11 // pred_fallthru
          _
        // Predicated region
        $region53: #{table_encoder_forward.1} parent=11 // pred_check
          %p535 = pneg %p338
        $region54: #{table_encoder_forward.1} parent=11 // pred_check_branch
          %537 = sbr.rel (%p535) target = $region56
        $region55: #{table_encoder_forward.1} parent=11 // pred_region
          _
        $region56: #{table_encoder_forward.1} parent=11 // pred_fallthru
          _
        // Predicated region
        $region57: #{table_encoder_forward.1} parent=11 // pred_check
          %p538 = pneg %p359
        $region58: #{table_encoder_forward.1} parent=11 // pred_check_branch
          %540 = sbr.rel (%p538) target = $region60
        $region59: #{table_encoder_forward.1} parent=11 // pred_region
          _
        $region60: #{table_encoder_forward.1} parent=11 // pred_fallthru
          _
        // Predicated region
        $region61: #{table_encoder_forward.1} parent=11 // pred_check
          %p541 = pneg %p380
        $region62: #{table_encoder_forward.1} parent=11 // pred_check_branch
          %543 = sbr.rel (%p541) target = $region64
        $region63: #{table_encoder_forward.1} parent=11 // pred_region
          _
        $region64: #{table_encoder_forward.1} parent=11 // pred_fallthru
          _
        // Predicated region
        $region65: #{table_encoder_forward.1} parent=11 // pred_check
          %p544 = pneg %p401
        $region66: #{table_encoder_forward.1} parent=11 // pred_check_branch
          %546 = sbr.rel (%p544) target = $region68
        $region67: #{table_encoder_forward.1} parent=11 // pred_region
          _
        $region68: #{table_encoder_forward.1} parent=11 // pred_fallthru
          _
        // Predicated region
        $region69: #{table_encoder_forward.1} parent=11 // pred_check
          %p547 = pneg %p422
        $region70: #{table_encoder_forward.1} parent=11 // pred_check_branch
          %549 = sbr.rel (%p547) target = $region72
        $region71: #{table_encoder_forward.1} parent=11 // pred_region
          _
        $region72: #{table_encoder_forward.1} parent=11 // pred_fallthru
          _
        // Predicated region
        $region73: #{table_encoder_forward.1} parent=11 // pred_check
          %p550 = pneg %p443
        $region74: #{table_encoder_forward.1} parent=11 // pred_check_branch
          %552 = sbr.rel (%p550) target = $region76
        $region75: #{table_encoder_forward.1} parent=11 // pred_region
          _
        $region76: #{table_encoder_forward.1} parent=11 // pred_fallthru
          _
        // Predicated region
        $region77: #{table_encoder_forward.1} parent=11 // pred_check
          %p553 = pneg %p464
        $region78: #{table_encoder_forward.1} parent=11 // pred_check_branch
          %555 = sbr.rel (%p553) target = $region80
        $region79: #{table_encoder_forward.1} parent=11 // pred_region
          _
        $region80: #{table_encoder_forward.1} parent=11 // pred_fallthru
          _
      $region12: #{table_encoder_forward.1} parent=5 // pred_fallthru
        _
      %p556 = scmp.lt.s32.totalorder %s29, 2
      // Predicated region
      $region81: #{table_encoder_forward.1} parent=5 // pred_check
        %p557 = pneg %p556
      $region82: #{table_encoder_forward.1} parent=5 // pred_check_branch
        %559 = sbr.rel (%p557) target = $region84
      $region83: #{table_encoder_forward.1} parent=5 // pred_region
        // Predicated region
        $region85: #{table_encoder_forward.1} parent=83 // pred_check
          %p560 = pneg %p49
        $region86: #{table_encoder_forward.1} parent=83 // pred_check_branch
          %562 = sbr.rel (%p560) target = $region88
        $region87: #{table_encoder_forward.1} parent=83 // pred_region
          %p563 = scmp.lt.s32.totalorder %s29, 1
          %s564 = scalar_select %p563, %s29, 1
          %s565 = smul.addr %s564, 24
          %s566 = smul.addr %s565, 8
          %s567 = scalar_lea.vmem %s0, %s566
        $region88: #{table_encoder_forward.1} parent=83 // pred_fallthru
          _
        // Predicated region
        $region89: #{table_encoder_forward.1} parent=83 // pred_check
          %p568 = pneg %p75
        $region90: #{table_encoder_forward.1} parent=83 // pred_check_branch
          %570 = sbr.rel (%p568) target = $region92
        $region91: #{table_encoder_forward.1} parent=83 // pred_region
          %p571 = scmp.lt.s32.totalorder %s29, 1
          %s572 = scalar_select %p571, %s29, 1
          %s573 = smul.addr %s572, 2
          %s574 = scalar_lea.vmem %s1, %s573
        $region92: #{table_encoder_forward.1} parent=83 // pred_fallthru
          _
        // Predicated region
        $region93: #{table_encoder_forward.1} parent=83 // pred_check
          %p575 = pneg %p101
        $region94: #{table_encoder_forward.1} parent=83 // pred_check_branch
          %577 = sbr.rel (%p575) target = $region96
        $region95: #{table_encoder_forward.1} parent=83 // pred_region
          %p578 = scmp.lt.s32.totalorder %s29, 1
          %s579 = scalar_select %p578, %s29, 1
          %s580 = scalar_lea.vmem %s2, %s579
        $region96: #{table_encoder_forward.1} parent=83 // pred_fallthru
          _
      $region84: #{table_encoder_forward.1} parent=5 // pred_fallthru
        _
      %p581 = scmp.le.s32.totalorder 1, %s29
      %p582 = scmp.lt.s32.totalorder %s29, 3
      %p583 = pnand %p581, %p582
      %p584 = pneg %p583
      // Predicated region
      $region97: #{table_encoder_forward.1} parent=5 // pred_check
        _
      $region98: #{table_encoder_forward.1} parent=5 // pred_check_branch
        %586 = sbr.rel (%p583) target = $region100
      $region99: #{table_encoder_forward.1} parent=5 // pred_region
        %s587 = ssub.s32 %s29, 1
        %p588 = scmp.lt.s32.totalorder %s34, 1
        %s589 = scalar_select %p588, %s34, 1
        %s590 = smul.addr %s589, 24
        %s591 = smul.addr %s590, 8
        %s592 = scalar_lea.vmem %s0, %s591
        %p593 = pneg %p55
        %p594 = pneg %p52
        %p595 = scmp.lt.s32.totalorder %s34, 1
        %s596 = scalar_select %p595, %s34, 1
        %s597 = smul.addr %s596, 2
        %s598 = scalar_lea.vmem %s1, %s597
        %p599 = pneg %p81
        %p600 = pneg %p78
        %p601 = scmp.lt.s32.totalorder %s34, 1
        %s602 = scalar_select %p601, %s34, 1
        %s603 = scalar_lea.vmem %s2, %s602
        %p604 = pneg %p107
        %p605 = pneg %p104
        %p606 = pneg %p128
        %p607 = pneg %p125
        %p608 = pneg %p149
        %p609 = pneg %p146
        %p610 = pneg %p170
        %p611 = pneg %p167
        %p612 = pneg %p191
        %p613 = pneg %p188
        %p614 = pneg %p212
        %p615 = pneg %p209
        %p616 = pneg %p233
        %p617 = pneg %p230
        %p618 = pneg %p254
        %p619 = pneg %p251
        %p620 = pneg %p275
        %p621 = pneg %p272
        %p622 = pneg %p296
        %p623 = pneg %p293
        %p624 = pneg %p317
        %p625 = pneg %p314
        %p626 = pneg %p338
        %p627 = pneg %p335
        %p628 = pneg %p359
        %p629 = pneg %p356
        %p630 = pneg %p380
        %p631 = pneg %p377
        %p632 = pneg %p401
        %p633 = pneg %p398
        %p634 = pneg %p422
        %p635 = pneg %p419
        %p636 = pneg %p443
        %p637 = pneg %p440
        %p638 = pneg %p464
        %p639 = pneg %p461
        %p640 = pneg %p490
        %p641 = pneg %p487
        %s642 = sand.u32 %s477, 1
        %s643 = scalar_lea.sflag [#allocation3], %s642
        %s644 = sand.u32 %s477, 1
        %s645 = smul.addr %s644, 8
        %s646 = scalar_lea.vmem [#allocation2], %s645
        %p647 = scmp.lt.s32.totalorder %s34, 1
        %s648 = scalar_select %p647, %s34, 1
        %s649 = smul.addr %s648, 24
        %s650 = smul.addr %s649, 8
        %s651 = scalar_lea.vmem %s0, %s650
        %p652 = scmp.lt.s32.totalorder %s34, 1
        %s653 = scalar_select %p652, %s34, 1
        %s654 = smul.addr %s653, 2
        %s655 = scalar_lea.vmem %s1, %s654
        %p656 = scmp.lt.s32.totalorder %s34, 1
        %s657 = scalar_select %p656, %s34, 1
        %s658 = scalar_lea.vmem %s2, %s657
        %v660 = vlaneseq
        %v661 = vand.u32 %v660, 127
        %v662 = vld [vmem:[%s651] sm:$0xff]
        %v663 = vld [vmem:[%s651 + $0x8] sm:$0xff]
        %v664 = vld [vmem:[%s651 + $0x10] sm:$0xff]
        %v665 = vld [vmem:[%s651 + $0x18] sm:$0xff]
        %v666 = vld [vmem:[%s651 + $0x20] sm:$0xff]
        %v667 = vld [vmem:[%s651 + $0x28] sm:$0xff]
        %v668 = vld [vmem:[%s651 + $0x30] sm:$0xff]
        %v669 = vld [vmem:[%s651 + $0x38] sm:$0xff]
        %v670 = vld [vmem:[%s651 + $0x40] sm:$0xff]
        %v671 = vld [vmem:[%s651 + $0x48] sm:$0xff]
        %v672 = vld [vmem:[%s651 + $0x50] sm:$0xff]
        %v673 = vld [vmem:[%s651 + $0x58] sm:$0xff]
        %v674 = vld [vmem:[%s651 + $0x60] sm:$0xff]
        %v675 = vld [vmem:[%s651 + $0x68] sm:$0xff]
        %v676 = vld [vmem:[%s651 + $0x70] sm:$0xff]
        %v677 = vld [vmem:[%s651 + $0x78] sm:$0xff]
        %v678 = vld [vmem:[%s651 + $0x80] sm:$0xff]
        %v679 = vld [vmem:[%s651 + $0x88] sm:$0xff]
        %v680 = vld [vmem:[%s651 + $0x90] sm:$0xff]
        %v681 = vld [vmem:[%s651 + $0x98] sm:$0xff]
        %v682 = vld [vmem:[%s651 + $0xa0] sm:$0xff]
        %v683 = vld [vmem:[%s651 + $0xa8] sm:$0xff]
        %v684 = vld [vmem:[%s651 + $0xb0] sm:$0xff]
        %v685 = vld [vmem:[%s651 + $0xb8] sm:$0xff]
        %686 = vset.pattern.permute.xlu0 0
        %687 = vperm.xlu0 %686, %v662
        %v688 = vpop.permute.xlu0 %687
        %689 = vset.pattern.permute.xlu0 0
        %690 = vperm.xlu0 %689, %v663
        %v691 = vpop.permute.xlu0 %690
        %692 = vset.pattern.permute.xlu0 0
        %693 = vperm.xlu0 %692, %v664
        %v694 = vpop.permute.xlu0 %693
        %695 = vset.pattern.permute.xlu0 0
        %696 = vperm.xlu0 %695, %v665
        %v697 = vpop.permute.xlu0 %696
        %698 = vset.pattern.permute.xlu0 0
        %699 = vperm.xlu0 %698, %v666
        %v700 = vpop.permute.xlu0 %699
        %701 = vset.pattern.permute.xlu0 0
        %702 = vperm.xlu0 %701, %v667
        %v703 = vpop.permute.xlu0 %702
        %704 = vset.pattern.permute.xlu0 0
        %705 = vperm.xlu0 %704, %v668
        %v706 = vpop.permute.xlu0 %705
        %707 = vset.pattern.permute.xlu0 0
        %708 = vperm.xlu0 %707, %v669
        %v709 = vpop.permute.xlu0 %708
        %710 = vset.pattern.permute.xlu0 0
        %711 = vperm.xlu0 %710, %v670
        %v712 = vpop.permute.xlu0 %711
        %713 = vset.pattern.permute.xlu0 0
        %714 = vperm.xlu0 %713, %v671
        %v715 = vpop.permute.xlu0 %714
        %716 = vset.pattern.permute.xlu0 0
        %717 = vperm.xlu0 %716, %v672
        %v718 = vpop.permute.xlu0 %717
        %719 = vset.pattern.permute.xlu0 0
        %720 = vperm.xlu0 %719, %v673
        %v721 = vpop.permute.xlu0 %720
        %722 = vset.pattern.permute.xlu0 0
        %723 = vperm.xlu0 %722, %v674
        %v724 = vpop.permute.xlu0 %723
        %725 = vset.pattern.permute.xlu0 0
        %726 = vperm.xlu0 %725, %v675
        %v727 = vpop.permute.xlu0 %726
        %728 = vset.pattern.permute.xlu0 0
        %729 = vperm.xlu0 %728, %v676
        %v730 = vpop.permute.xlu0 %729
        %731 = vset.pattern.permute.xlu0 0
        %732 = vperm.xlu0 %731, %v677
        %v733 = vpop.permute.xlu0 %732
        %734 = vset.pattern.permute.xlu0 0
        %735 = vperm.xlu0 %734, %v678
        %v736 = vpop.permute.xlu0 %735
        %737 = vset.pattern.permute.xlu0 0
        %738 = vperm.xlu0 %737, %v679
        %v739 = vpop.permute.xlu0 %738
        %740 = vset.pattern.permute.xlu0 0
        %741 = vperm.xlu0 %740, %v680
        %v742 = vpop.permute.xlu0 %741
        %743 = vset.pattern.permute.xlu0 0
        %744 = vperm.xlu0 %743, %v681
        %v745 = vpop.permute.xlu0 %744
        %746 = vset.pattern.permute.xlu0 0
        %747 = vperm.xlu0 %746, %v682
        %v748 = vpop.permute.xlu0 %747
        %749 = vset.pattern.permute.xlu0 0
        %750 = vperm.xlu0 %749, %v683
        %v751 = vpop.permute.xlu0 %750
        %752 = vset.pattern.permute.xlu0 0
        %753 = vperm.xlu0 %752, %v684
        %v754 = vpop.permute.xlu0 %753
        %755 = vset.pattern.permute.xlu0 0
        %756 = vperm.xlu0 %755, %v685
        %v757 = vpop.permute.xlu0 %756
        %vm758 = vcmp.eq.s32.totalorder %v661, %v688
        %vm759 = vcmp.eq.s32.totalorder %v661, %v691
        %vm760 = vcmp.eq.s32.totalorder %v661, %v694
        %vm761 = vcmp.eq.s32.totalorder %v661, %v697
        %vm762 = vcmp.eq.s32.totalorder %v661, %v700
        %vm763 = vcmp.eq.s32.totalorder %v661, %v703
        %vm764 = vcmp.eq.s32.totalorder %v661, %v706
        %vm765 = vcmp.eq.s32.totalorder %v661, %v709
        %vm766 = vcmp.eq.s32.totalorder %v661, %v712
        %vm767 = vcmp.eq.s32.totalorder %v661, %v715
        %vm768 = vcmp.eq.s32.totalorder %v661, %v718
        %vm769 = vcmp.eq.s32.totalorder %v661, %v721
        %vm770 = vcmp.eq.s32.totalorder %v661, %v724
        %vm771 = vcmp.eq.s32.totalorder %v661, %v727
        %vm772 = vcmp.eq.s32.totalorder %v661, %v730
        %vm773 = vcmp.eq.s32.totalorder %v661, %v733
        %vm774 = vcmp.eq.s32.totalorder %v661, %v736
        %vm775 = vcmp.eq.s32.totalorder %v661, %v739
        %vm776 = vcmp.eq.s32.totalorder %v661, %v742
        %vm777 = vcmp.eq.s32.totalorder %v661, %v745
        %vm778 = vcmp.eq.s32.totalorder %v661, %v748
        %vm779 = vcmp.eq.s32.totalorder %v661, %v751
        %vm780 = vcmp.eq.s32.totalorder %v661, %v754
        %vm781 = vcmp.eq.s32.totalorder %v661, %v757
        %v782 = vsel %vm758, 1, 0
        %v783 = vsel %vm759, 1, 0
        %v784 = vsel %vm760, 1, 0
        %v785 = vsel %vm761, 1, 0
        %v786 = vsel %vm762, 1, 0
        %v787 = vsel %vm763, 1, 0
        %v788 = vsel %vm764, 1, 0
        %v789 = vsel %vm765, 1, 0
        %v790 = vsel %vm766, 1, 0
        %v791 = vsel %vm767, 1, 0
        %v792 = vsel %vm768, 1, 0
        %v793 = vsel %vm769, 1, 0
        %v794 = vsel %vm770, 1, 0
        %v795 = vsel %vm771, 1, 0
        %v796 = vsel %vm772, 1, 0
        %v797 = vsel %vm773, 1, 0
        %v798 = vsel %vm774, 1, 0
        %v799 = vsel %vm775, 1, 0
        %v800 = vsel %vm776, 1, 0
        %v801 = vsel %vm777, 1, 0
        %v802 = vsel %vm778, 1, 0
        %v803 = vsel %vm779, 1, 0
        %v804 = vsel %vm780, 1, 0
        %v805 = vsel %vm781, 1, 0
        %v806 = vcvt.s32.f32 %v782
        %v807 = vcvt.s32.f32 %v783
        %v808 = vcvt.s32.f32 %v784
        %v809 = vcvt.s32.f32 %v785
        %v810 = vcvt.s32.f32 %v786
        %v811 = vcvt.s32.f32 %v787
        %v812 = vcvt.s32.f32 %v788
        %v813 = vcvt.s32.f32 %v789
        %v814 = vcvt.s32.f32 %v790
        %v815 = vcvt.s32.f32 %v791
        %v816 = vcvt.s32.f32 %v792
        %v817 = vcvt.s32.f32 %v793
        %v818 = vcvt.s32.f32 %v794
        %v819 = vcvt.s32.f32 %v795
        %v820 = vcvt.s32.f32 %v796
        %v821 = vcvt.s32.f32 %v797
        %v822 = vcvt.s32.f32 %v798
        %v823 = vcvt.s32.f32 %v799
        %v824 = vcvt.s32.f32 %v800
        %v825 = vcvt.s32.f32 %v801
        %v826 = vcvt.s32.f32 %v802
        %v827 = vcvt.s32.f32 %v803
        %v828 = vcvt.s32.f32 %v804
        %v829 = vcvt.s32.f32 %v805
        %v830 = vld [vmem:[%s3] sm:$0xff]
        %v831 = vld [vmem:[%s3 + $0x8] sm:$0xff]
        %v832 = vld [vmem:[%s3 + $0x10] sm:$0xff]
        %v833 = vld [vmem:[%s3 + $0x18] sm:$0xff]
        %v834 = vld [vmem:[%s3 + $0x20] sm:$0xff]
        %v835 = vld [vmem:[%s3 + $0x28] sm:$0xff]
        %v836 = vld [vmem:[%s3 + $0x30] sm:$0xff]
        %v837 = vld [vmem:[%s3 + $0x38] sm:$0xff]
        %v838 = vld [vmem:[%s3 + $0x40] sm:$0xff]
        %v839 = vld [vmem:[%s3 + $0x48] sm:$0xff]
        %v840 = vld [vmem:[%s3 + $0x50] sm:$0xff]
        %v841 = vld [vmem:[%s3 + $0x58] sm:$0xff]
        %v842 = vld [vmem:[%s3 + $0x60] sm:$0x1]
        %vm843 = vcmask 793600
        %v845 = vsel %vm843, %v806, 0
        %v848 = vsel %vm843, %v807, 0
        %v851 = vsel %vm843, %v808, 0
        %v854 = vsel %vm843, %v809, 0
        %v857 = vsel %vm843, %v810, 0
        %v860 = vsel %vm843, %v811, 0
        %v863 = vsel %vm843, %v812, 0
        %v866 = vsel %vm843, %v813, 0
        %v869 = vsel %vm843, %v814, 0
        %v872 = vsel %vm843, %v815, 0
        %v875 = vsel %vm843, %v816, 0
        %v878 = vsel %vm843, %v817, 0
        %v881 = vsel %vm843, %v818, 0
        %v884 = vsel %vm843, %v819, 0
        %v887 = vsel %vm843, %v820, 0
        %v890 = vsel %vm843, %v821, 0
        %v893 = vsel %vm843, %v822, 0
        %v896 = vsel %vm843, %v823, 0
        %v899 = vsel %vm843, %v824, 0
        %v902 = vsel %vm843, %v825, 0
        %v905 = vsel %vm843, %v826, 0
        %v908 = vsel %vm843, %v827, 0
        %v911 = vsel %vm843, %v828, 0
        %v914 = vsel %vm843, %v829, 0
        %vm916 = vcmask 1040384
        %v918 = vsel %vm916, %v842, 0
        %920 = vmatpush.msra.mxu0 0.0
        %921 = vmatpush.msra.mxu0 0.0
        %922 = vmatpush.msra.mxu0 0.0
        %923 = vmatpush.msra.mxu0 %v918
        %924 = vmatpush.msra.mxu0 %v841
        %925 = vmatpush.msra.mxu0 %v840
        %926 = vmatpush.msra.mxu0 %v839
        %927 = vmatpush.msra.mxu0 %v838
        %928 = vmatpush.msra.mxu0 %v837
        %929 = vmatpush.msra.mxu0 %v836
        %930 = vmatpush.msra.mxu0 %v835
        %931 = vmatpush.msra.mxu0 %v834
        %932 = vmatpush.msra.mxu0 %v833
        %933 = vmatpush.msra.mxu0 %v832
        %934 = vmatpush.msra.mxu0 %v831
        %935 = vmatpush.msra.mxu0 %v830
        %936 = vmatmul.f32.gmra.mxu0 %v845
        %v937 = vpop.f32.mrf.mxu0
        %v938 = vadd.f32 0.0, %v937
        %939 = vmatmul.f32.gmra.mxu0 %v848
        %v940 = vpop.f32.mrf.mxu0
        %v941 = vadd.f32 0.0, %v940
        %942 = vmatmul.f32.gmra.mxu0 %v851
        %v943 = vpop.f32.mrf.mxu0
        %v944 = vadd.f32 0.0, %v943
        %945 = vmatmul.f32.gmra.mxu0 %v854
        %v946 = vpop.f32.mrf.mxu0
        %v947 = vadd.f32 0.0, %v946
        %948 = vmatmul.f32.gmra.mxu0 %v857
        %v949 = vpop.f32.mrf.mxu0
        %v950 = vadd.f32 0.0, %v949
        %951 = vmatmul.f32.gmra.mxu0 %v860
        %v952 = vpop.f32.mrf.mxu0
        %v953 = vadd.f32 0.0, %v952
        %954 = vmatmul.f32.gmra.mxu0 %v863
        %v955 = vpop.f32.mrf.mxu0
        %v956 = vadd.f32 0.0, %v955
        %957 = vmatmul.f32.gmra.mxu0 %v866
        %v958 = vpop.f32.mrf.mxu0
        %v959 = vadd.f32 0.0, %v958
        %960 = vmatmul.f32.gmra.mxu0 %v869
        %v961 = vpop.f32.mrf.mxu0
        %v962 = vadd.f32 0.0, %v961
        %963 = vmatmul.f32.gmra.mxu0 %v872
        %v964 = vpop.f32.mrf.mxu0
        %v965 = vadd.f32 0.0, %v964
        %966 = vmatmul.f32.gmra.mxu0 %v875
        %v967 = vpop.f32.mrf.mxu0
        %v968 = vadd.f32 0.0, %v967
        %969 = vmatmul.f32.gmra.mxu0 %v878
        %v970 = vpop.f32.mrf.mxu0
        %v971 = vadd.f32 0.0, %v970
        %972 = vmatmul.f32.gmra.mxu0 %v881
        %v973 = vpop.f32.mrf.mxu0
        %v974 = vadd.f32 0.0, %v973
        %975 = vmatmul.f32.gmra.mxu0 %v884
        %v976 = vpop.f32.mrf.mxu0
        %v977 = vadd.f32 0.0, %v976
        %978 = vmatmul.f32.gmra.mxu0 %v887
        %v979 = vpop.f32.mrf.mxu0
        %v980 = vadd.f32 0.0, %v979
        %981 = vmatmul.f32.gmra.mxu0 %v890
        %v982 = vpop.f32.mrf.mxu0
        %v983 = vadd.f32 0.0, %v982
        %984 = vmatmul.f32.gmra.mxu0 %v893
        %v985 = vpop.f32.mrf.mxu0
        %v986 = vadd.f32 0.0, %v985
        %987 = vmatmul.f32.gmra.mxu0 %v896
        %v988 = vpop.f32.mrf.mxu0
        %v989 = vadd.f32 0.0, %v988
        %990 = vmatmul.f32.gmra.mxu0 %v899
        %v991 = vpop.f32.mrf.mxu0
        %v992 = vadd.f32 0.0, %v991
        %993 = vmatmul.f32.gmra.mxu0 %v902
        %v994 = vpop.f32.mrf.mxu0
        %v995 = vadd.f32 0.0, %v994
        %996 = vmatmul.f32.gmra.mxu0 %v905
        %v997 = vpop.f32.mrf.mxu0
        %v998 = vadd.f32 0.0, %v997
        %999 = vmatmul.f32.gmra.mxu0 %v908
        %v1000 = vpop.f32.mrf.mxu0
        %v1001 = vadd.f32 0.0, %v1000
        %1002 = vmatmul.f32.gmra.mxu0 %v911
        %v1003 = vpop.f32.mrf.mxu0
        %v1004 = vadd.f32 0.0, %v1003
        %1005 = vmatmul.f32.gmra.mxu0 %v914
        %v1006 = vpop.f32.mrf.mxu0
        %v1007 = vadd.f32 0.0, %v1006
        %1008 = vdwg.mxu0
        %v1009 = vadd.s32 %v661, 128
        %v1010 = vlaneseq
        %v1011 = vshrl.u32 %v1010, 7
        %v1012 = vadd.s32 %v1011, 8
        %v1013 = vadd.s32 %v1011, 16
        %v1014 = vadd.s32 %v1011, 24
        %v1015 = vmul.u32 %v1011, 6
        %v1016 = vmul.u32 %v1012, 6
        %v1017 = vmul.u32 %v1013, 6
        %v1018 = vmul.u32 %v1014, 6
        %vm1019 = vcmp.ge.s32.totalorder %v661, %v1015
        %vm1020 = vcmp.ge.s32.totalorder %v1009, %v1015
        %vm1021 = vcmp.ge.s32.totalorder %v661, %v1016
        %vm1022 = vcmp.ge.s32.totalorder %v1009, %v1016
        %vm1023 = vcmp.ge.s32.totalorder %v661, %v1017
        %vm1024 = vcmp.ge.s32.totalorder %v1009, %v1017
        %vm1025 = vcmp.ge.s32.totalorder %v661, %v1018
        %vm1026 = vcmp.ge.s32.totalorder %v1009, %v1018
        %v1027 = vadd.s32 %v1015, 6
        %v1028 = vadd.s32 %v1016, 6
        %v1029 = vadd.s32 %v1017, 6
        %v1030 = vadd.s32 %v1018, 6
        %vm1031 = vcmp.lt.s32.totalorder %v661, %v1027
        %vm1032 = vcmp.lt.s32.totalorder %v1009, %v1027
        %vm1033 = vcmp.lt.s32.totalorder %v661, %v1028
        %vm1034 = vcmp.lt.s32.totalorder %v1009, %v1028
        %vm1035 = vcmp.lt.s32.totalorder %v661, %v1029
        %vm1036 = vcmp.lt.s32.totalorder %v1009, %v1029
        %vm1037 = vcmp.lt.s32.totalorder %v661, %v1030
        %vm1038 = vcmp.lt.s32.totalorder %v1009, %v1030
        %vm1039 = vmand %vm1019, %vm1031
        %vm1040 = vmand %vm1020, %vm1032
        %vm1041 = vmand %vm1021, %vm1033
        %vm1042 = vmand %vm1022, %vm1034
        %vm1043 = vmand %vm1023, %vm1035
        %vm1044 = vmand %vm1024, %vm1036
        %vm1045 = vmand %vm1025, %vm1037
        %vm1046 = vmand %vm1026, %vm1038
        %v1047 = vld [vmem:[%s655] sm:$0x3]
        %v1049 = vperm.slane %v1047, 0
        %v1050 = vperm.slane %v1047, 1
        %v1053 = vsel %vm1039, %v1049, 0.0
        %v1054 = vsel %vm1040, %v1050, 0.0
        %v1055 = vsel %vm1041, %v1049, 0.0
        %v1056 = vsel %vm1042, %v1050, 0.0
        %v1057 = vsel %vm1043, %v1049, 0.0
        %v1058 = vsel %vm1044, %v1050, 0.0
        %v1059 = vsel %vm1045, %v1049, 0.0
        %v1060 = vsel %vm1046, %v1050, 0.0
        %vm1061 = vcmask 523264
        %v1063 = vsel %vm1061, %v1054, 0
        %v1066 = vsel %vm1061, %v1056, 0
        %v1069 = vsel %vm1061, %v1058, 0
        %v1072 = vsel %vm1061, %v1060, 0
        %1074 = vmatpush.msra.mxu0 %v983
        %1075 = vmatpush.msra.mxu0 %v980
        %1076 = vmatpush.msra.mxu0 %v977
        %1077 = vmatpush.msra.mxu0 %v974
        %1078 = vmatpush.msra.mxu0 %v971
        %1079 = vmatpush.msra.mxu0 %v968
        %1080 = vmatpush.msra.mxu0 %v965
        %1081 = vmatpush.msra.mxu0 %v962
        %1082 = vmatpush.msra.mxu0 %v959
        %1083 = vmatpush.msra.mxu0 %v956
        %1084 = vmatpush.msra.mxu0 %v953
        %1085 = vmatpush.msra.mxu0 %v950
        %1086 = vmatpush.msra.mxu0 %v947
        %1087 = vmatpush.msra.mxu0 %v944
        %1088 = vmatpush.msra.mxu0 %v941
        %1089 = vmatpush.msra.mxu0 %v938
        %1090 = vmatmul.f32.gmra.mxu0 %v1053
        %v1091 = vpop.f32.mrf.mxu0
        %v1092 = vadd.f32 0.0, %v1091
        %1093 = vmatmul.f32.gmra.mxu0 %v1055
        %v1094 = vpop.f32.mrf.mxu0
        %v1095 = vadd.f32 0.0, %v1094
        %1096 = vmatmul.f32.gmra.mxu0 %v1057
        %v1097 = vpop.f32.mrf.mxu0
        %v1098 = vadd.f32 0.0, %v1097
        %1099 = vmatmul.f32.gmra.mxu0 %v1059
        %v1100 = vpop.f32.mrf.mxu0
        %v1101 = vadd.f32 0.0, %v1100
        %1102 = vdwg.mxu0
        %1103 = vmatpush.msra.mxu0 0.0
        %1104 = vmatpush.msra.mxu0 0.0
        %1105 = vmatpush.msra.mxu0 0.0
        %1106 = vmatpush.msra.mxu0 0.0
        %1107 = vmatpush.msra.mxu0 0.0
        %1108 = vmatpush.msra.mxu0 0.0
        %1109 = vmatpush.msra.mxu0 0.0
        %1110 = vmatpush.msra.mxu0 0.0
        %1111 = vmatpush.msra.mxu0 %v1007
        %1112 = vmatpush.msra.mxu0 %v1004
        %1113 = vmatpush.msra.mxu0 %v1001
        %1114 = vmatpush.msra.mxu0 %v998
        %1115 = vmatpush.msra.mxu0 %v995
        %1116 = vmatpush.msra.mxu0 %v992
        %1117 = vmatpush.msra.mxu0 %v989
        %1118 = vmatpush.msra.mxu0 %v986
        %1119 = vmatmul.f32.gmra.mxu0 %v1063
        %v1120 = vpop.f32.mrf.mxu0
        %v1121 = vadd.f32 %v1092, %v1120
        %1122 = vmatmul.f32.gmra.mxu0 %v1066
        %v1123 = vpop.f32.mrf.mxu0
        %v1124 = vadd.f32 %v1095, %v1123
        %1125 = vmatmul.f32.gmra.mxu0 %v1069
        %v1126 = vpop.f32.mrf.mxu0
        %v1127 = vadd.f32 %v1098, %v1126
        %1128 = vmatmul.f32.gmra.mxu0 %v1072
        %v1129 = vpop.f32.mrf.mxu0
        %v1130 = vadd.f32 %v1101, %v1129
        %1131 = vdwg.mxu0
        %v1132 = vsel %vm1061, %v1054, 0.0
        %v1133 = vadd.f32 %v1053, %v1132
        %1134 = vadd.xlane.f32.xlu0 %v1133
        %v1135 = vpop.xlane.xlu0 %1134
        %v1136 = vsel %vm1061, %v1056, 0.0
        %v1137 = vadd.f32 %v1055, %v1136
        %1138 = vadd.xlane.f32.xlu0 %v1137
        %v1139 = vpop.xlane.xlu0 %1138
        %v1140 = vsel %vm1061, %v1058, 0.0
        %v1141 = vadd.f32 %v1057, %v1140
        %1142 = vadd.xlane.f32.xlu0 %v1141
        %v1143 = vpop.xlane.xlu0 %1142
        %v1144 = vsel %vm1061, %v1060, 0.0
        %v1145 = vadd.f32 %v1059, %v1144
        %1146 = vadd.xlane.f32.xlu0 %v1145
        %v1147 = vpop.xlane.xlu0 %1146
        %v1148 = vmax.f32 %v1135, 1e-09
        %v1149 = vmax.f32 %v1139, 1e-09
        %v1150 = vmax.f32 %v1143, 1e-09
        %v1151 = vmax.f32 %v1147, 1e-09
        %v1152 = vrcp.pop %v1148
        %v1153 = vmul.f32 %v1148, %v1152
        %v1154 = vsub.f32 1.0, %v1153
        %v1155 = vmul.f32 %v1152, %v1154
        %v1156 = vadd.f32 %v1152, %v1155
        %vm1157 = vweird.f32 %v1148
        %vm1158 = vweird.f32 %v1152
        %vm1159 = vmor %vm1157, %vm1158
        %v1160 = vsel %vm1159, %v1152, %v1156
        %v1161 = vand.u32 2147483647, %v1148
        %vm1162 = vcmp.eq.f32.partialorder %v1161, 8.507059e+37
        %v1163 = vand.u32 %v1148, 2147483648
        %v1164 = vor.u32 1.1754944e-38, %v1163
        %v1165 = vsel %vm1162, %v1164, %v1160
        %v1166 = vmul.f32 %v1121, %v1165
        %v1167 = vrcp.pop %v1149
        %v1168 = vmul.f32 %v1149, %v1167
        %v1169 = vsub.f32 1.0, %v1168
        %v1170 = vmul.f32 %v1167, %v1169
        %v1171 = vadd.f32 %v1167, %v1170
        %vm1172 = vweird.f32 %v1149
        %vm1173 = vweird.f32 %v1167
        %vm1174 = vmor %vm1172, %vm1173
        %v1175 = vsel %vm1174, %v1167, %v1171
        %v1176 = vand.u32 2147483647, %v1149
        %vm1177 = vcmp.eq.f32.partialorder %v1176, 8.507059e+37
        %v1178 = vand.u32 %v1149, 2147483648
        %v1179 = vor.u32 1.1754944e-38, %v1178
        %v1180 = vsel %vm1177, %v1179, %v1175
        %v1181 = vmul.f32 %v1124, %v1180
        %v1182 = vrcp.pop %v1150
        %v1183 = vmul.f32 %v1150, %v1182
        %v1184 = vsub.f32 1.0, %v1183
        %v1185 = vmul.f32 %v1182, %v1184
        %v1186 = vadd.f32 %v1182, %v1185
        %vm1187 = vweird.f32 %v1150
        %vm1188 = vweird.f32 %v1182
        %vm1189 = vmor %vm1187, %vm1188
        %v1190 = vsel %vm1189, %v1182, %v1186
        %v1191 = vand.u32 2147483647, %v1150
        %vm1192 = vcmp.eq.f32.partialorder %v1191, 8.507059e+37
        %v1193 = vand.u32 %v1150, 2147483648
        %v1194 = vor.u32 1.1754944e-38, %v1193
        %v1195 = vsel %vm1192, %v1194, %v1190
        %v1196 = vmul.f32 %v1127, %v1195
        %v1197 = vrcp.pop %v1151
        %v1198 = vmul.f32 %v1151, %v1197
        %v1199 = vsub.f32 1.0, %v1198
        %v1200 = vmul.f32 %v1197, %v1199
        %v1201 = vadd.f32 %v1197, %v1200
        %vm1202 = vweird.f32 %v1151
        %vm1203 = vweird.f32 %v1197
        %vm1204 = vmor %vm1202, %vm1203
        %v1205 = vsel %vm1204, %v1197, %v1201
        %v1206 = vand.u32 2147483647, %v1151
        %vm1207 = vcmp.eq.f32.partialorder %v1206, 8.507059e+37
        %v1208 = vand.u32 %v1151, 2147483648
        %v1209 = vor.u32 1.1754944e-38, %v1208
        %v1210 = vsel %vm1207, %v1209, %v1205
        %v1211 = vmul.f32 %v1130, %v1210
        %v1212 = vmul.f32 %v1166, %v1166
        %v1213 = vmul.f32 %v1181, %v1181
        %v1214 = vmul.f32 %v1196, %v1196
        %v1215 = vmul.f32 %v1211, %v1211
        %vm1216 = vcmask 261120
        %v1217 = vsel %vm1216, %v1212, 0.0
        %1218 = vadd.xlane.f32.xlu0 %v1217
        %v1219 = vpop.xlane.xlu0 %1218
        %v1220 = vsel %vm1216, %v1213, 0.0
        %1221 = vadd.xlane.f32.xlu0 %v1220
        %v1222 = vpop.xlane.xlu0 %1221
        %v1223 = vsel %vm1216, %v1214, 0.0
        %1224 = vadd.xlane.f32.xlu0 %v1223
        %v1225 = vpop.xlane.xlu0 %1224
        %v1226 = vsel %vm1216, %v1215, 0.0
        %1227 = vadd.xlane.f32.xlu0 %v1226
        %v1228 = vpop.xlane.xlu0 %1227
        %v1229 = vmax.f32 %v1219, 1e-24
        %v1230 = vmax.f32 %v1222, 1e-24
        %v1231 = vmax.f32 %v1225, 1e-24
        %v1232 = vmax.f32 %v1228, 1e-24
        %v1233 = vrsqrt.pop %v1229
        %v1234 = vmul.f32 %v1233, %v1229
        %v1235 = vmul.f32 %v1234, %v1233
        %v1236 = vmul.f32 0.5, %v1235
        %v1237 = vsub.f32 1.5, %v1236
        %v1238 = vmul.f32 %v1233, %v1237
        %vm1239 = vweird.f32 %v1229
        %vm1240 = vweird.f32 %v1233
        %vm1241 = vmor %vm1239, %vm1240
        %v1242 = vsel %vm1241, %v1233, %v1238
        %v1243 = vrsqrt.pop %v1230
        %v1244 = vmul.f32 %v1243, %v1230
        %v1245 = vmul.f32 %v1244, %v1243
        %v1246 = vmul.f32 0.5, %v1245
        %v1247 = vsub.f32 1.5, %v1246
        %v1248 = vmul.f32 %v1243, %v1247
        %vm1249 = vweird.f32 %v1230
        %vm1250 = vweird.f32 %v1243
        %vm1251 = vmor %vm1249, %vm1250
        %v1252 = vsel %vm1251, %v1243, %v1248
        %v1253 = vrsqrt.pop %v1231
        %v1254 = vmul.f32 %v1253, %v1231
        %v1255 = vmul.f32 %v1254, %v1253
        %v1256 = vmul.f32 0.5, %v1255
        %v1257 = vsub.f32 1.5, %v1256
        %v1258 = vmul.f32 %v1253, %v1257
        %vm1259 = vweird.f32 %v1231
        %vm1260 = vweird.f32 %v1253
        %vm1261 = vmor %vm1259, %vm1260
        %v1262 = vsel %vm1261, %v1253, %v1258
        %v1263 = vrsqrt.pop %v1232
        %v1264 = vmul.f32 %v1263, %v1232
        %v1265 = vmul.f32 %v1264, %v1263
        %v1266 = vmul.f32 0.5, %v1265
        %v1267 = vsub.f32 1.5, %v1266
        %v1268 = vmul.f32 %v1263, %v1267
        %vm1269 = vweird.f32 %v1232
        %vm1270 = vweird.f32 %v1263
        %vm1271 = vmor %vm1269, %vm1270
        %v1272 = vsel %vm1271, %v1263, %v1268
        %v1273 = vmul.f32 %v1166, %v1242
        %v1274 = vmul.f32 %v1181, %v1252
        %v1275 = vmul.f32 %v1196, %v1262
        %v1276 = vmul.f32 %v1211, %v1272
        %v1277 = vand.u32 %v1011, 7
        %v1278 = vand.u32 %v1012, 7
        %v1279 = vand.u32 %v1013, 7
        %v1280 = vand.u32 %v1014, 7
        %vm1281 = vcmp.eq.s32.totalorder %v1277, 0
        %vm1282 = vcmp.eq.s32.totalorder %v1278, 0
        %vm1283 = vcmp.eq.s32.totalorder %v1279, 0
        %vm1284 = vcmp.eq.s32.totalorder %v1280, 0
        %v1285 = vld [vmem:[%s4] sm:$0x1]
        %v1287 = vperm.slane %v1285, 0
        %v1289 = vsel %vm1281, %v1287, %v1273
        %v1290 = vsel %vm1282, %v1287, %v1274
        %v1291 = vsel %vm1283, %v1287, %v1275
        %v1292 = vsel %vm1284, %v1287, %v1276
        %v1293 = vand.u32 %v1011, 4294967288
        %v1294 = vand.u32 %v1012, 4294967288
        %v1295 = vand.u32 %v1013, 4294967288
        %v1296 = vand.u32 %v1014, 4294967288
        %v1297 = vand.u32 %v661, 4294967288
        %vm1298 = vcmp.eq.s32.totalorder %v1293, %v1297
        %vm1299 = vcmp.eq.s32.totalorder %v1294, %v1297
        %vm1300 = vcmp.eq.s32.totalorder %v1295, %v1297
        %vm1301 = vcmp.eq.s32.totalorder %v1296, %v1297
        %v1302 = vsel %vm1298, 0.0, -1e+09
        %v1303 = vsel %vm1299, 0.0, -1e+09
        %v1304 = vsel %vm1300, 0.0, -1e+09
        %v1305 = vsel %vm1301, 0.0, -1e+09
        %v1306 = vld [vmem:[%s658] sm:$0x1]
        %v1307 = vsub.f32 1.0, %v1306
        %v1308 = vmul.f32 %v1307, -1e+09
        %v1310 = vperm.slane %v1308, 0
        %v1312 = vadd.f32 %v1302, %v1310
        %v1313 = vadd.f32 %v1303, %v1310
        %v1314 = vadd.f32 %v1304, %v1310
        %v1315 = vadd.f32 %v1305, %v1310
        %v1316 = vld [vmem:[%s5] sm:$0x1]
        %v1317 = vld [vmem:[%s6] sm:$0x1]
        %v1318 = vsel %vm1216, %v1289, 0.0
        %1319 = vadd.xlane.f32.xlu0 %v1318
        %v1320 = vpop.xlane.xlu0 %1319
        %v1321 = vsel %vm1216, %v1290, 0.0
        %1322 = vadd.xlane.f32.xlu0 %v1321
        %v1323 = vpop.xlane.xlu0 %1322
        %v1324 = vsel %vm1216, %v1291, 0.0
        %1325 = vadd.xlane.f32.xlu0 %v1324
        %v1326 = vpop.xlane.xlu0 %1325
        %v1327 = vsel %vm1216, %v1292, 0.0
        %1328 = vadd.xlane.f32.xlu0 %v1327
        %v1329 = vpop.xlane.xlu0 %1328
        %v1330 = vrcp.pop 32.0
        %v1331 = vmul.f32 32.0, %v1330
        %v1332 = vsub.f32 1.0, %v1331
        %v1333 = vmul.f32 %v1330, %v1332
        %v1334 = vadd.f32 %v1330, %v1333
        %vm1335 = vweird.f32 %v1330
        %v1336 = vsel %vm1335, %v1330, %v1334
        %v1337 = vmul.f32 %v1320, %v1336
        %v1338 = vmul.f32 %v1323, %v1336
        %v1339 = vmul.f32 %v1326, %v1336
        %v1340 = vmul.f32 %v1329, %v1336
        %v1341 = vsub.f32 %v1289, %v1337
        %v1342 = vsub.f32 %v1290, %v1338
        %v1343 = vsub.f32 %v1291, %v1339
        %v1344 = vsub.f32 %v1292, %v1340
        %v1345 = vmul.f32 %v1341, %v1341
        %v1346 = vmul.f32 %v1342, %v1342
        %v1347 = vmul.f32 %v1343, %v1343
        %v1348 = vmul.f32 %v1344, %v1344
        %v1349 = vsel %vm1216, %v1345, 0.0
        %1350 = vadd.xlane.f32.xlu0 %v1349
        %v1351 = vpop.xlane.xlu0 %1350
        %v1352 = vsel %vm1216, %v1346, 0.0
        %1353 = vadd.xlane.f32.xlu0 %v1352
        %v1354 = vpop.xlane.xlu0 %1353
        %v1355 = vsel %vm1216, %v1347, 0.0
        %1356 = vadd.xlane.f32.xlu0 %v1355
        %v1357 = vpop.xlane.xlu0 %1356
        %v1358 = vsel %vm1216, %v1348, 0.0
        %1359 = vadd.xlane.f32.xlu0 %v1358
        %v1360 = vpop.xlane.xlu0 %1359
        %v1361 = vmul.f32 %v1351, %v1336
        %v1362 = vmul.f32 %v1354, %v1336
        %v1363 = vmul.f32 %v1357, %v1336
        %v1364 = vmul.f32 %v1360, %v1336
        %v1365 = vadd.f32 %v1361, 1e-05
        %v1366 = vadd.f32 %v1362, 1e-05
        %v1367 = vadd.f32 %v1363, 1e-05
        %v1368 = vadd.f32 %v1364, 1e-05
        %v1369 = vrsqrt.pop %v1365
        %v1370 = vmul.f32 %v1369, %v1365
        %v1371 = vmul.f32 %v1370, %v1369
        %v1372 = vmul.f32 0.5, %v1371
        %v1373 = vsub.f32 1.5, %v1372
        %v1374 = vmul.f32 %v1369, %v1373
        %vm1375 = vweird.f32 %v1365
        %vm1376 = vweird.f32 %v1369
        %vm1377 = vmor %vm1375, %vm1376
        %v1378 = vsel %vm1377, %v1369, %v1374
        %v1379 = vrsqrt.pop %v1366
        %v1380 = vmul.f32 %v1379, %v1366
        %v1381 = vmul.f32 %v1380, %v1379
        %v1382 = vmul.f32 0.5, %v1381
        %v1383 = vsub.f32 1.5, %v1382
        %v1384 = vmul.f32 %v1379, %v1383
        %vm1385 = vweird.f32 %v1366
        %vm1386 = vweird.f32 %v1379
        %vm1387 = vmor %vm1385, %vm1386
        %v1388 = vsel %vm1387, %v1379, %v1384
        %v1389 = vrsqrt.pop %v1367
        %v1390 = vmul.f32 %v1389, %v1367
        %v1391 = vmul.f32 %v1390, %v1389
        %v1392 = vmul.f32 0.5, %v1391
        %v1393 = vsub.f32 1.5, %v1392
        %v1394 = vmul.f32 %v1389, %v1393
        %vm1395 = vweird.f32 %v1367
        %vm1396 = vweird.f32 %v1389
        %vm1397 = vmor %vm1395, %vm1396
        %v1398 = vsel %vm1397, %v1389, %v1394
        %v1399 = vrsqrt.pop %v1368
        %v1400 = vmul.f32 %v1399, %v1368
        %v1401 = vmul.f32 %v1400, %v1399
        %v1402 = vmul.f32 0.5, %v1401
        %v1403 = vsub.f32 1.5, %v1402
        %v1404 = vmul.f32 %v1399, %v1403
        %vm1405 = vweird.f32 %v1368
        %vm1406 = vweird.f32 %v1399
        %vm1407 = vmor %vm1405, %vm1406
        %v1408 = vsel %vm1407, %v1399, %v1404
        %v1409 = vmul.f32 %v1341, %v1378
        %v1410 = vmul.f32 %v1342, %v1388
        %v1411 = vmul.f32 %v1343, %v1398
        %v1412 = vmul.f32 %v1344, %v1408
        %v1414 = vperm.slane %v1316, 0
        %v1416 = vmul.f32 %v1409, %v1414
        %v1417 = vmul.f32 %v1410, %v1414
        %v1418 = vmul.f32 %v1411, %v1414
        %v1419 = vmul.f32 %v1412, %v1414
        %v1421 = vperm.slane %v1317, 0
        %v1423 = vadd.f32 %v1416, %v1421
        %v1424 = vadd.f32 %v1417, %v1421
        %v1425 = vadd.f32 %v1418, %v1421
        %v1426 = vadd.f32 %v1419, %v1421
        %v1427 = vld [vmem:[%s7] sm:$0xf]
        %v1428 = vld [vmem:[%s7 + $0x4] sm:$0xf]
        %v1429 = vld [vmem:[%s7 + $0x8] sm:$0xf]
        %v1430 = vld [vmem:[%s7 + $0xc] sm:$0xf]
        %v1431 = vpack.c.bf16 %v1424, %v1423
        %v1432 = vpack.c.bf16 %v1426, %v1425
        %v1437 = vunpack.c.l.b16 %v1427
        %v1438 = vunpack.c.l.b16 %v1428
        %v1439 = vunpack.c.l.b16 %v1429
        %v1440 = vunpack.c.l.b16 %v1430
        %v1441 = vpack.c.b16 %v1438, %v1437
        %v1442 = vpack.c.b16 %v1440, %v1439
        %v1446 = vsel %vm1216, %v1431, 0
        %v1449 = vsel %vm1216, %v1432, 0
        %1451 = vmatpush.bf16.msra.mxu0 0
        %1452 = vmatpush.bf16.msra.mxu0 0
        %1453 = vmatpush.bf16.msra.mxu0 0
        %1454 = vmatpush.bf16.msra.mxu0 0
        %1455 = vmatpush.bf16.msra.mxu0 0
        %1456 = vmatpush.bf16.msra.mxu0 0
        %1457 = vmatpush.bf16.msra.mxu0 %v1442
        %1458 = vmatpush.bf16.msra.mxu0 %v1441
        %1459 = vmatmul.bf16.gmra.mxu0 %v1446
        %v1460 = vpop.f32.mrf.mxu0
        %v1461 = vadd.f32 0.0, %v1460
        %v1462 = vpop.f32.mrf.mxu0
        %v1463 = vadd.f32 0.0, %v1462
        %1464 = vmatmul.bf16.gmra.mxu0 %v1449
        %v1465 = vpop.f32.mrf.mxu0
        %v1466 = vadd.f32 0.0, %v1465
        %v1467 = vpop.f32.mrf.mxu0
        %v1468 = vadd.f32 0.0, %v1467
        %1469 = vdwg.mxu0
        %v1470 = vpack.c.bf16 %v1463, %v1461
        %v1471 = vpack.c.bf16 %v1468, %v1466
        %1474 = vrot.lane.b32.xlu0 %v1470, 96
        %v1475 = vpop.permute.xlu0 %1474
        %1476 = vrot.lane.b32.xlu0 %v1471, 96
        %v1477 = vpop.permute.xlu0 %1476
        %vm1478 = vcmask 130048
        %v1480 = vsel %vm1478, %v1470, 0
        %v1483 = vsel %vm1478, %v1471, 0
        %v1486 = vsel %vm1478, %v1475, 0
        %v1489 = vsel %vm1478, %v1477, 0
        %1491 = vmatpush.bf16.xpose.msra.mxu0 0
        %1492 = vmatpush.bf16.xpose.msra.mxu0 0
        %1493 = vmatpush.bf16.xpose.msra.mxu0 0
        %1494 = vmatpush.bf16.xpose.msra.mxu0 0
        %1495 = vmatpush.bf16.xpose.msra.mxu0 0
        %1496 = vmatpush.bf16.xpose.msra.mxu0 0
        %1497 = vmatpush.bf16.xpose.msra.mxu0 %v1489
        %1498 = vmatpush.bf16.xpose.msra.mxu0 %v1486
        %1499 = vmatmul.bf16.gmra.mxu0 %v1480
        %v1500 = vpop.f32.mrf.mxu0
        %v1501 = vadd.f32 0.0, %v1500
        %v1502 = vpop.f32.mrf.mxu0
        %v1503 = vadd.f32 0.0, %v1502
        %1504 = vmatmul.bf16.gmra.mxu0 %v1483
        %v1505 = vpop.f32.mrf.mxu0
        %v1506 = vadd.f32 0.0, %v1505
        %v1507 = vpop.f32.mrf.mxu0
        %v1508 = vadd.f32 0.0, %v1507
        %1509 = vdwg.mxu0
        %v1510 = vmul.f32 %v1501, 0.25
        %v1511 = vmul.f32 %v1503, 0.25
        %v1512 = vmul.f32 %v1506, 0.25
        %v1513 = vmul.f32 %v1508, 0.25
        %v1514 = vadd.f32 %v1510, %v1312
        %v1515 = vadd.f32 %v1511, %v1313
        %v1516 = vadd.f32 %v1512, %v1314
        %v1517 = vadd.f32 %v1513, %v1315
        %v1518 = vsel %vm1216, %v1514, -inf
        %1519 = vmax.xlane.f32.xlu0 %v1518
        %v1520 = vpop.xlane.xlu0 %1519
        %v1521 = vsel %vm1216, %v1515, -inf
        %1522 = vmax.xlane.f32.xlu0 %v1521
        %v1523 = vpop.xlane.xlu0 %1522
        %v1524 = vsel %vm1216, %v1516, -inf
        %1525 = vmax.xlane.f32.xlu0 %v1524
        %v1526 = vpop.xlane.xlu0 %1525
        %v1527 = vsel %vm1216, %v1517, -inf
        %1528 = vmax.xlane.f32.xlu0 %v1527
        %v1529 = vpop.xlane.xlu0 %1528
        %v1530 = vsub.f32 %v1514, %v1520
        %v1531 = vsub.f32 %v1515, %v1523
        %v1532 = vsub.f32 %v1516, %v1526
        %v1533 = vsub.f32 %v1517, %v1529
        %v1534 = vmul.f32 %v1530, 1.442695
        %v1535 = vpow.pop %v1534
        %v1536 = vmul.f32 %v1531, 1.442695
        %v1537 = vpow.pop %v1536
        %v1538 = vmul.f32 %v1532, 1.442695
        %v1539 = vpow.pop %v1538
        %v1540 = vmul.f32 %v1533, 1.442695
        %v1541 = vpow.pop %v1540
        %v1542 = vsel %vm1216, %v1535, 0.0
        %1543 = vadd.xlane.f32.xlu0 %v1542
        %v1544 = vpop.xlane.xlu0 %1543
        %v1545 = vsel %vm1216, %v1537, 0.0
        %1546 = vadd.xlane.f32.xlu0 %v1545
        %v1547 = vpop.xlane.xlu0 %1546
        %v1548 = vsel %vm1216, %v1539, 0.0
        %1549 = vadd.xlane.f32.xlu0 %v1548
        %v1550 = vpop.xlane.xlu0 %1549
        %v1551 = vsel %vm1216, %v1541, 0.0
        %1552 = vadd.xlane.f32.xlu0 %v1551
        %v1553 = vpop.xlane.xlu0 %1552
        %v1554 = vrcp.pop %v1544
        %v1555 = vrcp.pop %v1547
        %v1556 = vrcp.pop %v1550
        %v1557 = vrcp.pop %v1553
        %v1558 = vmul.f32 %v1535, %v1554
        %v1559 = vmul.f32 %v1537, %v1555
        %v1560 = vmul.f32 %v1539, %v1556
        %v1561 = vmul.f32 %v1541, %v1557
        %v1562 = vpack.c.bf16 %v1559, %v1558
        %v1563 = vpack.c.bf16 %v1561, %v1560
        %1564 = vrot.lane.b32.xlu0 %v1470, 64
        %v1565 = vpop.permute.xlu0 %1564
        %1566 = vrot.lane.b32.xlu0 %v1471, 64
        %v1567 = vpop.permute.xlu0 %1566
        %v1571 = vsel %vm1216, %v1562, 0
        %v1574 = vsel %vm1216, %v1563, 0
        %1576 = vmatpush.bf16.msra.mxu0 0
        %1577 = vmatpush.bf16.msra.mxu0 0
        %1578 = vmatpush.bf16.msra.mxu0 0
        %1579 = vmatpush.bf16.msra.mxu0 0
        %1580 = vmatpush.bf16.msra.mxu0 0
        %1581 = vmatpush.bf16.msra.mxu0 0
        %1582 = vmatpush.bf16.msra.mxu0 %v1567
        %1583 = vmatpush.bf16.msra.mxu0 %v1565
        %1584 = vmatmul.bf16.gmra.mxu0 %v1571
        %v1585 = vpop.f32.mrf.mxu0
        %v1586 = vadd.f32 0.0, %v1585
        %v1587 = vpop.f32.mrf.mxu0
        %v1588 = vadd.f32 0.0, %v1587
        %1589 = vmatmul.bf16.gmra.mxu0 %v1574
        %v1590 = vpop.f32.mrf.mxu0
        %v1591 = vadd.f32 0.0, %v1590
        %v1592 = vpop.f32.mrf.mxu0
        %v1593 = vadd.f32 0.0, %v1592
        %1594 = vdwg.mxu0
        %1595 = vrot.lane.b32.xlu0 %v1470, 112
        %v1596 = vpop.permute.xlu0 %1595
        %1597 = vrot.lane.b32.xlu0 %v1471, 112
        %v1598 = vpop.permute.xlu0 %1597
        %1599 = vrot.lane.b32.xlu0 %v1470, 80
        %v1600 = vpop.permute.xlu0 %1599
        %1601 = vrot.lane.b32.xlu0 %v1471, 80
        %v1602 = vpop.permute.xlu0 %1601
        %v1604 = vsel %vm1478, %v1596, 0
        %v1607 = vsel %vm1478, %v1598, 0
        %v1610 = vsel %vm1478, %v1600, 0
        %v1613 = vsel %vm1478, %v1602, 0
        %1615 = vmatpush.bf16.xpose.msra.mxu0 0
        %1616 = vmatpush.bf16.xpose.msra.mxu0 0
        %1617 = vmatpush.bf16.xpose.msra.mxu0 0
        %1618 = vmatpush.bf16.xpose.msra.mxu0 0
        %1619 = vmatpush.bf16.xpose.msra.mxu0 0
        %1620 = vmatpush.bf16.xpose.msra.mxu0 0
        %1621 = vmatpush.bf16.xpose.msra.mxu0 %v1613
        %1622 = vmatpush.bf16.xpose.msra.mxu0 %v1610
        %1623 = vmatmul.bf16.gmra.mxu0 %v1604
        %v1624 = vpop.f32.mrf.mxu0
        %v1625 = vadd.f32 0.0, %v1624
        %v1626 = vpop.f32.mrf.mxu0
        %v1627 = vadd.f32 0.0, %v1626
        %1628 = vmatmul.bf16.gmra.mxu0 %v1607
        %v1629 = vpop.f32.mrf.mxu0
        %v1630 = vadd.f32 0.0, %v1629
        %v1631 = vpop.f32.mrf.mxu0
        %v1632 = vadd.f32 0.0, %v1631
        %1633 = vdwg.mxu0
        %v1634 = vmul.f32 %v1625, 0.25
        %v1635 = vmul.f32 %v1627, 0.25
        %v1636 = vmul.f32 %v1630, 0.25
        %v1637 = vmul.f32 %v1632, 0.25
        %v1638 = vadd.f32 %v1634, %v1312
        %v1639 = vadd.f32 %v1635, %v1313
        %v1640 = vadd.f32 %v1636, %v1314
        %v1641 = vadd.f32 %v1637, %v1315
        %v1642 = vsel %vm1216, %v1638, -inf
        %1643 = vmax.xlane.f32.xlu0 %v1642
        %v1644 = vpop.xlane.xlu0 %1643
        %v1645 = vsel %vm1216, %v1639, -inf
        %1646 = vmax.xlane.f32.xlu0 %v1645
        %v1647 = vpop.xlane.xlu0 %1646
        %v1648 = vsel %vm1216, %v1640, -inf
        %1649 = vmax.xlane.f32.xlu0 %v1648
        %v1650 = vpop.xlane.xlu0 %1649
        %v1651 = vsel %vm1216, %v1641, -inf
        %1652 = vmax.xlane.f32.xlu0 %v1651
        %v1653 = vpop.xlane.xlu0 %1652
        %v1654 = vsub.f32 %v1638, %v1644
        %v1655 = vsub.f32 %v1639, %v1647
        %v1656 = vsub.f32 %v1640, %v1650
        %v1657 = vsub.f32 %v1641, %v1653
        %v1658 = vmul.f32 %v1654, 1.442695
        %v1659 = vpow.pop %v1658
        %v1660 = vmul.f32 %v1655, 1.442695
        %v1661 = vpow.pop %v1660
        %v1662 = vmul.f32 %v1656, 1.442695
        %v1663 = vpow.pop %v1662
        %v1664 = vmul.f32 %v1657, 1.442695
        %v1665 = vpow.pop %v1664
        %v1666 = vsel %vm1216, %v1659, 0.0
        %1667 = vadd.xlane.f32.xlu0 %v1666
        %v1668 = vpop.xlane.xlu0 %1667
        %v1669 = vsel %vm1216, %v1661, 0.0
        %1670 = vadd.xlane.f32.xlu0 %v1669
        %v1671 = vpop.xlane.xlu0 %1670
        %v1672 = vsel %vm1216, %v1663, 0.0
        %1673 = vadd.xlane.f32.xlu0 %v1672
        %v1674 = vpop.xlane.xlu0 %1673
        %v1675 = vsel %vm1216, %v1665, 0.0
        %1676 = vadd.xlane.f32.xlu0 %v1675
        %v1677 = vpop.xlane.xlu0 %1676
        %v1678 = vrcp.pop %v1668
        %v1679 = vrcp.pop %v1671
        %v1680 = vrcp.pop %v1674
        %v1681 = vrcp.pop %v1677
        %v1682 = vmul.f32 %v1659, %v1678
        %v1683 = vmul.f32 %v1661, %v1679
        %v1684 = vmul.f32 %v1663, %v1680
        %v1685 = vmul.f32 %v1665, %v1681
        %v1686 = vpack.c.bf16 %v1683, %v1682
        %v1687 = vpack.c.bf16 %v1685, %v1684
        %1688 = vrot.lane.b32.xlu0 %v1470, 48
        %v1689 = vpop.permute.xlu0 %1688
        %1690 = vrot.lane.b32.xlu0 %v1471, 48
        %v1691 = vpop.permute.xlu0 %1690
        %v1695 = vsel %vm1216, %v1686, 0
        %v1698 = vsel %vm1216, %v1687, 0
        %1700 = vmatpush.bf16.msra.mxu0 0
        %1701 = vmatpush.bf16.msra.mxu0 0
        %1702 = vmatpush.bf16.msra.mxu0 0
        %1703 = vmatpush.bf16.msra.mxu0 0
        %1704 = vmatpush.bf16.msra.mxu0 0
        %1705 = vmatpush.bf16.msra.mxu0 0
        %1706 = vmatpush.bf16.msra.mxu0 %v1691
        %1707 = vmatpush.bf16.msra.mxu0 %v1689
        %1708 = vmatmul.bf16.gmra.mxu0 %v1695
        %v1709 = vpop.f32.mrf.mxu0
        %v1710 = vadd.f32 0.0, %v1709
        %v1711 = vpop.f32.mrf.mxu0
        %v1712 = vadd.f32 0.0, %v1711
        %1713 = vmatmul.bf16.gmra.mxu0 %v1698
        %v1714 = vpop.f32.mrf.mxu0
        %v1715 = vadd.f32 0.0, %v1714
        %v1716 = vpop.f32.mrf.mxu0
        %v1717 = vadd.f32 0.0, %v1716
        %1718 = vdwg.mxu0
        %1723 = vrot.lane.b32.xlu0 %v1710, 16
        %v1724 = vpop.permute.xlu0 %1723
        %1725 = vrot.lane.b32.xlu0 %v1712, 16
        %v1726 = vpop.permute.xlu0 %1725
        %1727 = vrot.lane.b32.xlu0 %v1715, 16
        %v1728 = vpop.permute.xlu0 %1727
        %1729 = vrot.lane.b32.xlu0 %v1717, 16
        %v1730 = vpop.permute.xlu0 %1729
        %v1735 = vsel %vm1478, %v1586, %v1724
        %v1736 = vsel %vm1478, %v1588, %v1726
        %v1737 = vsel %vm1478, %v1591, %v1728
        %v1738 = vsel %vm1478, %v1593, %v1730
        %v1739 = vld [vmem:[%s8] sm:$0xf]
        %v1740 = vld [vmem:[%s8 + $0x4] sm:$0xf]
        %v1741 = vld [vmem:[%s8 + $0x8] sm:$0xf]
        %v1742 = vld [vmem:[%s8 + $0xc] sm:$0xf]
        %v1743 = vpack.c.bf16 %v1736, %v1735
        %v1744 = vpack.c.bf16 %v1738, %v1737
        %v1749 = vunpack.c.l.b16 %v1739
        %v1750 = vunpack.c.l.b16 %v1740
        %v1751 = vunpack.c.l.b16 %v1741
        %v1752 = vunpack.c.l.b16 %v1742
        %v1753 = vpack.c.b16 %v1750, %v1749
        %v1754 = vpack.c.b16 %v1752, %v1751
        %v1758 = vsel %vm1216, %v1743, 0
        %v1761 = vsel %vm1216, %v1744, 0
        %1763 = vmatpush.bf16.msra.mxu0 0
        %1764 = vmatpush.bf16.msra.mxu0 0
        %1765 = vmatpush.bf16.msra.mxu0 0
        %1766 = vmatpush.bf16.msra.mxu0 0
        %1767 = vmatpush.bf16.msra.mxu0 0
        %1768 = vmatpush.bf16.msra.mxu0 0
        %1769 = vmatpush.bf16.msra.mxu0 %v1754
        %1770 = vmatpush.bf16.msra.mxu0 %v1753
        %1771 = vmatmul.bf16.gmra.mxu0 %v1758
        %v1772 = vpop.f32.mrf.mxu0
        %v1773 = vadd.f32 0.0, %v1772
        %v1774 = vpop.f32.mrf.mxu0
        %v1775 = vadd.f32 0.0, %v1774
        %1776 = vmatmul.bf16.gmra.mxu0 %v1761
        %v1777 = vpop.f32.mrf.mxu0
        %v1778 = vadd.f32 0.0, %v1777
        %v1779 = vpop.f32.mrf.mxu0
        %v1780 = vadd.f32 0.0, %v1779
        %1781 = vdwg.mxu0
        %v1782 = vadd.f32 %v1289, %v1773
        %v1783 = vadd.f32 %v1290, %v1775
        %v1784 = vadd.f32 %v1291, %v1778
        %v1785 = vadd.f32 %v1292, %v1780
        %v1786 = vld [vmem:[%s9] sm:$0x1]
        %v1788 = vperm.slane %v1786, 0
        %v1790 = vadd.f32 %v1782, %v1788
        %v1791 = vadd.f32 %v1783, %v1788
        %v1792 = vadd.f32 %v1784, %v1788
        %v1793 = vadd.f32 %v1785, %v1788
        %v1794 = vld [vmem:[%s10] sm:$0x1]
        %v1795 = vld [vmem:[%s11] sm:$0x1]
        %v1796 = vsel %vm1216, %v1790, 0.0
        %1797 = vadd.xlane.f32.xlu0 %v1796
        %v1798 = vpop.xlane.xlu0 %1797
        %v1799 = vsel %vm1216, %v1791, 0.0
        %1800 = vadd.xlane.f32.xlu0 %v1799
        %v1801 = vpop.xlane.xlu0 %1800
        %v1802 = vsel %vm1216, %v1792, 0.0
        %1803 = vadd.xlane.f32.xlu0 %v1802
        %v1804 = vpop.xlane.xlu0 %1803
        %v1805 = vsel %vm1216, %v1793, 0.0
        %1806 = vadd.xlane.f32.xlu0 %v1805
        %v1807 = vpop.xlane.xlu0 %1806
        %v1808 = vmul.f32 %v1798, %v1336
        %v1809 = vmul.f32 %v1801, %v1336
        %v1810 = vmul.f32 %v1804, %v1336
        %v1811 = vmul.f32 %v1807, %v1336
        %v1812 = vsub.f32 %v1790, %v1808
        %v1813 = vsub.f32 %v1791, %v1809
        %v1814 = vsub.f32 %v1792, %v1810
        %v1815 = vsub.f32 %v1793, %v1811
        %v1816 = vmul.f32 %v1812, %v1812
        %v1817 = vmul.f32 %v1813, %v1813
        %v1818 = vmul.f32 %v1814, %v1814
        %v1819 = vmul.f32 %v1815, %v1815
        %v1820 = vsel %vm1216, %v1816, 0.0
        %1821 = vadd.xlane.f32.xlu0 %v1820
        %v1822 = vpop.xlane.xlu0 %1821
        %v1823 = vsel %vm1216, %v1817, 0.0
        %1824 = vadd.xlane.f32.xlu0 %v1823
        %v1825 = vpop.xlane.xlu0 %1824
        %v1826 = vsel %vm1216, %v1818, 0.0
        %1827 = vadd.xlane.f32.xlu0 %v1826
        %v1828 = vpop.xlane.xlu0 %1827
        %v1829 = vsel %vm1216, %v1819, 0.0
        %1830 = vadd.xlane.f32.xlu0 %v1829
        %v1831 = vpop.xlane.xlu0 %1830
        %v1832 = vmul.f32 %v1822, %v1336
        %v1833 = vmul.f32 %v1825, %v1336
        %v1834 = vmul.f32 %v1828, %v1336
        %v1835 = vmul.f32 %v1831, %v1336
        %v1836 = vadd.f32 %v1832, 1e-05
        %v1837 = vadd.f32 %v1833, 1e-05
        %v1838 = vadd.f32 %v1834, 1e-05
        %v1839 = vadd.f32 %v1835, 1e-05
        %v1840 = vrsqrt.pop %v1836
        %v1841 = vmul.f32 %v1840, %v1836
        %v1842 = vmul.f32 %v1841, %v1840
        %v1843 = vmul.f32 0.5, %v1842
        %v1844 = vsub.f32 1.5, %v1843
        %v1845 = vmul.f32 %v1840, %v1844
        %vm1846 = vweird.f32 %v1836
        %vm1847 = vweird.f32 %v1840
        %vm1848 = vmor %vm1846, %vm1847
        %v1849 = vsel %vm1848, %v1840, %v1845
        %v1850 = vrsqrt.pop %v1837
        %v1851 = vmul.f32 %v1850, %v1837
        %v1852 = vmul.f32 %v1851, %v1850
        %v1853 = vmul.f32 0.5, %v1852
        %v1854 = vsub.f32 1.5, %v1853
        %v1855 = vmul.f32 %v1850, %v1854
        %vm1856 = vweird.f32 %v1837
        %vm1857 = vweird.f32 %v1850
        %vm1858 = vmor %vm1856, %vm1857
        %v1859 = vsel %vm1858, %v1850, %v1855
        %v1860 = vrsqrt.pop %v1838
        %v1861 = vmul.f32 %v1860, %v1838
        %v1862 = vmul.f32 %v1861, %v1860
        %v1863 = vmul.f32 0.5, %v1862
        %v1864 = vsub.f32 1.5, %v1863
        %v1865 = vmul.f32 %v1860, %v1864
        %vm1866 = vweird.f32 %v1838
        %vm1867 = vweird.f32 %v1860
        %vm1868 = vmor %vm1866, %vm1867
        %v1869 = vsel %vm1868, %v1860, %v1865
        %v1870 = vrsqrt.pop %v1839
        %v1871 = vmul.f32 %v1870, %v1839
        %v1872 = vmul.f32 %v1871, %v1870
        %v1873 = vmul.f32 0.5, %v1872
        %v1874 = vsub.f32 1.5, %v1873
        %v1875 = vmul.f32 %v1870, %v1874
        %vm1876 = vweird.f32 %v1839
        %vm1877 = vweird.f32 %v1870
        %vm1878 = vmor %vm1876, %vm1877
        %v1879 = vsel %vm1878, %v1870, %v1875
        %v1880 = vmul.f32 %v1812, %v1849
        %v1881 = vmul.f32 %v1813, %v1859
        %v1882 = vmul.f32 %v1814, %v1869
        %v1883 = vmul.f32 %v1815, %v1879
        %v1885 = vperm.slane %v1794, 0
        %v1887 = vmul.f32 %v1880, %v1885
        %v1888 = vmul.f32 %v1881, %v1885
        %v1889 = vmul.f32 %v1882, %v1885
        %v1890 = vmul.f32 %v1883, %v1885
        %v1892 = vperm.slane %v1795, 0
        %v1894 = vadd.f32 %v1887, %v1892
        %v1895 = vadd.f32 %v1888, %v1892
        %v1896 = vadd.f32 %v1889, %v1892
        %v1897 = vadd.f32 %v1890, %v1892
        %v1898 = vld [vmem:[%s12] sm:$0xf]
        %v1899 = vld [vmem:[%s12 + $0x4] sm:$0xf]
        %v1900 = vld [vmem:[%s12 + $0x8] sm:$0xf]
        %v1901 = vld [vmem:[%s12 + $0xc] sm:$0xf]
        %v1902 = vpack.c.bf16 %v1895, %v1894
        %v1903 = vpack.c.bf16 %v1897, %v1896
        %v1904 = vld [vmem:[%s13] sm:$0x1]
        %v1906 = vperm.slane %v1904, 0
        %v1912 = vunpack.c.l.b16 %v1898
        %v1913 = vunpack.c.l.b16 %v1899
        %v1914 = vunpack.c.l.b16 %v1900
        %v1915 = vunpack.c.l.b16 %v1901
        %v1916 = vpack.c.b16 %v1913, %v1912
        %v1917 = vpack.c.b16 %v1915, %v1914
        %v1921 = vsel %vm1216, %v1902, 0
        %v1924 = vsel %vm1216, %v1903, 0
        %1926 = vmatpush.bf16.msra.mxu0 0
        %1927 = vmatpush.bf16.msra.mxu0 0
        %1928 = vmatpush.bf16.msra.mxu0 0
        %1929 = vmatpush.bf16.msra.mxu0 0
        %1930 = vmatpush.bf16.msra.mxu0 0
        %1931 = vmatpush.bf16.msra.mxu0 0
        %1932 = vmatpush.bf16.msra.mxu0 %v1917
        %1933 = vmatpush.bf16.msra.mxu0 %v1916
        %1934 = vmatmul.bf16.gmra.mxu0 %v1921
        %v1935 = vpop.f32.mrf.mxu0
        %v1936 = vadd.f32 %v1906, %v1935
        %v1937 = vpop.f32.mrf.mxu0
        %v1938 = vadd.f32 %v1906, %v1937
        %1939 = vmatmul.bf16.gmra.mxu0 %v1924
        %v1940 = vpop.f32.mrf.mxu0
        %v1941 = vadd.f32 %v1906, %v1940
        %v1942 = vpop.f32.mrf.mxu0
        %v1943 = vadd.f32 %v1906, %v1942
        %1944 = vdwg.mxu0
        %v1945 = vmul.f32 %v1936, %v1936
        %v1946 = vmul.f32 %v1938, %v1938
        %v1947 = vmul.f32 %v1941, %v1941
        %v1948 = vmul.f32 %v1943, %v1943
        %v1949 = vmul.f32 %v1936, %v1945
        %v1950 = vmul.f32 %v1938, %v1946
        %v1951 = vmul.f32 %v1941, %v1947
        %v1952 = vmul.f32 %v1943, %v1948
        %v1953 = vmul.f32 %v1949, 0.044715
        %v1954 = vmul.f32 %v1950, 0.044715
        %v1955 = vmul.f32 %v1951, 0.044715
        %v1956 = vmul.f32 %v1952, 0.044715
        %v1957 = vadd.f32 %v1936, %v1953
        %v1958 = vadd.f32 %v1938, %v1954
        %v1959 = vadd.f32 %v1941, %v1955
        %v1960 = vadd.f32 %v1943, %v1956
        %v1961 = vmul.f32 %v1957, 0.7978846
        %v1962 = vmul.f32 %v1958, 0.7978846
        %v1963 = vmul.f32 %v1959, 0.7978846
        %v1964 = vmul.f32 %v1960, 0.7978846
        %v1965 = vtanh.pop %v1961
        %v1966 = vtanh.pop %v1962
        %v1967 = vtanh.pop %v1963
        %v1968 = vtanh.pop %v1964
        %v1969 = vadd.f32 %v1965, 1.0
        %v1970 = vadd.f32 %v1966, 1.0
        %v1971 = vadd.f32 %v1967, 1.0
        %v1972 = vadd.f32 %v1968, 1.0
        %v1973 = vmul.f32 %v1969, 0.5
        %v1974 = vmul.f32 %v1970, 0.5
        %v1975 = vmul.f32 %v1971, 0.5
        %v1976 = vmul.f32 %v1972, 0.5
        %v1977 = vmul.f32 %v1936, %v1973
        %v1978 = vmul.f32 %v1938, %v1974
        %v1979 = vmul.f32 %v1941, %v1975
        %v1980 = vmul.f32 %v1943, %v1976
        %v1981 = vld [vmem:[%s14] sm:$0xf]
        %v1982 = vld [vmem:[%s14 + $0x4] sm:$0xf]
        %v1983 = vld [vmem:[%s14 + $0x8] sm:$0xf]
        %v1984 = vld [vmem:[%s14 + $0xc] sm:$0xf]
        %v1985 = vld [vmem:[%s14 + $0x10] sm:$0xf]
        %v1986 = vld [vmem:[%s14 + $0x14] sm:$0xf]
        %v1987 = vld [vmem:[%s14 + $0x18] sm:$0xf]
        %v1988 = vld [vmem:[%s14 + $0x1c] sm:$0xf]
        %v1989 = vld [vmem:[%s14 + $0x20] sm:$0xf]
        %v1990 = vld [vmem:[%s14 + $0x24] sm:$0xf]
        %v1991 = vld [vmem:[%s14 + $0x28] sm:$0xf]
        %v1992 = vld [vmem:[%s14 + $0x2c] sm:$0xf]
        %v1993 = vld [vmem:[%s14 + $0x30] sm:$0xf]
        %v1994 = vld [vmem:[%s14 + $0x34] sm:$0xf]
        %v1995 = vld [vmem:[%s14 + $0x38] sm:$0xf]
        %v1996 = vld [vmem:[%s14 + $0x3c] sm:$0xf]
        %v1997 = vpack.c.bf16 %v1978, %v1977
        %v1998 = vpack.c.bf16 %v1980, %v1979
        %v2015 = vunpack.c.l.b16 %v1981
        %v2016 = vunpack.c.l.b16 %v1982
        %v2017 = vunpack.c.l.b16 %v1983
        %v2018 = vunpack.c.l.b16 %v1984
        %v2019 = vunpack.c.l.b16 %v1985
        %v2020 = vunpack.c.l.b16 %v1986
        %v2021 = vunpack.c.l.b16 %v1987
        %v2022 = vunpack.c.l.b16 %v1988
        %v2023 = vunpack.c.l.b16 %v1989
        %v2024 = vunpack.c.l.b16 %v1990
        %v2025 = vunpack.c.l.b16 %v1991
        %v2026 = vunpack.c.l.b16 %v1992
        %v2027 = vunpack.c.l.b16 %v1993
        %v2028 = vunpack.c.l.b16 %v1994
        %v2029 = vunpack.c.l.b16 %v1995
        %v2030 = vunpack.c.l.b16 %v1996
        %v2031 = vpack.c.b16 %v2016, %v2015
        %v2032 = vpack.c.b16 %v2018, %v2017
        %v2033 = vpack.c.b16 %v2020, %v2019
        %v2034 = vpack.c.b16 %v2022, %v2021
        %v2035 = vpack.c.b16 %v2024, %v2023
        %v2036 = vpack.c.b16 %v2026, %v2025
        %v2037 = vpack.c.b16 %v2028, %v2027
        %v2038 = vpack.c.b16 %v2030, %v2029
        %2047 = vmatpush.bf16.msra.mxu0 %v2038
        %2048 = vmatpush.bf16.msra.mxu0 %v2037
        %2049 = vmatpush.bf16.msra.mxu0 %v2036
        %2050 = vmatpush.bf16.msra.mxu0 %v2035
        %2051 = vmatpush.bf16.msra.mxu0 %v2034
        %2052 = vmatpush.bf16.msra.mxu0 %v2033
        %2053 = vmatpush.bf16.msra.mxu0 %v2032
        %2054 = vmatpush.bf16.msra.mxu0 %v2031
        %2055 = vmatmul.bf16.gmra.mxu0 %v1997
        %v2056 = vpop.f32.mrf.mxu0
        %v2057 = vadd.f32 0.0, %v2056
        %v2058 = vpop.f32.mrf.mxu0
        %v2059 = vadd.f32 0.0, %v2058
        %2060 = vmatmul.bf16.gmra.mxu0 %v1998
        %v2061 = vpop.f32.mrf.mxu0
        %v2062 = vadd.f32 0.0, %v2061
        %v2063 = vpop.f32.mrf.mxu0
        %v2064 = vadd.f32 0.0, %v2063
        %2065 = vdwg.mxu0
        %v2066 = vadd.f32 %v1790, %v2057
        %v2067 = vadd.f32 %v1791, %v2059
        %v2068 = vadd.f32 %v1792, %v2062
        %v2069 = vadd.f32 %v1793, %v2064
        %v2070 = vld [vmem:[%s15] sm:$0x1]
        %v2072 = vperm.slane %v2070, 0
        %v2074 = vadd.f32 %v2066, %v2072
        %v2075 = vadd.f32 %v2067, %v2072
        %v2076 = vadd.f32 %v2068, %v2072
        %v2077 = vadd.f32 %v2069, %v2072
        %s2078 = scalar_lea.vmem %s5, 1
        %v2079 = vld [vmem:[%s2078] sm:$0x1]
        %s2080 = scalar_lea.vmem %s6, 1
        %v2081 = vld [vmem:[%s2080] sm:$0x1]
        %v2082 = vsel %vm1216, %v2074, 0.0
        %2083 = vadd.xlane.f32.xlu0 %v2082
        %v2084 = vpop.xlane.xlu0 %2083
        %v2085 = vsel %vm1216, %v2075, 0.0
        %2086 = vadd.xlane.f32.xlu0 %v2085
        %v2087 = vpop.xlane.xlu0 %2086
        %v2088 = vsel %vm1216, %v2076, 0.0
        %2089 = vadd.xlane.f32.xlu0 %v2088
        %v2090 = vpop.xlane.xlu0 %2089
        %v2091 = vsel %vm1216, %v2077, 0.0
        %2092 = vadd.xlane.f32.xlu0 %v2091
        %v2093 = vpop.xlane.xlu0 %2092
        %v2094 = vmul.f32 %v2084, %v1336
        %v2095 = vmul.f32 %v2087, %v1336
        %v2096 = vmul.f32 %v2090, %v1336
        %v2097 = vmul.f32 %v2093, %v1336
        %v2098 = vsub.f32 %v2074, %v2094
        %v2099 = vsub.f32 %v2075, %v2095
        %v2100 = vsub.f32 %v2076, %v2096
        %v2101 = vsub.f32 %v2077, %v2097
        %v2102 = vmul.f32 %v2098, %v2098
        %v2103 = vmul.f32 %v2099, %v2099
        %v2104 = vmul.f32 %v2100, %v2100
        %v2105 = vmul.f32 %v2101, %v2101
        %v2106 = vsel %vm1216, %v2102, 0.0
        %2107 = vadd.xlane.f32.xlu0 %v2106
        %v2108 = vpop.xlane.xlu0 %2107
        %v2109 = vsel %vm1216, %v2103, 0.0
        %2110 = vadd.xlane.f32.xlu0 %v2109
        %v2111 = vpop.xlane.xlu0 %2110
        %v2112 = vsel %vm1216, %v2104, 0.0
        %2113 = vadd.xlane.f32.xlu0 %v2112
        %v2114 = vpop.xlane.xlu0 %2113
        %v2115 = vsel %vm1216, %v2105, 0.0
        %2116 = vadd.xlane.f32.xlu0 %v2115
        %v2117 = vpop.xlane.xlu0 %2116
        %v2118 = vmul.f32 %v2108, %v1336
        %v2119 = vmul.f32 %v2111, %v1336
        %v2120 = vmul.f32 %v2114, %v1336
        %v2121 = vmul.f32 %v2117, %v1336
        %v2122 = vadd.f32 %v2118, 1e-05
        %v2123 = vadd.f32 %v2119, 1e-05
        %v2124 = vadd.f32 %v2120, 1e-05
        %v2125 = vadd.f32 %v2121, 1e-05
        %v2126 = vrsqrt.pop %v2122
        %v2127 = vmul.f32 %v2126, %v2122
        %v2128 = vmul.f32 %v2127, %v2126
        %v2129 = vmul.f32 0.5, %v2128
        %v2130 = vsub.f32 1.5, %v2129
        %v2131 = vmul.f32 %v2126, %v2130
        %vm2132 = vweird.f32 %v2122
        %vm2133 = vweird.f32 %v2126
        %vm2134 = vmor %vm2132, %vm2133
        %v2135 = vsel %vm2134, %v2126, %v2131
        %v2136 = vrsqrt.pop %v2123
        %v2137 = vmul.f32 %v2136, %v2123
        %v2138 = vmul.f32 %v2137, %v2136
        %v2139 = vmul.f32 0.5, %v2138
        %v2140 = vsub.f32 1.5, %v2139
        %v2141 = vmul.f32 %v2136, %v2140
        %vm2142 = vweird.f32 %v2123
        %vm2143 = vweird.f32 %v2136
        %vm2144 = vmor %vm2142, %vm2143
        %v2145 = vsel %vm2144, %v2136, %v2141
        %v2146 = vrsqrt.pop %v2124
        %v2147 = vmul.f32 %v2146, %v2124
        %v2148 = vmul.f32 %v2147, %v2146
        %v2149 = vmul.f32 0.5, %v2148
        %v2150 = vsub.f32 1.5, %v2149
        %v2151 = vmul.f32 %v2146, %v2150
        %vm2152 = vweird.f32 %v2124
        %vm2153 = vweird.f32 %v2146
        %vm2154 = vmor %vm2152, %vm2153
        %v2155 = vsel %vm2154, %v2146, %v2151
        %v2156 = vrsqrt.pop %v2125
        %v2157 = vmul.f32 %v2156, %v2125
        %v2158 = vmul.f32 %v2157, %v2156
        %v2159 = vmul.f32 0.5, %v2158
        %v2160 = vsub.f32 1.5, %v2159
        %v2161 = vmul.f32 %v2156, %v2160
        %vm2162 = vweird.f32 %v2125
        %vm2163 = vweird.f32 %v2156
        %vm2164 = vmor %vm2162, %vm2163
        %v2165 = vsel %vm2164, %v2156, %v2161
        %v2166 = vmul.f32 %v2098, %v2135
        %v2167 = vmul.f32 %v2099, %v2145
        %v2168 = vmul.f32 %v2100, %v2155
        %v2169 = vmul.f32 %v2101, %v2165
        %v2171 = vperm.slane %v2079, 0
        %v2173 = vmul.f32 %v2166, %v2171
        %v2174 = vmul.f32 %v2167, %v2171
        %v2175 = vmul.f32 %v2168, %v2171
        %v2176 = vmul.f32 %v2169, %v2171
        %v2178 = vperm.slane %v2081, 0
        %v2180 = vadd.f32 %v2173, %v2178
        %v2181 = vadd.f32 %v2174, %v2178
        %v2182 = vadd.f32 %v2175, %v2178
        %v2183 = vadd.f32 %v2176, %v2178
        %s2184 = scalar_lea.vmem %s7, 16
        %v2185 = vld [vmem:[%s2184] sm:$0xf]
        %v2186 = vld [vmem:[%s2184 + $0x4] sm:$0xf]
        %v2187 = vld [vmem:[%s2184 + $0x8] sm:$0xf]
        %v2188 = vld [vmem:[%s2184 + $0xc] sm:$0xf]
        %v2189 = vpack.c.bf16 %v2181, %v2180
        %v2190 = vpack.c.bf16 %v2183, %v2182
        %v2195 = vunpack.c.l.b16 %v2185
        %v2196 = vunpack.c.l.b16 %v2186
        %v2197 = vunpack.c.l.b16 %v2187
        %v2198 = vunpack.c.l.b16 %v2188
        %v2199 = vpack.c.b16 %v2196, %v2195
        %v2200 = vpack.c.b16 %v2198, %v2197
        %v2204 = vsel %vm1216, %v2189, 0
        %v2207 = vsel %vm1216, %v2190, 0
        %2209 = vmatpush.bf16.msra.mxu0 0
        %2210 = vmatpush.bf16.msra.mxu0 0
        %2211 = vmatpush.bf16.msra.mxu0 0
        %2212 = vmatpush.bf16.msra.mxu0 0
        %2213 = vmatpush.bf16.msra.mxu0 0
        %2214 = vmatpush.bf16.msra.mxu0 0
        %2215 = vmatpush.bf16.msra.mxu0 %v2200
        %2216 = vmatpush.bf16.msra.mxu0 %v2199
        %2217 = vmatmul.bf16.gmra.mxu0 %v2204
        %v2218 = vpop.f32.mrf.mxu0
        %v2219 = vadd.f32 0.0, %v2218
        %v2220 = vpop.f32.mrf.mxu0
        %v2221 = vadd.f32 0.0, %v2220
        %2222 = vmatmul.bf16.gmra.mxu0 %v2207
        %v2223 = vpop.f32.mrf.mxu0
        %v2224 = vadd.f32 0.0, %v2223
        %v2225 = vpop.f32.mrf.mxu0
        %v2226 = vadd.f32 0.0, %v2225
        %2227 = vdwg.mxu0
        %v2228 = vpack.c.bf16 %v2221, %v2219
        %v2229 = vpack.c.bf16 %v2226, %v2224
        %2232 = vrot.lane.b32.xlu0 %v2228, 96
        %v2233 = vpop.permute.xlu0 %2232
        %2234 = vrot.lane.b32.xlu0 %v2229, 96
        %v2235 = vpop.permute.xlu0 %2234
        %v2237 = vsel %vm1478, %v2228, 0
        %v2240 = vsel %vm1478, %v2229, 0
        %v2243 = vsel %vm1478, %v2233, 0
        %v2246 = vsel %vm1478, %v2235, 0
        %2248 = vmatpush.bf16.xpose.msra.mxu0 0
        %2249 = vmatpush.bf16.xpose.msra.mxu0 0
        %2250 = vmatpush.bf16.xpose.msra.mxu0 0
        %2251 = vmatpush.bf16.xpose.msra.mxu0 0
        %2252 = vmatpush.bf16.xpose.msra.mxu0 0
        %2253 = vmatpush.bf16.xpose.msra.mxu0 0
        %2254 = vmatpush.bf16.xpose.msra.mxu0 %v2246
        %2255 = vmatpush.bf16.xpose.msra.mxu0 %v2243
        %2256 = vmatmul.bf16.gmra.mxu0 %v2237
        %v2257 = vpop.f32.mrf.mxu0
        %v2258 = vadd.f32 0.0, %v2257
        %v2259 = vpop.f32.mrf.mxu0
        %v2260 = vadd.f32 0.0, %v2259
        %2261 = vmatmul.bf16.gmra.mxu0 %v2240
        %v2262 = vpop.f32.mrf.mxu0
        %v2263 = vadd.f32 0.0, %v2262
        %v2264 = vpop.f32.mrf.mxu0
        %v2265 = vadd.f32 0.0, %v2264
        %2266 = vdwg.mxu0
        %v2267 = vmul.f32 %v2258, 0.25
        %v2268 = vmul.f32 %v2260, 0.25
        %v2269 = vmul.f32 %v2263, 0.25
        %v2270 = vmul.f32 %v2265, 0.25
        %v2271 = vadd.f32 %v2267, %v1312
        %v2272 = vadd.f32 %v2268, %v1313
        %v2273 = vadd.f32 %v2269, %v1314
        %v2274 = vadd.f32 %v2270, %v1315
        %v2275 = vsel %vm1216, %v2271, -inf
        %2276 = vmax.xlane.f32.xlu0 %v2275
        %v2277 = vpop.xlane.xlu0 %2276
        %v2278 = vsel %vm1216, %v2272, -inf
        %2279 = vmax.xlane.f32.xlu0 %v2278
        %v2280 = vpop.xlane.xlu0 %2279
        %v2281 = vsel %vm1216, %v2273, -inf
        %2282 = vmax.xlane.f32.xlu0 %v2281
        %v2283 = vpop.xlane.xlu0 %2282
        %v2284 = vsel %vm1216, %v2274, -inf
        %2285 = vmax.xlane.f32.xlu0 %v2284
        %v2286 = vpop.xlane.xlu0 %2285
        %v2287 = vsub.f32 %v2271, %v2277
        %v2288 = vsub.f32 %v2272, %v2280
        %v2289 = vsub.f32 %v2273, %v2283
        %v2290 = vsub.f32 %v2274, %v2286
        %v2291 = vmul.f32 %v2287, 1.442695
        %v2292 = vpow.pop %v2291
        %v2293 = vmul.f32 %v2288, 1.442695
        %v2294 = vpow.pop %v2293
        %v2295 = vmul.f32 %v2289, 1.442695
        %v2296 = vpow.pop %v2295
        %v2297 = vmul.f32 %v2290, 1.442695
        %v2298 = vpow.pop %v2297
        %v2299 = vsel %vm1216, %v2292, 0.0
        %2300 = vadd.xlane.f32.xlu0 %v2299
        %v2301 = vpop.xlane.xlu0 %2300
        %v2302 = vsel %vm1216, %v2294, 0.0
        %2303 = vadd.xlane.f32.xlu0 %v2302
        %v2304 = vpop.xlane.xlu0 %2303
        %v2305 = vsel %vm1216, %v2296, 0.0
        %2306 = vadd.xlane.f32.xlu0 %v2305
        %v2307 = vpop.xlane.xlu0 %2306
        %v2308 = vsel %vm1216, %v2298, 0.0
        %2309 = vadd.xlane.f32.xlu0 %v2308
        %v2310 = vpop.xlane.xlu0 %2309
        %v2311 = vrcp.pop %v2301
        %v2312 = vrcp.pop %v2304
        %v2313 = vrcp.pop %v2307
        %v2314 = vrcp.pop %v2310
        %v2315 = vmul.f32 %v2292, %v2311
        %v2316 = vmul.f32 %v2294, %v2312
        %v2317 = vmul.f32 %v2296, %v2313
        %v2318 = vmul.f32 %v2298, %v2314
        %v2319 = vpack.c.bf16 %v2316, %v2315
        %v2320 = vpack.c.bf16 %v2318, %v2317
        %2321 = vrot.lane.b32.xlu0 %v2228, 64
        %v2322 = vpop.permute.xlu0 %2321
        %2323 = vrot.lane.b32.xlu0 %v2229, 64
        %v2324 = vpop.permute.xlu0 %2323
        %v2328 = vsel %vm1216, %v2319, 0
        %v2331 = vsel %vm1216, %v2320, 0
        %2333 = vmatpush.bf16.msra.mxu0 0
        %2334 = vmatpush.bf16.msra.mxu0 0
        %2335 = vmatpush.bf16.msra.mxu0 0
        %2336 = vmatpush.bf16.msra.mxu0 0
        %2337 = vmatpush.bf16.msra.mxu0 0
        %2338 = vmatpush.bf16.msra.mxu0 0
        %2339 = vmatpush.bf16.msra.mxu0 %v2324
        %2340 = vmatpush.bf16.msra.mxu0 %v2322
        %2341 = vmatmul.bf16.gmra.mxu0 %v2328
        %v2342 = vpop.f32.mrf.mxu0
        %v2343 = vadd.f32 0.0, %v2342
        %v2344 = vpop.f32.mrf.mxu0
        %v2345 = vadd.f32 0.0, %v2344
        %2346 = vmatmul.bf16.gmra.mxu0 %v2331
        %v2347 = vpop.f32.mrf.mxu0
        %v2348 = vadd.f32 0.0, %v2347
        %v2349 = vpop.f32.mrf.mxu0
        %v2350 = vadd.f32 0.0, %v2349
        %2351 = vdwg.mxu0
        %2352 = vrot.lane.b32.xlu0 %v2228, 112
        %v2353 = vpop.permute.xlu0 %2352
        %2354 = vrot.lane.b32.xlu0 %v2229, 112
        %v2355 = vpop.permute.xlu0 %2354
        %2356 = vrot.lane.b32.xlu0 %v2228, 80
        %v2357 = vpop.permute.xlu0 %2356
        %2358 = vrot.lane.b32.xlu0 %v2229, 80
        %v2359 = vpop.permute.xlu0 %2358
        %v2361 = vsel %vm1478, %v2353, 0
        %v2364 = vsel %vm1478, %v2355, 0
        %v2367 = vsel %vm1478, %v2357, 0
        %v2370 = vsel %vm1478, %v2359, 0
        %2372 = vmatpush.bf16.xpose.msra.mxu0 0
        %2373 = vmatpush.bf16.xpose.msra.mxu0 0
        %2374 = vmatpush.bf16.xpose.msra.mxu0 0
        %2375 = vmatpush.bf16.xpose.msra.mxu0 0
        %2376 = vmatpush.bf16.xpose.msra.mxu0 0
        %2377 = vmatpush.bf16.xpose.msra.mxu0 0
        %2378 = vmatpush.bf16.xpose.msra.mxu0 %v2370
        %2379 = vmatpush.bf16.xpose.msra.mxu0 %v2367
        %2380 = vmatmul.bf16.gmra.mxu0 %v2361
        %v2381 = vpop.f32.mrf.mxu0
        %v2382 = vadd.f32 0.0, %v2381
        %v2383 = vpop.f32.mrf.mxu0
        %v2384 = vadd.f32 0.0, %v2383
        %2385 = vmatmul.bf16.gmra.mxu0 %v2364
        %v2386 = vpop.f32.mrf.mxu0
        %v2387 = vadd.f32 0.0, %v2386
        %v2388 = vpop.f32.mrf.mxu0
        %v2389 = vadd.f32 0.0, %v2388
        %2390 = vdwg.mxu0
        %v2391 = vmul.f32 %v2382, 0.25
        %v2392 = vmul.f32 %v2384, 0.25
        %v2393 = vmul.f32 %v2387, 0.25
        %v2394 = vmul.f32 %v2389, 0.25
        %v2395 = vadd.f32 %v2391, %v1312
        %v2396 = vadd.f32 %v2392, %v1313
        %v2397 = vadd.f32 %v2393, %v1314
        %v2398 = vadd.f32 %v2394, %v1315
        %v2399 = vsel %vm1216, %v2395, -inf
        %2400 = vmax.xlane.f32.xlu0 %v2399
        %v2401 = vpop.xlane.xlu0 %2400
        %v2402 = vsel %vm1216, %v2396, -inf
        %2403 = vmax.xlane.f32.xlu0 %v2402
        %v2404 = vpop.xlane.xlu0 %2403
        %v2405 = vsel %vm1216, %v2397, -inf
        %2406 = vmax.xlane.f32.xlu0 %v2405
        %v2407 = vpop.xlane.xlu0 %2406
        %v2408 = vsel %vm1216, %v2398, -inf
        %2409 = vmax.xlane.f32.xlu0 %v2408
        %v2410 = vpop.xlane.xlu0 %2409
        %v2411 = vsub.f32 %v2395, %v2401
        %v2412 = vsub.f32 %v2396, %v2404
        %v2413 = vsub.f32 %v2397, %v2407
        %v2414 = vsub.f32 %v2398, %v2410
        %v2415 = vmul.f32 %v2411, 1.442695
        %v2416 = vpow.pop %v2415
        %v2417 = vmul.f32 %v2412, 1.442695
        %v2418 = vpow.pop %v2417
        %v2419 = vmul.f32 %v2413, 1.442695
        %v2420 = vpow.pop %v2419
        %v2421 = vmul.f32 %v2414, 1.442695
        %v2422 = vpow.pop %v2421
        %v2423 = vsel %vm1216, %v2416, 0.0
        %2424 = vadd.xlane.f32.xlu0 %v2423
        %v2425 = vpop.xlane.xlu0 %2424
        %v2426 = vsel %vm1216, %v2418, 0.0
        %2427 = vadd.xlane.f32.xlu0 %v2426
        %v2428 = vpop.xlane.xlu0 %2427
        %v2429 = vsel %vm1216, %v2420, 0.0
        %2430 = vadd.xlane.f32.xlu0 %v2429
        %v2431 = vpop.xlane.xlu0 %2430
        %v2432 = vsel %vm1216, %v2422, 0.0
        %2433 = vadd.xlane.f32.xlu0 %v2432
        %v2434 = vpop.xlane.xlu0 %2433
        %v2435 = vrcp.pop %v2425
        %v2436 = vrcp.pop %v2428
        %v2437 = vrcp.pop %v2431
        %v2438 = vrcp.pop %v2434
        %v2439 = vmul.f32 %v2416, %v2435
        %v2440 = vmul.f32 %v2418, %v2436
        %v2441 = vmul.f32 %v2420, %v2437
        %v2442 = vmul.f32 %v2422, %v2438
        %v2443 = vpack.c.bf16 %v2440, %v2439
        %v2444 = vpack.c.bf16 %v2442, %v2441
        %2445 = vrot.lane.b32.xlu0 %v2228, 48
        %v2446 = vpop.permute.xlu0 %2445
        %2447 = vrot.lane.b32.xlu0 %v2229, 48
        %v2448 = vpop.permute.xlu0 %2447
        %v2452 = vsel %vm1216, %v2443, 0
        %v2455 = vsel %vm1216, %v2444, 0
        %2457 = vmatpush.bf16.msra.mxu0 0
        %2458 = vmatpush.bf16.msra.mxu0 0
        %2459 = vmatpush.bf16.msra.mxu0 0
        %2460 = vmatpush.bf16.msra.mxu0 0
        %2461 = vmatpush.bf16.msra.mxu0 0
        %2462 = vmatpush.bf16.msra.mxu0 0
        %2463 = vmatpush.bf16.msra.mxu0 %v2448
        %2464 = vmatpush.bf16.msra.mxu0 %v2446
        %2465 = vmatmul.bf16.gmra.mxu0 %v2452
        %v2466 = vpop.f32.mrf.mxu0
        %v2467 = vadd.f32 0.0, %v2466
        %v2468 = vpop.f32.mrf.mxu0
        %v2469 = vadd.f32 0.0, %v2468
        %2470 = vmatmul.bf16.gmra.mxu0 %v2455
        %v2471 = vpop.f32.mrf.mxu0
        %v2472 = vadd.f32 0.0, %v2471
        %v2473 = vpop.f32.mrf.mxu0
        %v2474 = vadd.f32 0.0, %v2473
        %2475 = vdwg.mxu0
        %2480 = vrot.lane.b32.xlu0 %v2467, 16
        %v2481 = vpop.permute.xlu0 %2480
        %2482 = vrot.lane.b32.xlu0 %v2469, 16
        %v2483 = vpop.permute.xlu0 %2482
        %2484 = vrot.lane.b32.xlu0 %v2472, 16
        %v2485 = vpop.permute.xlu0 %2484
        %2486 = vrot.lane.b32.xlu0 %v2474, 16
        %v2487 = vpop.permute.xlu0 %2486
        %v2492 = vsel %vm1478, %v2343, %v2481
        %v2493 = vsel %vm1478, %v2345, %v2483
        %v2494 = vsel %vm1478, %v2348, %v2485
        %v2495 = vsel %vm1478, %v2350, %v2487
        %s2496 = scalar_lea.vmem %s8, 16
        %v2497 = vld [vmem:[%s2496] sm:$0xf]
        %v2498 = vld [vmem:[%s2496 + $0x4] sm:$0xf]
        %v2499 = vld [vmem:[%s2496 + $0x8] sm:$0xf]
        %v2500 = vld [vmem:[%s2496 + $0xc] sm:$0xf]
        %v2501 = vpack.c.bf16 %v2493, %v2492
        %v2502 = vpack.c.bf16 %v2495, %v2494
        %v2507 = vunpack.c.l.b16 %v2497
        %v2508 = vunpack.c.l.b16 %v2498
        %v2509 = vunpack.c.l.b16 %v2499
        %v2510 = vunpack.c.l.b16 %v2500
        %v2511 = vpack.c.b16 %v2508, %v2507
        %v2512 = vpack.c.b16 %v2510, %v2509
        %v2516 = vsel %vm1216, %v2501, 0
        %v2519 = vsel %vm1216, %v2502, 0
        %2521 = vmatpush.bf16.msra.mxu0 0
        %2522 = vmatpush.bf16.msra.mxu0 0
        %2523 = vmatpush.bf16.msra.mxu0 0
        %2524 = vmatpush.bf16.msra.mxu0 0
        %2525 = vmatpush.bf16.msra.mxu0 0
        %2526 = vmatpush.bf16.msra.mxu0 0
        %2527 = vmatpush.bf16.msra.mxu0 %v2512
        %2528 = vmatpush.bf16.msra.mxu0 %v2511
        %2529 = vmatmul.bf16.gmra.mxu0 %v2516
        %v2530 = vpop.f32.mrf.mxu0
        %v2531 = vadd.f32 0.0, %v2530
        %v2532 = vpop.f32.mrf.mxu0
        %v2533 = vadd.f32 0.0, %v2532
        %2534 = vmatmul.bf16.gmra.mxu0 %v2519
        %v2535 = vpop.f32.mrf.mxu0
        %v2536 = vadd.f32 0.0, %v2535
        %v2537 = vpop.f32.mrf.mxu0
        %v2538 = vadd.f32 0.0, %v2537
        %2539 = vdwg.mxu0
        %v2540 = vadd.f32 %v2074, %v2531
        %v2541 = vadd.f32 %v2075, %v2533
        %v2542 = vadd.f32 %v2076, %v2536
        %v2543 = vadd.f32 %v2077, %v2538
        %s2544 = scalar_lea.vmem %s9, 1
        %v2545 = vld [vmem:[%s2544] sm:$0x1]
        %v2547 = vperm.slane %v2545, 0
        %v2549 = vadd.f32 %v2540, %v2547
        %v2550 = vadd.f32 %v2541, %v2547
        %v2551 = vadd.f32 %v2542, %v2547
        %v2552 = vadd.f32 %v2543, %v2547
        %s2553 = scalar_lea.vmem %s10, 1
        %v2554 = vld [vmem:[%s2553] sm:$0x1]
        %s2555 = scalar_lea.vmem %s11, 1
        %v2556 = vld [vmem:[%s2555] sm:$0x1]
        %v2557 = vsel %vm1216, %v2549, 0.0
        %2558 = vadd.xlane.f32.xlu0 %v2557
        %v2559 = vpop.xlane.xlu0 %2558
        %v2560 = vsel %vm1216, %v2550, 0.0
        %2561 = vadd.xlane.f32.xlu0 %v2560
        %v2562 = vpop.xlane.xlu0 %2561
        %v2563 = vsel %vm1216, %v2551, 0.0
        %2564 = vadd.xlane.f32.xlu0 %v2563
        %v2565 = vpop.xlane.xlu0 %2564
        %v2566 = vsel %vm1216, %v2552, 0.0
        %2567 = vadd.xlane.f32.xlu0 %v2566
        %v2568 = vpop.xlane.xlu0 %2567
        %v2569 = vmul.f32 %v2559, %v1336
        %v2570 = vmul.f32 %v2562, %v1336
        %v2571 = vmul.f32 %v2565, %v1336
        %v2572 = vmul.f32 %v2568, %v1336
        %v2573 = vsub.f32 %v2549, %v2569
        %v2574 = vsub.f32 %v2550, %v2570
        %v2575 = vsub.f32 %v2551, %v2571
        %v2576 = vsub.f32 %v2552, %v2572
        %v2577 = vmul.f32 %v2573, %v2573
        %v2578 = vmul.f32 %v2574, %v2574
        %v2579 = vmul.f32 %v2575, %v2575
        %v2580 = vmul.f32 %v2576, %v2576
        %v2581 = vsel %vm1216, %v2577, 0.0
        %2582 = vadd.xlane.f32.xlu0 %v2581
        %v2583 = vpop.xlane.xlu0 %2582
        %v2584 = vsel %vm1216, %v2578, 0.0
        %2585 = vadd.xlane.f32.xlu0 %v2584
        %v2586 = vpop.xlane.xlu0 %2585
        %v2587 = vsel %vm1216, %v2579, 0.0
        %2588 = vadd.xlane.f32.xlu0 %v2587
        %v2589 = vpop.xlane.xlu0 %2588
        %v2590 = vsel %vm1216, %v2580, 0.0
        %2591 = vadd.xlane.f32.xlu0 %v2590
        %v2592 = vpop.xlane.xlu0 %2591
        %v2593 = vmul.f32 %v2583, %v1336
        %v2594 = vmul.f32 %v2586, %v1336
        %v2595 = vmul.f32 %v2589, %v1336
        %v2596 = vmul.f32 %v2592, %v1336
        %v2597 = vadd.f32 %v2593, 1e-05
        %v2598 = vadd.f32 %v2594, 1e-05
        %v2599 = vadd.f32 %v2595, 1e-05
        %v2600 = vadd.f32 %v2596, 1e-05
        %v2601 = vrsqrt.pop %v2597
        %v2602 = vmul.f32 %v2601, %v2597
        %v2603 = vmul.f32 %v2602, %v2601
        %v2604 = vmul.f32 0.5, %v2603
        %v2605 = vsub.f32 1.5, %v2604
        %v2606 = vmul.f32 %v2601, %v2605
        %vm2607 = vweird.f32 %v2597
        %vm2608 = vweird.f32 %v2601
        %vm2609 = vmor %vm2607, %vm2608
        %v2610 = vsel %vm2609, %v2601, %v2606
        %v2611 = vrsqrt.pop %v2598
        %v2612 = vmul.f32 %v2611, %v2598
        %v2613 = vmul.f32 %v2612, %v2611
        %v2614 = vmul.f32 0.5, %v2613
        %v2615 = vsub.f32 1.5, %v2614
        %v2616 = vmul.f32 %v2611, %v2615
        %vm2617 = vweird.f32 %v2598
        %vm2618 = vweird.f32 %v2611
        %vm2619 = vmor %vm2617, %vm2618
        %v2620 = vsel %vm2619, %v2611, %v2616
        %v2621 = vrsqrt.pop %v2599
        %v2622 = vmul.f32 %v2621, %v2599
        %v2623 = vmul.f32 %v2622, %v2621
        %v2624 = vmul.f32 0.5, %v2623
        %v2625 = vsub.f32 1.5, %v2624
        %v2626 = vmul.f32 %v2621, %v2625
        %vm2627 = vweird.f32 %v2599
        %vm2628 = vweird.f32 %v2621
        %vm2629 = vmor %vm2627, %vm2628
        %v2630 = vsel %vm2629, %v2621, %v2626
        %v2631 = vrsqrt.pop %v2600
        %v2632 = vmul.f32 %v2631, %v2600
        %v2633 = vmul.f32 %v2632, %v2631
        %v2634 = vmul.f32 0.5, %v2633
        %v2635 = vsub.f32 1.5, %v2634
        %v2636 = vmul.f32 %v2631, %v2635
        %vm2637 = vweird.f32 %v2600
        %vm2638 = vweird.f32 %v2631
        %vm2639 = vmor %vm2637, %vm2638
        %v2640 = vsel %vm2639, %v2631, %v2636
        %v2641 = vmul.f32 %v2573, %v2610
        %v2642 = vmul.f32 %v2574, %v2620
        %v2643 = vmul.f32 %v2575, %v2630
        %v2644 = vmul.f32 %v2576, %v2640
        %v2646 = vperm.slane %v2554, 0
        %v2648 = vmul.f32 %v2641, %v2646
        %v2649 = vmul.f32 %v2642, %v2646
        %v2650 = vmul.f32 %v2643, %v2646
        %v2651 = vmul.f32 %v2644, %v2646
        %v2653 = vperm.slane %v2556, 0
        %v2655 = vadd.f32 %v2648, %v2653
        %v2656 = vadd.f32 %v2649, %v2653
        %v2657 = vadd.f32 %v2650, %v2653
        %v2658 = vadd.f32 %v2651, %v2653
        %s2659 = scalar_lea.vmem %s12, 16
        %v2660 = vld [vmem:[%s2659] sm:$0xf]
        %v2661 = vld [vmem:[%s2659 + $0x4] sm:$0xf]
        %v2662 = vld [vmem:[%s2659 + $0x8] sm:$0xf]
        %v2663 = vld [vmem:[%s2659 + $0xc] sm:$0xf]
        %v2664 = vpack.c.bf16 %v2656, %v2655
        %v2665 = vpack.c.bf16 %v2658, %v2657
        %s2666 = scalar_lea.vmem %s13, 1
        %v2667 = vld [vmem:[%s2666] sm:$0x1]
        %v2669 = vperm.slane %v2667, 0
        %v2675 = vunpack.c.l.b16 %v2660
        %v2676 = vunpack.c.l.b16 %v2661
        %v2677 = vunpack.c.l.b16 %v2662
        %v2678 = vunpack.c.l.b16 %v2663
        %v2679 = vpack.c.b16 %v2676, %v2675
        %v2680 = vpack.c.b16 %v2678, %v2677
        %v2684 = vsel %vm1216, %v2664, 0
        %v2687 = vsel %vm1216, %v2665, 0
        %2689 = vmatpush.bf16.msra.mxu0 0
        %2690 = vmatpush.bf16.msra.mxu0 0
        %2691 = vmatpush.bf16.msra.mxu0 0
        %2692 = vmatpush.bf16.msra.mxu0 0
        %2693 = vmatpush.bf16.msra.mxu0 0
        %2694 = vmatpush.bf16.msra.mxu0 0
        %2695 = vmatpush.bf16.msra.mxu0 %v2680
        %2696 = vmatpush.bf16.msra.mxu0 %v2679
        %2697 = vmatmul.bf16.gmra.mxu0 %v2684
        %v2698 = vpop.f32.mrf.mxu0
        %v2699 = vadd.f32 %v2669, %v2698
        %v2700 = vpop.f32.mrf.mxu0
        %v2701 = vadd.f32 %v2669, %v2700
        %2702 = vmatmul.bf16.gmra.mxu0 %v2687
        %v2703 = vpop.f32.mrf.mxu0
        %v2704 = vadd.f32 %v2669, %v2703
        %v2705 = vpop.f32.mrf.mxu0
        %v2706 = vadd.f32 %v2669, %v2705
        %2707 = vdwg.mxu0
        %v2708 = vmul.f32 %v2699, %v2699
        %v2709 = vmul.f32 %v2701, %v2701
        %v2710 = vmul.f32 %v2704, %v2704
        %v2711 = vmul.f32 %v2706, %v2706
        %v2712 = vmul.f32 %v2699, %v2708
        %v2713 = vmul.f32 %v2701, %v2709
        %v2714 = vmul.f32 %v2704, %v2710
        %v2715 = vmul.f32 %v2706, %v2711
        %v2716 = vmul.f32 %v2712, 0.044715
        %v2717 = vmul.f32 %v2713, 0.044715
        %v2718 = vmul.f32 %v2714, 0.044715
        %v2719 = vmul.f32 %v2715, 0.044715
        %v2720 = vadd.f32 %v2699, %v2716
        %v2721 = vadd.f32 %v2701, %v2717
        %v2722 = vadd.f32 %v2704, %v2718
        %v2723 = vadd.f32 %v2706, %v2719
        %v2724 = vmul.f32 %v2720, 0.7978846
        %v2725 = vmul.f32 %v2721, 0.7978846
        %v2726 = vmul.f32 %v2722, 0.7978846
        %v2727 = vmul.f32 %v2723, 0.7978846
        %v2728 = vtanh.pop %v2724
        %v2729 = vtanh.pop %v2725
        %v2730 = vtanh.pop %v2726
        %v2731 = vtanh.pop %v2727
        %v2732 = vadd.f32 %v2728, 1.0
        %v2733 = vadd.f32 %v2729, 1.0
        %v2734 = vadd.f32 %v2730, 1.0
        %v2735 = vadd.f32 %v2731, 1.0
        %v2736 = vmul.f32 %v2732, 0.5
        %v2737 = vmul.f32 %v2733, 0.5
        %v2738 = vmul.f32 %v2734, 0.5
        %v2739 = vmul.f32 %v2735, 0.5
        %v2740 = vmul.f32 %v2699, %v2736
        %v2741 = vmul.f32 %v2701, %v2737
        %v2742 = vmul.f32 %v2704, %v2738
        %v2743 = vmul.f32 %v2706, %v2739
        %s2744 = scalar_lea.vmem %s14, 64
        %v2745 = vld [vmem:[%s2744] sm:$0xf]
        %v2746 = vld [vmem:[%s2744 + $0x4] sm:$0xf]
        %v2747 = vld [vmem:[%s2744 + $0x8] sm:$0xf]
        %v2748 = vld [vmem:[%s2744 + $0xc] sm:$0xf]
        %v2749 = vld [vmem:[%s2744 + $0x10] sm:$0xf]
        %v2750 = vld [vmem:[%s2744 + $0x14] sm:$0xf]
        %v2751 = vld [vmem:[%s2744 + $0x18] sm:$0xf]
        %v2752 = vld [vmem:[%s2744 + $0x1c] sm:$0xf]
        %v2753 = vld [vmem:[%s2744 + $0x20] sm:$0xf]
        %v2754 = vld [vmem:[%s2744 + $0x24] sm:$0xf]
        %v2755 = vld [vmem:[%s2744 + $0x28] sm:$0xf]
        %v2756 = vld [vmem:[%s2744 + $0x2c] sm:$0xf]
        %v2757 = vld [vmem:[%s2744 + $0x30] sm:$0xf]
        %v2758 = vld [vmem:[%s2744 + $0x34] sm:$0xf]
        %v2759 = vld [vmem:[%s2744 + $0x38] sm:$0xf]
        %v2760 = vld [vmem:[%s2744 + $0x3c] sm:$0xf]
        %v2761 = vpack.c.bf16 %v2741, %v2740
        %v2762 = vpack.c.bf16 %v2743, %v2742
        %v2779 = vunpack.c.l.b16 %v2745
        %v2780 = vunpack.c.l.b16 %v2746
        %v2781 = vunpack.c.l.b16 %v2747
        %v2782 = vunpack.c.l.b16 %v2748
        %v2783 = vunpack.c.l.b16 %v2749
        %v2784 = vunpack.c.l.b16 %v2750
        %v2785 = vunpack.c.l.b16 %v2751
        %v2786 = vunpack.c.l.b16 %v2752
        %v2787 = vunpack.c.l.b16 %v2753
        %v2788 = vunpack.c.l.b16 %v2754
        %v2789 = vunpack.c.l.b16 %v2755
        %v2790 = vunpack.c.l.b16 %v2756
        %v2791 = vunpack.c.l.b16 %v2757
        %v2792 = vunpack.c.l.b16 %v2758
        %v2793 = vunpack.c.l.b16 %v2759
        %v2794 = vunpack.c.l.b16 %v2760
        %v2795 = vpack.c.b16 %v2780, %v2779
        %v2796 = vpack.c.b16 %v2782, %v2781
        %v2797 = vpack.c.b16 %v2784, %v2783
        %v2798 = vpack.c.b16 %v2786, %v2785
        %v2799 = vpack.c.b16 %v2788, %v2787
        %v2800 = vpack.c.b16 %v2790, %v2789
        %v2801 = vpack.c.b16 %v2792, %v2791
        %v2802 = vpack.c.b16 %v2794, %v2793
        %2811 = vmatpush.bf16.msra.mxu0 %v2802
        %2812 = vmatpush.bf16.msra.mxu0 %v2801
        %2813 = vmatpush.bf16.msra.mxu0 %v2800
        %2814 = vmatpush.bf16.msra.mxu0 %v2799
        %2815 = vmatpush.bf16.msra.mxu0 %v2798
        %2816 = vmatpush.bf16.msra.mxu0 %v2797
        %2817 = vmatpush.bf16.msra.mxu0 %v2796
        %2818 = vmatpush.bf16.msra.mxu0 %v2795
        %2819 = vmatmul.bf16.gmra.mxu0 %v2761
        %v2820 = vpop.f32.mrf.mxu0
        %v2821 = vadd.f32 0.0, %v2820
        %v2822 = vpop.f32.mrf.mxu0
        %v2823 = vadd.f32 0.0, %v2822
        %2824 = vmatmul.bf16.gmra.mxu0 %v2762
        %v2825 = vpop.f32.mrf.mxu0
        %v2826 = vadd.f32 0.0, %v2825
        %v2827 = vpop.f32.mrf.mxu0
        %v2828 = vadd.f32 0.0, %v2827
        %2829 = vdwg.mxu0
        %v2830 = vadd.f32 %v2549, %v2821
        %v2831 = vadd.f32 %v2550, %v2823
        %v2832 = vadd.f32 %v2551, %v2826
        %v2833 = vadd.f32 %v2552, %v2828
        %s2834 = scalar_lea.vmem %s15, 1
        %v2835 = vld [vmem:[%s2834] sm:$0x1]
        %v2837 = vperm.slane %v2835, 0
        %v2839 = vadd.f32 %v2830, %v2837
        %v2840 = vadd.f32 %v2831, %v2837
        %v2841 = vadd.f32 %v2832, %v2837
        %v2842 = vadd.f32 %v2833, %v2837
        %v2843 = vmul.u32 %v1011, 8
        %vm2844 = vcmp.eq.s32.totalorder %v661, %v2843
        %v2845 = vsel %vm2844, 1, 0
        %v2846 = vcvt.s32.f32 %v2845
        %v2848 = vsel %vm1216, %v2846, 0
        %2850 = vmatpush.msra.mxu0 0.0
        %2851 = vmatpush.msra.mxu0 0.0
        %2852 = vmatpush.msra.mxu0 0.0
        %2853 = vmatpush.msra.mxu0 0.0
        %2854 = vmatpush.msra.mxu0 0.0
        %2855 = vmatpush.msra.mxu0 0.0
        %2856 = vmatpush.msra.mxu0 0.0
        %2857 = vmatpush.msra.mxu0 0.0
        %2858 = vmatpush.msra.mxu0 0.0
        %2859 = vmatpush.msra.mxu0 0.0
        %2860 = vmatpush.msra.mxu0 0.0
        %2861 = vmatpush.msra.mxu0 0.0
        %2862 = vmatpush.msra.mxu0 %v2842
        %2863 = vmatpush.msra.mxu0 %v2841
        %2864 = vmatpush.msra.mxu0 %v2840
        %2865 = vmatpush.msra.mxu0 %v2839
        %2866 = vmatmul.f32.gmra.mxu0 %v2848
        %v2867 = vpop.f32.mrf.mxu0
        %v2868 = vadd.f32 0.0, %v2867
        %2869 = vdwg.mxu0
        %v2870 = vld [vmem:[%s16] sm:$0xf]
        %v2871 = vld [vmem:[%s16 + $0x4] sm:$0xf]
        %v2872 = vld [vmem:[%s16 + $0x8] sm:$0xf]
        %v2873 = vld [vmem:[%s16 + $0xc] sm:$0xf]
        %v2874 = vpack.c.bf16 %v2868, %v2868
        %v2875 = vld [vmem:[%s17] sm:$0x1]
        %v2877 = vperm.slane %v2875, 0
        %v2883 = vunpack.c.l.b16 %v2870
        %v2884 = vunpack.c.l.b16 %v2871
        %v2885 = vunpack.c.l.b16 %v2872
        %v2886 = vunpack.c.l.b16 %v2873
        %v2887 = vpack.c.b16 %v2884, %v2883
        %v2888 = vpack.c.b16 %v2886, %v2885
        %v2892 = vsel %vm1216, %v2874, 0
        %2894 = vmatpush.bf16.msra.mxu0 0
        %2895 = vmatpush.bf16.msra.mxu0 0
        %2896 = vmatpush.bf16.msra.mxu0 0
        %2897 = vmatpush.bf16.msra.mxu0 0
        %2898 = vmatpush.bf16.msra.mxu0 0
        %2899 = vmatpush.bf16.msra.mxu0 0
        %2900 = vmatpush.bf16.msra.mxu0 %v2888
        %2901 = vmatpush.bf16.msra.mxu0 %v2887
        %2902 = vmatmul.bf16.gmra.mxu0 %v2892
        %v2903 = vpop.f32.mrf.mxu0
        %v2904 = vadd.f32 %v2877, %v2903
        %v2905 = vpop.f32.mrf.mxu0
        %2906 = vdwg.mxu0
        %v2907 = vmax.f32 %v2904, 0.0
        %v2908 = vld [vmem:[%s18] sm:$0xff]
        %v2909 = vld [vmem:[%s18 + $0x8] sm:$0xff]
        %v2910 = vld [vmem:[%s18 + $0x10] sm:$0xff]
        %v2911 = vld [vmem:[%s18 + $0x18] sm:$0xff]
        %v2912 = vpack.c.bf16 %v2907, %v2907
        %v2913 = vld [vmem:[%s19] sm:$0x3]
        %v2915 = vperm.slane %v2913, 0
        %v2916 = vperm.slane %v2913, 1
        %v2923 = vunpack.c.l.b16 %v2908
        %v2924 = vunpack.c.h.b16 %v2908
        %v2925 = vunpack.c.l.b16 %v2909
        %v2926 = vunpack.c.h.b16 %v2909
        %v2927 = vunpack.c.l.b16 %v2910
        %v2928 = vunpack.c.h.b16 %v2910
        %v2929 = vunpack.c.l.b16 %v2911
        %v2930 = vunpack.c.h.b16 %v2911
        %v2931 = vpack.c.b16 %v2925, %v2923
        %v2932 = vpack.c.b16 %v2926, %v2924
        %v2933 = vpack.c.b16 %v2929, %v2927
        %v2934 = vpack.c.b16 %v2930, %v2928
        %v2940 = vsel %vm1216, %v2912, 0
        %2942 = vmatpush.bf16.msra.mxu0 0
        %2943 = vmatpush.bf16.msra.mxu0 0
        %2944 = vmatpush.bf16.msra.mxu0 0
        %2945 = vmatpush.bf16.msra.mxu0 0
        %2946 = vmatpush.bf16.msra.mxu0 0
        %2947 = vmatpush.bf16.msra.mxu0 0
        %2948 = vmatpush.bf16.msra.mxu0 %v2933
        %2949 = vmatpush.bf16.msra.mxu0 %v2931
        %2950 = vmatmul.bf16.gmra.mxu0 %v2940
        %v2951 = vpop.f32.mrf.mxu0
        %v2952 = vadd.f32 %v2915, %v2951
        %v2953 = vpop.f32.mrf.mxu0
        %2954 = vdwg.mxu0
        %2955 = vmatpush.bf16.msra.mxu0 0
        %2956 = vmatpush.bf16.msra.mxu0 0
        %2957 = vmatpush.bf16.msra.mxu0 0
        %2958 = vmatpush.bf16.msra.mxu0 0
        %2959 = vmatpush.bf16.msra.mxu0 0
        %2960 = vmatpush.bf16.msra.mxu0 0
        %2961 = vmatpush.bf16.msra.mxu0 %v2934
        %2962 = vmatpush.bf16.msra.mxu0 %v2932
        %2963 = vmatmul.bf16.gmra.mxu0 %v2940
        %v2964 = vpop.f32.mrf.mxu0
        %v2965 = vadd.f32 %v2916, %v2964
        %v2966 = vpop.f32.mrf.mxu0
        %2967 = vdwg.mxu0
        %v2968 = vmul.f32 %v2952, %v2952
        %v2969 = vmul.f32 %v2965, %v2965
        %vm2970 = vcmask 1043456
        %v2971 = vsel %vm2970, %v2968, 0.0
        %v2972 = vsel %vm2970, %v2969, 0.0
        %v2973 = vadd.f32 %v2971, %v2972
        %2974 = vadd.xlane.f32.xlu0 %v2973
        %v2975 = vpop.xlane.xlu0 %2974
        %v2976 = vmax.f32 %v2975, 1e-24
        %v2977 = vrsqrt.pop %v2976
        %v2978 = vmul.f32 %v2977, %v2976
        %v2979 = vmul.f32 %v2978, %v2977
        %v2980 = vmul.f32 0.5, %v2979
        %v2981 = vsub.f32 1.5, %v2980
        %v2982 = vmul.f32 %v2977, %v2981
        %vm2983 = vweird.f32 %v2976
        %vm2984 = vweird.f32 %v2977
        %vm2985 = vmor %vm2983, %vm2984
        %v2986 = vsel %vm2985, %v2977, %v2982
        %v2987 = vmul.f32 %v2952, %v2986
        %v2988 = vmul.f32 %v2965, %v2986
        %v2991 = vrot.slane %v2988, 4
        %v2992 = vsel %vm2970, %v2987, %v2991
        %2994 = vst [vmem:[%s646] sm:$0xff] %v2992
        %s2995 = sand.u32 %s477, 1
        %s2996 = scalar_lea.sflag [#allocation3], %s2995
        %s2997 = sand.u32 %s477, 1
        %s2998 = smul.addr %s2997, 8
        %s2999 = scalar_lea.vmem [#allocation2], %s2998
        // Predicated region
        $region101: #{table_encoder_forward.1} parent=99 // pred_check
          %p3000 = pneg %p487
        $region102: #{table_encoder_forward.1} parent=99 // pred_check_branch
          %3002 = sbr.rel (%p3000) target = $region104
        $region103: #{table_encoder_forward.1} parent=99 // pred_region
          %3004 = vsyncadd %s2996, 0
          %s3005 = smul.addr %s34, 2
          %s3006 = smul.addr %s3005, 4
          %s3007 = scalar_lea.hbm %s20, %s3006
          %s3009 = sshll.u32 %s2999, 4
          %s3010 = int_to_ptr.vmem [resolvable:$true] %s3009
          %s3011 = sshll.u32 %s3007, 4
          %s3012 = int_to_ptr.hbm [resolvable:$true] %s3011
          %3014 = dma.vmem_to_hbm [thread:$0]  %s3010, 128, %s3012, %s2996
        $region104: #{table_encoder_forward.1} parent=99 // pred_fallthru
          _
      $region100: #{table_encoder_forward.1} parent=5 // pred_fallthru
        _
      %p3015 = scmp.le.s32.totalorder 2, %s29
      // Predicated region
      $region105: #{table_encoder_forward.1} parent=5 // pred_check
        %p3016 = pneg %p3015
      $region106: #{table_encoder_forward.1} parent=5 // pred_check_branch
        %3018 = sbr.rel (%p3016) target = $region108
      $region107: #{table_encoder_forward.1} parent=5 // pred_region
        %s3019 = ssub.s32 %s29, 2
        // Predicated region
        $region109: #{table_encoder_forward.1} parent=107 // pred_check
          %p3020 = pneg %p493
        $region110: #{table_encoder_forward.1} parent=107 // pred_check_branch
          %3022 = sbr.rel (%p3020) target = $region112
        $region111: #{table_encoder_forward.1} parent=107 // pred_region
          %s3023 = sand.u32 %s478, 1
          %s3024 = scalar_lea.sflag [#allocation3], %s3023
          %s3025 = sand.u32 %s478, 1
          %s3026 = smul.addr %s3025, 8
          %s3027 = scalar_lea.vmem [#allocation2], %s3026
          %3029 = dma.done %s3024, 128
        $region112: #{table_encoder_forward.1} parent=107 // pred_fallthru
          _
      $region108: #{table_encoder_forward.1} parent=5 // pred_fallthru
        _
    $region6: #{table_encoder_forward.1} parent=1 // loop_footer
      %s33 = sadd.s32 1, %s29
    $region7: #{table_encoder_forward.1} parent=1 // loop_footer_branch
      %28 = sbr.rel target = $region3
    $region8: #{table_encoder_forward.1} parent=1 // loop_exit
      _
    %3030 = vsyncpa [#allocation3], 1
    %s3031 = scalar_lea.sflag [#allocation3], 1
    %3032 = vsyncpa %s3031, 1

</llo_original>
